<compile_context>
chip_gen: v5e
topology: v5e:2x2
jax: 0.10.0
libtpu: 0.0.40
codegen_flags: <defaults>
</compile_context>

<pallas_src>
import functools

import jax
import jax.numpy as jnp
from jax.experimental import pallas as pl
from jax.experimental.pallas import tpu as pltpu

LANE = 128


def _round_up(x, m):
    return (x + m - 1) // m * m


def _refine_kernel(xp_ref, w1_ref, s1_ref, b1_ref, w2_ref, s2_ref, b2_ref,
                   o_ref, col1_ref, ypad_ref, col2_ref, *, H, W, residual):
    """One batch element: conv3x3 -> BN -> ReLU -> conv3x3 -> BN -> ReLU (+x).

    xp_ref  : (H+2, W+2, Cin)      spatially padded, channels-last input
    w1_ref  : (9*Cin, Cmid)        conv1 im2col weight
    w2_ref  : (9*Cmid, Cout)       conv2 im2col weight
    s*/b*   : (1, C)               folded eval-mode BN scale / shift (f32)
    o_ref   : (H*W, Cout)          output tile (lane-dense: Cout % 128 == 0)
    col1_ref: (H, W, 9*Cin)        im2col scratch for conv1 (compute dtype)
    ypad_ref: (H+2, W+2, Cmid)     padded intermediate (compute dtype)
    col2_ref: (H, W, 9*Cmid)       im2col scratch for conv2 (compute dtype)

    All channel dims are padded to multiples of 128 by the wrapper, so every
    lane offset below is a full-tile aligned store.
    """
    Cin = xp_ref.shape[-1]
    Cmid = w1_ref.shape[-1]
    Hp, Wp = H + 2, W + 2
    N = H * W

    # ---- conv1 im2col: one aligned full-tile copy per tap ------------------
    for k in range(9):
        dh, dw = divmod(k, 3)
        col1_ref[:, :, pl.ds(k * Cin, Cin)] = xp_ref[pl.ds(dh, H), pl.ds(dw, W), :]

    # ---- conv1 as a single big-K MXU matmul, f32 accumulation --------------
    a1 = col1_ref[...].reshape(N, 9 * Cin)
    acc1 = jnp.dot(a1, w1_ref[...], preferred_element_type=jnp.float32)
    # folded eval-mode BN + ReLU (VPU)
    y1 = jnp.maximum(acc1 * s1_ref[...] + b1_ref[...], 0.0)

    # ---- padded intermediate in the compute dtype ---------------------------
    # Zero only the 1-px halo each step (interior is fully rewritten below).
    # NOTE: a program_id==0 guard would be unsafe on megacore parts where the
    # "parallel" batch axis is split across cores (each core has its own
    # scratch and core 1 never sees program_id == 0).
    zrow = jnp.zeros((1, Wp, Cmid), ypad_ref.dtype)
    ypad_ref[pl.ds(0, 1), :, :] = zrow
    ypad_ref[pl.ds(Hp - 1, 1), :, :] = zrow
    zcol = jnp.zeros((Hp, 1, Cmid), ypad_ref.dtype)
    ypad_ref[:, pl.ds(0, 1), :] = zcol
    ypad_ref[:, pl.ds(Wp - 1, 1), :] = zcol
    ypad_ref[pl.ds(1, H), pl.ds(1, W), :] = (
        y1.astype(ypad_ref.dtype).reshape(H, W, Cmid))

    # ---- conv2 im2col + single matmul ---------------------------------------
    for k in range(9):
        dh, dw = divmod(k, 3)
        col2_ref[:, :, pl.ds(k * Cmid, Cmid)] = ypad_ref[pl.ds(dh, H), pl.ds(dw, W), :]
    a2 = col2_ref[...].reshape(N, 9 * Cmid)
    acc2 = jnp.dot(a2, w2_ref[...], preferred_element_type=jnp.float32)
    y2 = jnp.maximum(acc2 * s2_ref[...] + b2_ref[...], 0.0)

    if residual:
        # centre tap (kh=kw=1 -> k=4) of the conv1 im2col buffer IS the
        # original input; no extra strided-window slice needed.
        xc = col1_ref[:, :, pl.ds(4 * Cin, Cin)].reshape(N, Cin)
        y2 = y2 + xc.astype(jnp.float32)

    # Lane-dense store: minor dim is a multiple of 128 -> unmasked vst.
    o_ref[...] = y2.astype(o_ref.dtype)


def refine_unit(x, w1, bn1, w2, bn2, *, residual=False, eps=1e-5):
    """RefineUnit forward (eval-mode BN).

    x  : (B, Cin, H, W)
    w1 : (Cmid, Cin, 3, 3)    (PyTorch OIHW layout)
    w2 : (Cout, Cmid, 3, 3)
    bn1, bn2: tuples (gamma, beta, running_mean, running_var), each (C,)
    """
    B, Cin, H, W = x.shape
    Cmid = w1.shape[0]
    Cout = w2.shape[0]
    assert w1.shape == (Cmid, Cin, 3, 3)
    assert w2.shape == (Cout, Cmid, 3, 3)
    if residual and Cin != Cout:
        raise ValueError("residual=True requires in_channel == out_channel")

    # Pad channel dims to the 128-lane tile (exact: zero weight rows/cols).
    Cin_p, Cmid_p, Cout_p = (_round_up(c, LANE) for c in (Cin, Cmid, Cout))
    Hp, Wp = H + 2, W + 2
    N = H * W

    # Fold eval-mode BatchNorm into per-channel scale / shift (wrapper-side).
    def fold_bn(params, c, c_p):
        g, b, m, v = params
        scale = (g / jnp.sqrt(v + eps)).astype(jnp.float32)
        shift = (b - m * scale).astype(jnp.float32)
        scale = jnp.pad(scale, (0, c_p - c), constant_values=1.0)
        shift = jnp.pad(shift, (0, c_p - c))
        return scale.reshape(1, c_p), shift.reshape(1, c_p)

    s1, sh1 = fold_bn(bn1, Cmid, Cmid_p)
    s2, sh2 = fold_bn(bn2, Cout, Cout_p)

    # im2col weights: row index = (kh*3 + kw)*Cin_p + ci, matching the kernel.
    def prep_w(w, co, ci, co_p, ci_p):
        w = jnp.pad(w, ((0, co_p - co), (0, ci_p - ci), (0, 0), (0, 0)))
        return jnp.transpose(w, (2, 3, 1, 0)).reshape(9 * ci_p, co_p).astype(x.dtype)

    w1_k = prep_w(w1, Cmid, Cin, Cmid_p, Cin_p)
    w2_k = prep_w(w2, Cout, Cmid, Cout_p, Cmid_p)

    # Channel pad + spatial zero-pad + channels-last (layout plumbing in XLA).
    xp = jnp.transpose(
        jnp.pad(x, ((0, 0), (0, Cin_p - Cin), (1, 1), (1, 1))), (0, 2, 3, 1))

    kernel = functools.partial(_refine_kernel, H=H, W=W, residual=residual)

    # VMEM budget from actual per-step buffers (capped at 64 MiB: v7x-safe).
    itemsize = x.dtype.itemsize
    scratch_bytes = (H * W * 9 * Cin_p + Hp * Wp * Cmid_p
                     + H * W * 9 * Cmid_p) * itemsize
    io_bytes = (Hp * Wp * Cin_p + N * Cout_p) * itemsize
    w_bytes = (9 * Cin_p * Cmid_p + 9 * Cmid_p * Cout_p) * itemsize \
        + 2 * (Cmid_p + Cout_p) * 4
    need = scratch_bytes + 2 * (io_bytes + w_bytes)   # double-buffered I/O
    vmem_limit = int(min(max(2 * need, 32 * 1024 * 1024), 64 * 1024 * 1024))

    flops = 2 * B * N * 9 * (Cin_p * Cmid_p + Cmid_p * Cout_p)
    bytes_accessed = int(B * io_bytes + w_bytes)
    cost = pl.CostEstimate(flops=int(flops), transcendentals=0,
                           bytes_accessed=bytes_accessed)

    out_flat = pl.pallas_call(
        kernel,
        out_shape=jax.ShapeDtypeStruct((B, N, Cout_p), x.dtype),
        grid_spec=pltpu.PrefetchScalarGridSpec(
            num_scalar_prefetch=0,
            grid=(B,),
            in_specs=[
                pl.BlockSpec((None, Hp, Wp, Cin_p), lambda b: (b, 0, 0, 0)),  # x_pad
                pl.BlockSpec((9 * Cin_p, Cmid_p), lambda b: (0, 0)),          # w1 im2col
                pl.BlockSpec((1, Cmid_p), lambda b: (0, 0)),                  # bn1 scale
                pl.BlockSpec((1, Cmid_p), lambda b: (0, 0)),                  # bn1 shift
                pl.BlockSpec((9 * Cmid_p, Cout_p), lambda b: (0, 0)),         # w2 im2col
                pl.BlockSpec((1, Cout_p), lambda b: (0, 0)),                  # bn2 scale
                pl.BlockSpec((1, Cout_p), lambda b: (0, 0)),                  # bn2 shift
            ],
            out_specs=pl.BlockSpec((None, N, Cout_p), lambda b: (b, 0, 0)),
            scratch_shapes=[
                pltpu.VMEM((H, W, 9 * Cin_p), x.dtype),    # conv1 im2col
                pltpu.VMEM((Hp, Wp, Cmid_p), x.dtype),     # padded intermediate
                pltpu.VMEM((H, W, 9 * Cmid_p), x.dtype),   # conv2 im2col
            ],
        ),
        compiler_params=pltpu.CompilerParams(
            dimension_semantics=("parallel",),
            vmem_limit_bytes=vmem_limit,
        ),
        cost_estimate=cost,
    )(xp, w1_k, s1, sh1, w2_k, s2, sh2)

    # (B, H*W, Cout_p) -> (B, Cout, H, W): transpose + channel un-pad in XLA.
    return jnp.transpose(out_flat, (0, 2, 1))[:, :Cout, :].reshape(B, Cout, H, W)


def refine_reference(x, w1, bn1, w2, bn2, *, residual=False, eps=1e-5):
    """Pure-JAX reference mirroring the PyTorch forward (eval-mode BN)."""
    def bn(y, params):
        g, b, m, v = (p.reshape(1, -1, 1, 1) for p in params)
        return (y - m) / jnp.sqrt(v + eps) * g + b

    def conv(y, w):
        return jax.lax.conv_general_dilated(
            y, w, window_strides=(1, 1), padding=((1, 1), (1, 1)),
            dimension_numbers=("NCHW", "OIHW", "NCHW"),
            precision=jax.lax.Precision.HIGHEST)

    y = jax.nn.relu(bn(conv(x, w1), bn1))
    y = jax.nn.relu(bn(conv(y, w2), bn2))
    return y + x if residual else y


def _make_bn_params(key, c):
    k1, k2, k3, k4 = jax.random.split(key, 4)
    gamma = 1.0 + 0.1 * jax.random.normal(k1, (c,), dtype=jnp.float32)
    beta = 0.1 * jax.random.normal(k2, (c,), dtype=jnp.float32)
    mean = 0.1 * jax.random.normal(k3, (c,), dtype=jnp.float32)
    var = jax.random.uniform(k4, (c,), dtype=jnp.float32, minval=0.5, maxval=1.5)
    return gamma, beta, mean, var


if __name__ == "__main__":
    key = jax.random.PRNGKey(0)
    ks = jax.random.split(key, 10)
    B, Cin, Cout, H, W = 2, 4, 8, 16, 16

    x = jax.random.normal(ks[0], (B, Cin, H, W), dtype=jnp.float32)

    # --- non-residual path: in_channel=4 -> out_channel=8 ---
    w1 = 0.2 * jax.random.normal(ks[1], (Cout, Cin, 3, 3), dtype=jnp.float32)
    w2 = 0.2 * jax.random.normal(ks[2], (Cout, Cout, 3, 3), dtype=jnp.float32)
    bn1 = _make_bn_params(ks[3], Cout)
    bn2 = _make_bn_params(ks[4], Cout)

    out = refine_unit(x, w1, bn1, w2, bn2, residual=False)
    jax.block_until_ready(out)
    assert out.shape == (B, Cout, H, W)
    ref = refine_reference(x, w1, bn1, w2, bn2, residual=False)
    assert jnp.allclose(out, ref, atol=1e-4, rtol=1e-4), \
        float(jnp.max(jnp.abs(out - ref)))

    # --- residual path: in_channel == out_channel == 4 ---
    w1r = 0.2 * jax.random.normal(ks[5], (Cin, Cin, 3, 3), dtype=jnp.float32)
    w2r = 0.2 * jax.random.normal(ks[6], (Cin, Cin, 3, 3), dtype=jnp.float32)
    bn1r = _make_bn_params(ks[7], Cin)
    bn2r = _make_bn_params(ks[8], Cin)

    out_r = refine_unit(x, w1r, bn1r, w2r, bn2r, residual=True)
    jax.block_until_ready(out_r)
    assert out_r.shape == (B, Cin, H, W)
    ref_r = refine_reference(x, w1r, bn1r, w2r, bn2r, residual=True)
    assert jnp.allclose(out_r, ref_r, atol=1e-4, rtol=1e-4), \
        float(jnp.max(jnp.abs(out_r - ref_r)))

    print("KERNEL_OK")
</pallas_src>

<mosaic_0001>
module attributes {stable_mosaic.version = 11 : i64} {
  func.func @_refine_kernel(%arg0: i32, %arg1: memref<1x18x18x128xf32, #tpu.memory_space<vmem>>, %arg2: memref<1152x128xf32, #tpu.memory_space<vmem>>, %arg3: memref<1x128xf32, #tpu.memory_space<vmem>>, %arg4: memref<1x128xf32, #tpu.memory_space<vmem>>, %arg5: memref<1152x128xf32, #tpu.memory_space<vmem>>, %arg6: memref<1x128xf32, #tpu.memory_space<vmem>>, %arg7: memref<1x128xf32, #tpu.memory_space<vmem>>, %arg8: memref<1x256x128xf32, #tpu.memory_space<vmem>>, %arg9: memref<16x16x1152xf32, #tpu.memory_space<vmem>>, %arg10: memref<18x18x128xf32, #tpu.memory_space<vmem>>, %arg11: memref<16x16x1152xf32, #tpu.memory_space<vmem>>) attributes {dimension_semantics = [#tpu.dimension_semantics<parallel>], iteration_bounds = array<i64: 2>, scalar_prefetch = 0 : i64, scratch_operands = 3 : i64, tpu.core_type = #tpu.core_type<tc>, window_params = [{transform_indices = @transform_0, window_bounds = array<i64: 1, 18, 18, 128>}, {pipeline_mode = #tpu.pipeline_mode<synchronous>, transform_indices = @transform_1, window_bounds = array<i64: 1152, 128>}, {pipeline_mode = #tpu.pipeline_mode<synchronous>, transform_indices = @transform_2, window_bounds = array<i64: 1, 128>}, {pipeline_mode = #tpu.pipeline_mode<synchronous>, transform_indices = @transform_3, window_bounds = array<i64: 1, 128>}, {pipeline_mode = #tpu.pipeline_mode<synchronous>, transform_indices = @transform_4, window_bounds = array<i64: 1152, 128>}, {pipeline_mode = #tpu.pipeline_mode<synchronous>, transform_indices = @transform_5, window_bounds = array<i64: 1, 128>}, {pipeline_mode = #tpu.pipeline_mode<synchronous>, transform_indices = @transform_6, window_bounds = array<i64: 1, 128>}, {transform_indices = @transform_7, window_bounds = array<i64: 1, 256, 128>}]} {
    %c0 = arith.constant 0 : index
    %c0_0 = arith.constant 0 : index
    %c0_1 = arith.constant 0 : index
    %c0_2 = arith.constant 0 : index
    %0 = vector.load %arg1[%c0, %c0_0, %c0_1, %c0_2] : memref<1x18x18x128xf32, #tpu.memory_space<vmem>>, vector<1x16x16x128xf32>
    %1 = vector.shape_cast %0 : vector<1x16x16x128xf32> to vector<16x16x128xf32>
    %c0_3 = arith.constant 0 : index
    %c0_4 = arith.constant 0 : index
    %c0_5 = arith.constant 0 : index
    %2 = vector.load %arg9[%c0_3, %c0_4, %c0_5] : memref<16x16x1152xf32, #tpu.memory_space<vmem>>, vector<16x16x128xf32>
    tpu.vector_store %arg9[%c0_3, %c0_4, %c0_5], %1 {strides = array<i32>} : memref<16x16x1152xf32, #tpu.memory_space<vmem>>, vector<16x16x128xf32>,
    %c0_6 = arith.constant 0 : index
    %c0_7 = arith.constant 0 : index
    %c1 = arith.constant 1 : index
    %c0_8 = arith.constant 0 : index
    %3 = vector.load %arg1[%c0_6, %c0_7, %c1, %c0_8] : memref<1x18x18x128xf32, #tpu.memory_space<vmem>>, vector<1x16x16x128xf32>
    %4 = vector.shape_cast %3 : vector<1x16x16x128xf32> to vector<16x16x128xf32>
    %c0_9 = arith.constant 0 : index
    %c0_10 = arith.constant 0 : index
    %c128 = arith.constant 128 : index
    %5 = vector.load %arg9[%c0_9, %c0_10, %c128] : memref<16x16x1152xf32, #tpu.memory_space<vmem>>, vector<16x16x128xf32>
    tpu.vector_store %arg9[%c0_9, %c0_10, %c128], %4 {strides = array<i32>} : memref<16x16x1152xf32, #tpu.memory_space<vmem>>, vector<16x16x128xf32>,
    %c0_11 = arith.constant 0 : index
    %c0_12 = arith.constant 0 : index
    %c2 = arith.constant 2 : index
    %c0_13 = arith.constant 0 : index
    %6 = vector.load %arg1[%c0_11, %c0_12, %c2, %c0_13] : memref<1x18x18x128xf32, #tpu.memory_space<vmem>>, vector<1x16x16x128xf32>
    %7 = vector.shape_cast %6 : vector<1x16x16x128xf32> to vector<16x16x128xf32>
    %c0_14 = arith.constant 0 : index
    %c0_15 = arith.constant 0 : index
    %c256 = arith.constant 256 : index
    %8 = vector.load %arg9[%c0_14, %c0_15, %c256] : memref<16x16x1152xf32, #tpu.memory_space<vmem>>, vector<16x16x128xf32>
    tpu.vector_store %arg9[%c0_14, %c0_15, %c256], %7 {strides = array<i32>} : memref<16x16x1152xf32, #tpu.memory_space<vmem>>, vector<16x16x128xf32>,
    %c0_16 = arith.constant 0 : index
    %c1_17 = arith.constant 1 : index
    %c0_18 = arith.constant 0 : index
    %c0_19 = arith.constant 0 : index
    %9 = vector.load %arg1[%c0_16, %c1_17, %c0_18, %c0_19] : memref<1x18x18x128xf32, #tpu.memory_space<vmem>>, vector<1x16x16x128xf32>
    %10 = vector.shape_cast %9 : vector<1x16x16x128xf32> to vector<16x16x128xf32>
    %c0_20 = arith.constant 0 : index
    %c0_21 = arith.constant 0 : index
    %c384 = arith.constant 384 : index
    %11 = vector.load %arg9[%c0_20, %c0_21, %c384] : memref<16x16x1152xf32, #tpu.memory_space<vmem>>, vector<16x16x128xf32>
    tpu.vector_store %arg9[%c0_20, %c0_21, %c384], %10 {strides = array<i32>} : memref<16x16x1152xf32, #tpu.memory_space<vmem>>, vector<16x16x128xf32>,
    %c0_22 = arith.constant 0 : index
    %c1_23 = arith.constant 1 : index
    %c1_24 = arith.constant 1 : index
    %c0_25 = arith.constant 0 : index
    %12 = vector.load %arg1[%c0_22, %c1_23, %c1_24, %c0_25] : memref<1x18x18x128xf32, #tpu.memory_space<vmem>>, vector<1x16x16x128xf32>
    %13 = vector.shape_cast %12 : vector<1x16x16x128xf32> to vector<16x16x128xf32>
    %c0_26 = arith.constant 0 : index
    %c0_27 = arith.constant 0 : index
    %c512 = arith.constant 512 : index
    %14 = vector.load %arg9[%c0_26, %c0_27, %c512] : memref<16x16x1152xf32, #tpu.memory_space<vmem>>, vector<16x16x128xf32>
    tpu.vector_store %arg9[%c0_26, %c0_27, %c512], %13 {strides = array<i32>} : memref<16x16x1152xf32, #tpu.memory_space<vmem>>, vector<16x16x128xf32>,
    %c0_28 = arith.constant 0 : index
    %c1_29 = arith.constant 1 : index
    %c2_30 = arith.constant 2 : index
    %c0_31 = arith.constant 0 : index
    %15 = vector.load %arg1[%c0_28, %c1_29, %c2_30, %c0_31] : memref<1x18x18x128xf32, #tpu.memory_space<vmem>>, vector<1x16x16x128xf32>
    %16 = vector.shape_cast %15 : vector<1x16x16x128xf32> to vector<16x16x128xf32>
    %c0_32 = arith.constant 0 : index
    %c0_33 = arith.constant 0 : index
    %c640 = arith.constant 640 : index
    %17 = vector.load %arg9[%c0_32, %c0_33, %c640] : memref<16x16x1152xf32, #tpu.memory_space<vmem>>, vector<16x16x128xf32>
    tpu.vector_store %arg9[%c0_32, %c0_33, %c640], %16 {strides = array<i32>} : memref<16x16x1152xf32, #tpu.memory_space<vmem>>, vector<16x16x128xf32>,
    %c0_34 = arith.constant 0 : index
    %c2_35 = arith.constant 2 : index
    %c0_36 = arith.constant 0 : index
    %c0_37 = arith.constant 0 : index
    %18 = vector.load %arg1[%c0_34, %c2_35, %c0_36, %c0_37] : memref<1x18x18x128xf32, #tpu.memory_space<vmem>>, vector<1x16x16x128xf32>
    %19 = vector.shape_cast %18 : vector<1x16x16x128xf32> to vector<16x16x128xf32>
    %c0_38 = arith.constant 0 : index
    %c0_39 = arith.constant 0 : index
    %c768 = arith.constant 768 : index
    %20 = vector.load %arg9[%c0_38, %c0_39, %c768] : memref<16x16x1152xf32, #tpu.memory_space<vmem>>, vector<16x16x128xf32>
    tpu.vector_store %arg9[%c0_38, %c0_39, %c768], %19 {strides = array<i32>} : memref<16x16x1152xf32, #tpu.memory_space<vmem>>, vector<16x16x128xf32>,
    %c0_40 = arith.constant 0 : index
    %c2_41 = arith.constant 2 : index
    %c1_42 = arith.constant 1 : index
    %c0_43 = arith.constant 0 : index
    %21 = vector.load %arg1[%c0_40, %c2_41, %c1_42, %c0_43] : memref<1x18x18x128xf32, #tpu.memory_space<vmem>>, vector<1x16x16x128xf32>
    %22 = vector.shape_cast %21 : vector<1x16x16x128xf32> to vector<16x16x128xf32>
    %c0_44 = arith.constant 0 : index
    %c0_45 = arith.constant 0 : index
    %c896 = arith.constant 896 : index
    %23 = vector.load %arg9[%c0_44, %c0_45, %c896] : memref<16x16x1152xf32, #tpu.memory_space<vmem>>, vector<16x16x128xf32>
    tpu.vector_store %arg9[%c0_44, %c0_45, %c896], %22 {strides = array<i32>} : memref<16x16x1152xf32, #tpu.memory_space<vmem>>, vector<16x16x128xf32>,
    %c0_46 = arith.constant 0 : index
    %c2_47 = arith.constant 2 : index
    %c2_48 = arith.constant 2 : index
    %c0_49 = arith.constant 0 : index
    %24 = vector.load %arg1[%c0_46, %c2_47, %c2_48, %c0_49] : memref<1x18x18x128xf32, #tpu.memory_space<vmem>>, vector<1x16x16x128xf32>
    %25 = vector.shape_cast %24 : vector<1x16x16x128xf32> to vector<16x16x128xf32>
    %c0_50 = arith.constant 0 : index
    %c0_51 = arith.constant 0 : index
    %c1024 = arith.constant 1024 : index
    %26 = vector.load %arg9[%c0_50, %c0_51, %c1024] : memref<16x16x1152xf32, #tpu.memory_space<vmem>>, vector<16x16x128xf32>
    tpu.vector_store %arg9[%c0_50, %c0_51, %c1024], %25 {strides = array<i32>} : memref<16x16x1152xf32, #tpu.memory_space<vmem>>, vector<16x16x128xf32>,
    %c0_52 = arith.constant 0 : index
    %c0_53 = arith.constant 0 : index
    %c0_54 = arith.constant 0 : index
    %27 = vector.load %arg9[%c0_52, %c0_53, %c0_54] : memref<16x16x1152xf32, #tpu.memory_space<vmem>>, vector<16x16x1152xf32>
    %28 = vector.shape_cast %27 : vector<16x16x1152xf32> to vector<256x1152xf32>
    %c0_55 = arith.constant 0 : index
    %c0_56 = arith.constant 0 : index
    %29 = vector.load %arg2[%c0_55, %c0_56] : memref<1152x128xf32, #tpu.memory_space<vmem>>, vector<1152x128xf32>
    %cst = arith.constant dense<0.000000e+00> : vector<256x128xf32>
    %30 = tpu.matmul %28, %29, %cst {dimension_numbers = #tpu.dot_dimension_numbers<[1], [0], [0], [1], [0, 0, 1, 1], [], []>} : vector<256x1152xf32>, vector<1152x128xf32>, vector<256x128xf32> -> vector<256x128xf32>
    %c0_57 = arith.constant 0 : index
    %c0_58 = arith.constant 0 : index
    %31 = vector.load %arg3[%c0_57, %c0_58] : memref<1x128xf32, #tpu.memory_space<vmem>>, vector<1x128xf32>
    %32 = vector.broadcast %31 : vector<1x128xf32> to vector<256x128xf32>
    %33 = arith.mulf %30, %32 : vector<256x128xf32>
    %c0_59 = arith.constant 0 : index
    %c0_60 = arith.constant 0 : index
    %34 = vector.load %arg4[%c0_59, %c0_60] : memref<1x128xf32, #tpu.memory_space<vmem>>, vector<1x128xf32>
    %35 = vector.broadcast %34 : vector<1x128xf32> to vector<256x128xf32>
    %36 = arith.addf %33, %35 : vector<256x128xf32>
    %cst_61 = arith.constant 0.000000e+00 : f32
    %37 = vector.broadcast %cst_61 : f32 to vector<256x128xf32>
    %38 = arith.maximumf %36, %37 : vector<256x128xf32>
    %cst_62 = arith.constant 0.000000e+00 : f32
    %39 = vector.broadcast %cst_62 : f32 to vector<1x18x128xf32>
    %c0_63 = arith.constant 0 : index
    %c0_64 = arith.constant 0 : index
    %c0_65 = arith.constant 0 : index
    %40 = vector.load %arg10[%c0_63, %c0_64, %c0_65] : memref<18x18x128xf32, #tpu.memory_space<vmem>>, vector<1x18x128xf32>
    tpu.vector_store %arg10[%c0_63, %c0_64, %c0_65], %39 {strides = array<i32>} : memref<18x18x128xf32, #tpu.memory_space<vmem>>, vector<1x18x128xf32>,
    %c17 = arith.constant 17 : index
    %c0_66 = arith.constant 0 : index
    %c0_67 = arith.constant 0 : index
    %41 = vector.load %arg10[%c17, %c0_66, %c0_67] : memref<18x18x128xf32, #tpu.memory_space<vmem>>, vector<1x18x128xf32>
    tpu.vector_store %arg10[%c17, %c0_66, %c0_67], %39 {strides = array<i32>} : memref<18x18x128xf32, #tpu.memory_space<vmem>>, vector<1x18x128xf32>,
    %cst_68 = arith.constant 0.000000e+00 : f32
    %42 = vector.broadcast %cst_68 : f32 to vector<18x1x128xf32>
    %c0_69 = arith.constant 0 : index
    %c0_70 = arith.constant 0 : index
    %c0_71 = arith.constant 0 : index
    %43 = vector.load %arg10[%c0_69, %c0_70, %c0_71] : memref<18x18x128xf32, #tpu.memory_space<vmem>>, vector<18x1x128xf32>
    tpu.vector_store %arg10[%c0_69, %c0_70, %c0_71], %42 {strides = array<i32>} : memref<18x18x128xf32, #tpu.memory_space<vmem>>, vector<18x1x128xf32>,
    %c0_72 = arith.constant 0 : index
    %c17_73 = arith.constant 17 : index
    %c0_74 = arith.constant 0 : index
    %44 = vector.load %arg10[%c0_72, %c17_73, %c0_74] : memref<18x18x128xf32, #tpu.memory_space<vmem>>, vector<18x1x128xf32>
    tpu.vector_store %arg10[%c0_72, %c17_73, %c0_74], %42 {strides = array<i32>} : memref<18x18x128xf32, #tpu.memory_space<vmem>>, vector<18x1x128xf32>,
    %45 = vector.shape_cast %38 : vector<256x128xf32> to vector<16x16x128xf32>
    %c1_75 = arith.constant 1 : index
    %c1_76 = arith.constant 1 : index
    %c0_77 = arith.constant 0 : index
    %46 = vector.load %arg10[%c1_75, %c1_76, %c0_77] : memref<18x18x128xf32, #tpu.memory_space<vmem>>, vector<16x16x128xf32>
    tpu.vector_store %arg10[%c1_75, %c1_76, %c0_77], %45 {strides = array<i32>} : memref<18x18x128xf32, #tpu.memory_space<vmem>>, vector<16x16x128xf32>,
    %c0_78 = arith.constant 0 : index
    %c0_79 = arith.constant 0 : index
    %c0_80 = arith.constant 0 : index
    %47 = vector.load %arg10[%c0_78, %c0_79, %c0_80] : memref<18x18x128xf32, #tpu.memory_space<vmem>>, vector<16x16x128xf32>
    %c0_81 = arith.constant 0 : index
    %c0_82 = arith.constant 0 : index
    %c0_83 = arith.constant 0 : index
    %48 = vector.load %arg11[%c0_81, %c0_82, %c0_83] : memref<16x16x1152xf32, #tpu.memory_space<vmem>>, vector<16x16x128xf32>
    tpu.vector_store %arg11[%c0_81, %c0_82, %c0_83], %47 {strides = array<i32>} : memref<16x16x1152xf32, #tpu.memory_space<vmem>>, vector<16x16x128xf32>,
    %c0_84 = arith.constant 0 : index
    %c1_85 = arith.constant 1 : index
    %c0_86 = arith.constant 0 : index
    %49 = vector.load %arg10[%c0_84, %c1_85, %c0_86] : memref<18x18x128xf32, #tpu.memory_space<vmem>>, vector<16x16x128xf32>
    %c0_87 = arith.constant 0 : index
    %c0_88 = arith.constant 0 : index
    %c128_89 = arith.constant 128 : index
    %50 = vector.load %arg11[%c0_87, %c0_88, %c128_89] : memref<16x16x1152xf32, #tpu.memory_space<vmem>>, vector<16x16x128xf32>
    tpu.vector_store %arg11[%c0_87, %c0_88, %c128_89], %49 {strides = array<i32>} : memref<16x16x1152xf32, #tpu.memory_space<vmem>>, vector<16x16x128xf32>,
    %c0_90 = arith.constant 0 : index
    %c2_91 = arith.constant 2 : index
    %c0_92 = arith.constant 0 : index
    %51 = vector.load %arg10[%c0_90, %c2_91, %c0_92] : memref<18x18x128xf32, #tpu.memory_space<vmem>>, vector<16x16x128xf32>
    %c0_93 = arith.constant 0 : index
    %c0_94 = arith.constant 0 : index
    %c256_95 = arith.constant 256 : index
    %52 = vector.load %arg11[%c0_93, %c0_94, %c256_95] : memref<16x16x1152xf32, #tpu.memory_space<vmem>>, vector<16x16x128xf32>
    tpu.vector_store %arg11[%c0_93, %c0_94, %c256_95], %51 {strides = array<i32>} : memref<16x16x1152xf32, #tpu.memory_space<vmem>>, vector<16x16x128xf32>,
    %c1_96 = arith.constant 1 : index
    %c0_97 = arith.constant 0 : index
    %c0_98 = arith.constant 0 : index
    %53 = vector.load %arg10[%c1_96, %c0_97, %c0_98] : memref<18x18x128xf32, #tpu.memory_space<vmem>>, vector<16x16x128xf32>
    %c0_99 = arith.constant 0 : index
    %c0_100 = arith.constant 0 : index
    %c384_101 = arith.constant 384 : index
    %54 = vector.load %arg11[%c0_99, %c0_100, %c384_101] : memref<16x16x1152xf32, #tpu.memory_space<vmem>>, vector<16x16x128xf32>
    tpu.vector_store %arg11[%c0_99, %c0_100, %c384_101], %53 {strides = array<i32>} : memref<16x16x1152xf32, #tpu.memory_space<vmem>>, vector<16x16x128xf32>,
    %c1_102 = arith.constant 1 : index
    %c1_103 = arith.constant 1 : index
    %c0_104 = arith.constant 0 : index
    %55 = vector.load %arg10[%c1_102, %c1_103, %c0_104] : memref<18x18x128xf32, #tpu.memory_space<vmem>>, vector<16x16x128xf32>
    %c0_105 = arith.constant 0 : index
    %c0_106 = arith.constant 0 : index
    %c512_107 = arith.constant 512 : index
    %56 = vector.load %arg11[%c0_105, %c0_106, %c512_107] : memref<16x16x1152xf32, #tpu.memory_space<vmem>>, vector<16x16x128xf32>
    tpu.vector_store %arg11[%c0_105, %c0_106, %c512_107], %55 {strides = array<i32>} : memref<16x16x1152xf32, #tpu.memory_space<vmem>>, vector<16x16x128xf32>,
    %c1_108 = arith.constant 1 : index
    %c2_109 = arith.constant 2 : index
    %c0_110 = arith.constant 0 : index
    %57 = vector.load %arg10[%c1_108, %c2_109, %c0_110] : memref<18x18x128xf32, #tpu.memory_space<vmem>>, vector<16x16x128xf32>
    %c0_111 = arith.constant 0 : index
    %c0_112 = arith.constant 0 : index
    %c640_113 = arith.constant 640 : index
    %58 = vector.load %arg11[%c0_111, %c0_112, %c640_113] : memref<16x16x1152xf32, #tpu.memory_space<vmem>>, vector<16x16x128xf32>
    tpu.vector_store %arg11[%c0_111, %c0_112, %c640_113], %57 {strides = array<i32>} : memref<16x16x1152xf32, #tpu.memory_space<vmem>>, vector<16x16x128xf32>,
    %c2_114 = arith.constant 2 : index
    %c0_115 = arith.constant 0 : index
    %c0_116 = arith.constant 0 : index
    %59 = vector.load %arg10[%c2_114, %c0_115, %c0_116] : memref<18x18x128xf32, #tpu.memory_space<vmem>>, vector<16x16x128xf32>
    %c0_117 = arith.constant 0 : index
    %c0_118 = arith.constant 0 : index
    %c768_119 = arith.constant 768 : index
    %60 = vector.load %arg11[%c0_117, %c0_118, %c768_119] : memref<16x16x1152xf32, #tpu.memory_space<vmem>>, vector<16x16x128xf32>
    tpu.vector_store %arg11[%c0_117, %c0_118, %c768_119], %59 {strides = array<i32>} : memref<16x16x1152xf32, #tpu.memory_space<vmem>>, vector<16x16x128xf32>,
    %c2_120 = arith.constant 2 : index
    %c1_121 = arith.constant 1 : index
    %c0_122 = arith.constant 0 : index
    %61 = vector.load %arg10[%c2_120, %c1_121, %c0_122] : memref<18x18x128xf32, #tpu.memory_space<vmem>>, vector<16x16x128xf32>
    %c0_123 = arith.constant 0 : index
    %c0_124 = arith.constant 0 : index
    %c896_125 = arith.constant 896 : index
    %62 = vector.load %arg11[%c0_123, %c0_124, %c896_125] : memref<16x16x1152xf32, #tpu.memory_space<vmem>>, vector<16x16x128xf32>
    tpu.vector_store %arg11[%c0_123, %c0_124, %c896_125], %61 {strides = array<i32>} : memref<16x16x1152xf32, #tpu.memory_space<vmem>>, vector<16x16x128xf32>,
    %c2_126 = arith.constant 2 : index
    %c2_127 = arith.constant 2 : index
    %c0_128 = arith.constant 0 : index
    %63 = vector.load %arg10[%c2_126, %c2_127, %c0_128] : memref<18x18x128xf32, #tpu.memory_space<vmem>>, vector<16x16x128xf32>
    %c0_129 = arith.constant 0 : index
    %c0_130 = arith.constant 0 : index
    %c1024_131 = arith.constant 1024 : index
    %64 = vector.load %arg11[%c0_129, %c0_130, %c1024_131] : memref<16x16x1152xf32, #tpu.memory_space<vmem>>, vector<16x16x128xf32>
    tpu.vector_store %arg11[%c0_129, %c0_130, %c1024_131], %63 {strides = array<i32>} : memref<16x16x1152xf32, #tpu.memory_space<vmem>>, vector<16x16x128xf32>,
    %c0_132 = arith.constant 0 : index
    %c0_133 = arith.constant 0 : index
    %c0_134 = arith.constant 0 : index
    %65 = vector.load %arg11[%c0_132, %c0_133, %c0_134] : memref<16x16x1152xf32, #tpu.memory_space<vmem>>, vector<16x16x1152xf32>
    %66 = vector.shape_cast %65 : vector<16x16x1152xf32> to vector<256x1152xf32>
    %c0_135 = arith.constant 0 : index
    %c0_136 = arith.constant 0 : index
    %67 = vector.load %arg5[%c0_135, %c0_136] : memref<1152x128xf32, #tpu.memory_space<vmem>>, vector<1152x128xf32>
    %cst_137 = arith.constant dense<0.000000e+00> : vector<256x128xf32>
    %68 = tpu.matmul %66, %67, %cst_137 {dimension_numbers = #tpu.dot_dimension_numbers<[1], [0], [0], [1], [0, 0, 1, 1], [], []>} : vector<256x1152xf32>, vector<1152x128xf32>, vector<256x128xf32> -> vector<256x128xf32>
    %c0_138 = arith.constant 0 : index
    %c0_139 = arith.constant 0 : index
    %69 = vector.load %arg6[%c0_138, %c0_139] : memref<1x128xf32, #tpu.memory_space<vmem>>, vector<1x128xf32>
    %70 = vector.broadcast %69 : vector<1x128xf32> to vector<256x128xf32>
    %71 = arith.mulf %68, %70 : vector<256x128xf32>
    %c0_140 = arith.constant 0 : index
    %c0_141 = arith.constant 0 : index
    %72 = vector.load %arg7[%c0_140, %c0_141] : memref<1x128xf32, #tpu.memory_space<vmem>>, vector<1x128xf32>
    %73 = vector.broadcast %72 : vector<1x128xf32> to vector<256x128xf32>
    %74 = arith.addf %71, %73 : vector<256x128xf32>
    %cst_142 = arith.constant 0.000000e+00 : f32
    %75 = vector.broadcast %cst_142 : f32 to vector<256x128xf32>
    %76 = arith.maximumf %74, %75 : vector<256x128xf32>
    %c0_143 = arith.constant 0 : index
    %c0_144 = arith.constant 0 : index
    %c0_145 = arith.constant 0 : index
    %77 = vector.load %arg8[%c0_143, %c0_144, %c0_145] : memref<1x256x128xf32, #tpu.memory_space<vmem>>, vector<1x256x128xf32>
    %78 = vector.shape_cast %77 : vector<1x256x128xf32> to vector<256x128xf32>
    %79 = vector.shape_cast %76 : vector<256x128xf32> to vector<1x256x128xf32>
    tpu.vector_store %arg8[%c0_143, %c0_144, %c0_145], %79 {strides = array<i32>} : memref<1x256x128xf32, #tpu.memory_space<vmem>>, vector<1x256x128xf32>,
    return
  }
  func.func @transform_0(%arg0: i32) -> (i32, i32, i32, i32) {
    %c0_i32 = arith.constant 0 : i32
    %c0_i32_0 = arith.constant 0 : i32
    %c0_i32_1 = arith.constant 0 : i32
    %c0_i32_2 = arith.constant 0 : i32
    return %arg0, %c0_i32, %c0_i32_0, %c0_i32_1 : i32, i32, i32, i32
  }
  func.func @transform_1(%arg0: i32) -> (i32, i32) {
    %c0_i32 = arith.constant 0 : i32
    %c0_i32_0 = arith.constant 0 : i32
    %c0_i32_1 = arith.constant 0 : i32
    return %c0_i32, %c0_i32_0 : i32, i32
  }
  func.func @transform_2(%arg0: i32) -> (i32, i32) {
    %c0_i32 = arith.constant 0 : i32
    %c0_i32_0 = arith.constant 0 : i32
    %c0_i32_1 = arith.constant 0 : i32
    return %c0_i32, %c0_i32_0 : i32, i32
  }
  func.func @transform_3(%arg0: i32) -> (i32, i32) {
    %c0_i32 = arith.constant 0 : i32
    %c0_i32_0 = arith.constant 0 : i32
    %c0_i32_1 = arith.constant 0 : i32
    return %c0_i32, %c0_i32_0 : i32, i32
  }
  func.func @transform_4(%arg0: i32) -> (i32, i32) {
    %c0_i32 = arith.constant 0 : i32
    %c0_i32_0 = arith.constant 0 : i32
    %c0_i32_1 = arith.constant 0 : i32
    return %c0_i32, %c0_i32_0 : i32, i32
  }
  func.func @transform_5(%arg0: i32) -> (i32, i32) {
    %c0_i32 = arith.constant 0 : i32
    %c0_i32_0 = arith.constant 0 : i32
    %c0_i32_1 = arith.constant 0 : i32
    return %c0_i32, %c0_i32_0 : i32, i32
  }
  func.func @transform_6(%arg0: i32) -> (i32, i32) {
    %c0_i32 = arith.constant 0 : i32
    %c0_i32_0 = arith.constant 0 : i32
    %c0_i32_1 = arith.constant 0 : i32
    return %c0_i32, %c0_i32_0 : i32, i32
  }
  func.func @transform_7(%arg0: i32) -> (i32, i32, i32) {
    %c0_i32 = arith.constant 0 : i32
    %c0_i32_0 = arith.constant 0 : i32
    %c0_i32_1 = arith.constant 0 : i32
    return %arg0, %c0_i32, %c0_i32_0 : i32, i32, i32
  }
}

</mosaic_0001>

<llo_original>
// kernel: tpu_custom_call.1
$region0: #{tpu_custom_call.1}
  #allocation0 [shape = 'u32[]', space=smem, size = 0x4, offset = 0x4, fixed_abs, tag = 'smem constant byte address 0x4 - core index']
  #allocation1 [shape = 'u32[72,128]{1,0:T(1,128)}', space=vmem, size = 0x9000, scoped, tag = 'internal scratch']
  #allocation2 [shape = 'f32[16,16,1152]{2,1,0:T(8,128)}', space=vmem, size = 0x120000, scoped, tag = 'scratch operand']
  #allocation3 [shape = 'f32[18,18,128]{2,1,0:T(8,128)}', space=vmem, size = 0x36000, scoped, tag = 'scratch operand']
  #allocation4 [shape = 'f32[16,16,1152]{2,1,0:T(8,128)}', space=vmem, size = 0x120000, scoped, tag = 'scratch operand']
  %s0 = inlined_call_operand.vmem [shape: f32[2,18,18,128], index: 0, kind: input, shape index: {}]
  %s1 = inlined_call_operand.vmem [shape: f32[1152,128], index: 1, kind: input, shape index: {}]
  %s2 = inlined_call_operand.vmem [shape: f32[1,128], index: 2, kind: input, shape index: {}]
  %s3 = inlined_call_operand.vmem [shape: f32[1,128], index: 3, kind: input, shape index: {}]
  %s4 = inlined_call_operand.hbm [shape: f32[1152,128], index: 4, kind: input, shape index: {}]
  %s5 = inlined_call_operand.vmem [shape: f32[1,128], index: 5, kind: input, shape index: {}]
  %s6 = inlined_call_operand.vmem [shape: f32[1,128], index: 6, kind: input, shape index: {}]
  %s7 = inlined_call_operand.hbm [shape: f32[2,256,128], index: 7, kind: output, shape index: {}]
  %s8 = sld [smem:[#allocation0]]
  $region65: #{tpu_custom_call.1} parent=0
    _
  %s10 = ssub.s32 1, %s8
  %s11 = scalar_select 0, %s10, %s8
  $region1: #{tpu_custom_call.1} parent=0
    #allocation5 [shape = 'u8[589824]{0}', space=vmem, size = 0x90000, scoped, tag = 'input window, operand 4, single buffered']
    #allocation6 [shape = 's32[2]{0}', space=sflag, size = 0x8, scoped, tag = 'scoped memory for tpu_custom_call.1']
    #allocation7 [shape = 's32[2]{0}', space=sflag, size = 0x8, scoped, tag = 'scoped memory for tpu_custom_call.1']
    #allocation8 [shape = 'u8[262144]{0}', space=vmem, size = 0x40000, scoped, tag = 'output window, operand 0']
    %12 = vsyncpa [#allocation6], 0
    %13 = vsyncpa [#allocation7], 0
    %s14 = scalar_lea.sflag [#allocation7], 1
    %15 = vsyncpa %s14, 0
    loop: start=0, step=1, limit=4
    $region2: #{tpu_custom_call.1} parent=1 // loop_pre_header
      _
    $region3: #{tpu_custom_call.1} parent=1 // loop_header
      %s17 = sphi 0, %s21
      %p18 = scmp.ge.s32.totalorder %s17, 4
      %s27 = sphi 0, %s29
      %s30 = sphi 0, %s27
      %s31 = sphi 0, %s30
      %s47 = sphi 0, %s31
      %s51 = sphi 0, %s51
      %s53 = sphi 0, %s51
      %s54 = sphi 0, %s53
      %s68 = sphi 0, %s54
      %s72 = sphi 0, %s72
      %s74 = sphi 0, %s72
      %s75 = sphi 0, %s74
      %s89 = sphi 0, %s75
      %s93 = sphi 0, %s93
      %s95 = sphi 0, %s93
      %s96 = sphi 0, %s95
      %s110 = sphi 0, %s96
      %s114 = sphi 0, %s114
      %s116 = sphi 0, %s114
      %s117 = sphi 0, %s116
      %s131 = sphi 0, %s117
      %s135 = sphi 0, %s135
      %s137 = sphi 0, %s135
      %s138 = sphi 0, %s137
      %s152 = sphi 0, %s138
      %s156 = sphi 0, %s156
      %s158 = sphi 0, %s156
      %s159 = sphi 0, %s158
      %s173 = sphi 0, %s159
      %s179 = sphi 0, %s181
      %s182 = sphi 0, %s179
      %s183 = sphi 0, %s182
      %s199 = sphi 0, %s183
    $region4: #{tpu_custom_call.1} parent=1 // loop_header_branch
      %20 = sbr.rel (%p18) target = $region8
    $region5: #{tpu_custom_call.1} parent=1 // loop_body
      %s22 = ssub.s32 %s17, 1
      %s23 = ssub.s32 %s17, 2
      %s24 = sadd.s32 %s17, 1
      %s25 = ssub.s32 %s17, %s24
      %p26 = scmp.eq.s32.totalorder %s25, 0
      %s28 = sadd.s32 %s27, 1
      %s29 = scalar_select %p26, %s27, %s28
      %p32 = pneg %p26
      %p33 = scmp.eq.s32.totalorder %s17, 1
      %p34 = por %p32, %p33
      %p35 = scmp.ne.s32.totalorder %s27, %s30
      %p36 = scmp.eq.s32.totalorder %s17, 0
      %p37 = por %p35, %p36
      %p38 = scmp.ne.s32.totalorder %s27, %s30
      %p39 = scmp.eq.s32.totalorder %s22, 1
      %p40 = por %p38, %p39
      %p41 = scmp.ne.s32.totalorder %s30, %s31
      %p42 = scmp.eq.s32.totalorder %s22, 0
      %p43 = por %p41, %p42
      %p44 = scmp.ne.s32.totalorder %s30, %s31
      %p45 = scmp.eq.s32.totalorder %s23, 1
      %p46 = por %p44, %p45
      %p48 = scmp.ne.s32.totalorder %s31, %s47
      %p49 = scmp.eq.s32.totalorder %s23, 0
      %p50 = por %p48, %p49
      %s52 = sadd.s32 %s51, 1
      %p55 = scmp.eq.s32.totalorder %s17, 1
      %p56 = scmp.ne.s32.totalorder %s51, %s53
      %p57 = scmp.eq.s32.totalorder %s17, 0
      %p58 = por %p56, %p57
      %p59 = scmp.ne.s32.totalorder %s51, %s53
      %p60 = scmp.eq.s32.totalorder %s22, 1
      %p61 = por %p59, %p60
      %p62 = scmp.ne.s32.totalorder %s53, %s54
      %p63 = scmp.eq.s32.totalorder %s22, 0
      %p64 = por %p62, %p63
      %p65 = scmp.ne.s32.totalorder %s53, %s54
      %p66 = scmp.eq.s32.totalorder %s23, 1
      %p67 = por %p65, %p66
      %p69 = scmp.ne.s32.totalorder %s54, %s68
      %p70 = scmp.eq.s32.totalorder %s23, 0
      %p71 = por %p69, %p70
      %s73 = sadd.s32 %s72, 1
      %p76 = scmp.eq.s32.totalorder %s17, 1
      %p77 = scmp.ne.s32.totalorder %s72, %s74
      %p78 = scmp.eq.s32.totalorder %s17, 0
      %p79 = por %p77, %p78
      %p80 = scmp.ne.s32.totalorder %s72, %s74
      %p81 = scmp.eq.s32.totalorder %s22, 1
      %p82 = por %p80, %p81
      %p83 = scmp.ne.s32.totalorder %s74, %s75
      %p84 = scmp.eq.s32.totalorder %s22, 0
      %p85 = por %p83, %p84
      %p86 = scmp.ne.s32.totalorder %s74, %s75
      %p87 = scmp.eq.s32.totalorder %s23, 1
      %p88 = por %p86, %p87
      %p90 = scmp.ne.s32.totalorder %s75, %s89
      %p91 = scmp.eq.s32.totalorder %s23, 0
      %p92 = por %p90, %p91
      %s94 = sadd.s32 %s93, 1
      %p97 = scmp.eq.s32.totalorder %s17, 1
      %p98 = scmp.ne.s32.totalorder %s93, %s95
      %p99 = scmp.eq.s32.totalorder %s17, 0
      %p100 = por %p98, %p99
      %p101 = scmp.ne.s32.totalorder %s93, %s95
      %p102 = scmp.eq.s32.totalorder %s22, 1
      %p103 = por %p101, %p102
      %p104 = scmp.ne.s32.totalorder %s95, %s96
      %p105 = scmp.eq.s32.totalorder %s22, 0
      %p106 = por %p104, %p105
      %p107 = scmp.ne.s32.totalorder %s95, %s96
      %p108 = scmp.eq.s32.totalorder %s23, 1
      %p109 = por %p107, %p108
      %p111 = scmp.ne.s32.totalorder %s96, %s110
      %p112 = scmp.eq.s32.totalorder %s23, 0
      %p113 = por %p111, %p112
      %s115 = sadd.s32 %s114, 1
      %p118 = scmp.eq.s32.totalorder %s17, 1
      %p119 = scmp.ne.s32.totalorder %s114, %s116
      %p120 = scmp.eq.s32.totalorder %s17, 0
      %p121 = por %p119, %p120
      %p122 = scmp.ne.s32.totalorder %s114, %s116
      %p123 = scmp.eq.s32.totalorder %s22, 1
      %p124 = por %p122, %p123
      %p125 = scmp.ne.s32.totalorder %s116, %s117
      %p126 = scmp.eq.s32.totalorder %s22, 0
      %p127 = por %p125, %p126
      %p128 = scmp.ne.s32.totalorder %s116, %s117
      %p129 = scmp.eq.s32.totalorder %s23, 1
      %p130 = por %p128, %p129
      %p132 = scmp.ne.s32.totalorder %s117, %s131
      %p133 = scmp.eq.s32.totalorder %s23, 0
      %p134 = por %p132, %p133
      %s136 = sadd.s32 %s135, 1
      %p139 = scmp.eq.s32.totalorder %s17, 1
      %p140 = scmp.ne.s32.totalorder %s135, %s137
      %p141 = scmp.eq.s32.totalorder %s17, 0
      %p142 = por %p140, %p141
      %p143 = scmp.ne.s32.totalorder %s135, %s137
      %p144 = scmp.eq.s32.totalorder %s22, 1
      %p145 = por %p143, %p144
      %p146 = scmp.ne.s32.totalorder %s137, %s138
      %p147 = scmp.eq.s32.totalorder %s22, 0
      %p148 = por %p146, %p147
      %p149 = scmp.ne.s32.totalorder %s137, %s138
      %p150 = scmp.eq.s32.totalorder %s23, 1
      %p151 = por %p149, %p150
      %p153 = scmp.ne.s32.totalorder %s138, %s152
      %p154 = scmp.eq.s32.totalorder %s23, 0
      %p155 = por %p153, %p154
      %s157 = sadd.s32 %s156, 1
      %p160 = scmp.eq.s32.totalorder %s17, 1
      %p161 = scmp.ne.s32.totalorder %s156, %s158
      %p162 = scmp.eq.s32.totalorder %s17, 0
      %p163 = por %p161, %p162
      %p164 = scmp.ne.s32.totalorder %s156, %s158
      %p165 = scmp.eq.s32.totalorder %s22, 1
      %p166 = por %p164, %p165
      %p167 = scmp.ne.s32.totalorder %s158, %s159
      %p168 = scmp.eq.s32.totalorder %s22, 0
      %p169 = por %p167, %p168
      %p170 = scmp.ne.s32.totalorder %s158, %s159
      %p171 = scmp.eq.s32.totalorder %s23, 1
      %p172 = por %p170, %p171
      %p174 = scmp.ne.s32.totalorder %s159, %s173
      %p175 = scmp.eq.s32.totalorder %s23, 0
      %p176 = por %p174, %p175
      %s177 = ssub.s32 %s17, %s24
      %p178 = scmp.eq.s32.totalorder %s177, 0
      %s180 = sadd.s32 %s179, 1
      %s181 = scalar_select %p178, %s179, %s180
      %p184 = pneg %p178
      %p185 = scmp.eq.s32.totalorder %s17, 1
      %p186 = por %p184, %p185
      %p187 = scmp.ne.s32.totalorder %s179, %s182
      %p188 = scmp.eq.s32.totalorder %s17, 0
      %p189 = por %p187, %p188
      %p190 = scmp.ne.s32.totalorder %s179, %s182
      %p191 = scmp.eq.s32.totalorder %s22, 1
      %p192 = por %p190, %p191
      %p193 = scmp.ne.s32.totalorder %s182, %s183
      %p194 = scmp.eq.s32.totalorder %s22, 0
      %p195 = por %p193, %p194
      %p196 = scmp.ne.s32.totalorder %s182, %s183
      %p197 = scmp.eq.s32.totalorder %s23, 1
      %p198 = por %p196, %p197
      %p200 = scmp.ne.s32.totalorder %s183, %s199
      %p201 = scmp.eq.s32.totalorder %s23, 0
      %p202 = por %p200, %p201
      %p203 = scmp.le.s32.totalorder 1, %s17
      %p204 = scmp.lt.s32.totalorder %s17, 3
      %p205 = pnand %p203, %p204
      %p206 = pneg %p205
      // Predicated region
      $region9: #{tpu_custom_call.1} parent=5 // pred_check
        _
      $region10: #{tpu_custom_call.1} parent=5 // pred_check_branch
        %208 = sbr.rel (%p205) target = $region12
      $region11: #{tpu_custom_call.1} parent=5 // pred_region
        %s209 = ssub.s32 %s17, 1
        // Predicated region
        $region13: #{tpu_custom_call.1} parent=11 // pred_check
          %p210 = pneg %p64
        $region14: #{tpu_custom_call.1} parent=11 // pred_check_branch
          %212 = sbr.rel (%p210) target = $region16
        $region15: #{tpu_custom_call.1} parent=11 // pred_region
          _
        $region16: #{tpu_custom_call.1} parent=11 // pred_fallthru
          _
        // Predicated region
        $region17: #{tpu_custom_call.1} parent=11 // pred_check
          %p213 = pneg %p85
        $region18: #{tpu_custom_call.1} parent=11 // pred_check_branch
          %215 = sbr.rel (%p213) target = $region20
        $region19: #{tpu_custom_call.1} parent=11 // pred_region
          _
        $region20: #{tpu_custom_call.1} parent=11 // pred_fallthru
          _
        // Predicated region
        $region21: #{tpu_custom_call.1} parent=11 // pred_check
          %p216 = pneg %p106
        $region22: #{tpu_custom_call.1} parent=11 // pred_check_branch
          %218 = sbr.rel (%p216) target = $region24
        $region23: #{tpu_custom_call.1} parent=11 // pred_region
          _
        $region24: #{tpu_custom_call.1} parent=11 // pred_fallthru
          _
        // Predicated region
        $region25: #{tpu_custom_call.1} parent=11 // pred_check
          %p219 = pneg %p127
        $region26: #{tpu_custom_call.1} parent=11 // pred_check_branch
          %221 = sbr.rel (%p219) target = $region28
        $region27: #{tpu_custom_call.1} parent=11 // pred_region
          %223 = vsyncadd [#allocation6], 0
          %s224 = sshll.u32 %s4, 4
          %s225 = int_to_ptr.hbm [resolvable:$true] %s224
          %s226 = sshll.u32 [#allocation5], 4
          %s227 = int_to_ptr.vmem [resolvable:$true] %s226
          %232 = dma.hbm_to_vmem [thread:$0]  %s225, 18432, %s227, [#allocation6], 128, 128, 8
        $region28: #{tpu_custom_call.1} parent=11 // pred_fallthru
          _
        // Predicated region
        $region29: #{tpu_custom_call.1} parent=11 // pred_check
          %p233 = pneg %p148
        $region30: #{tpu_custom_call.1} parent=11 // pred_check_branch
          %235 = sbr.rel (%p233) target = $region32
        $region31: #{tpu_custom_call.1} parent=11 // pred_region
          _
        $region32: #{tpu_custom_call.1} parent=11 // pred_fallthru
          _
        // Predicated region
        $region33: #{tpu_custom_call.1} parent=11 // pred_check
          %p236 = pneg %p169
        $region34: #{tpu_custom_call.1} parent=11 // pred_check_branch
          %238 = sbr.rel (%p236) target = $region36
        $region35: #{tpu_custom_call.1} parent=11 // pred_region
          _
        $region36: #{tpu_custom_call.1} parent=11 // pred_fallthru
          _
      $region12: #{tpu_custom_call.1} parent=5 // pred_fallthru
        _
      %p239 = scmp.lt.s32.totalorder %s17, 2
      // Predicated region
      $region37: #{tpu_custom_call.1} parent=5 // pred_check
        %p240 = pneg %p239
      $region38: #{tpu_custom_call.1} parent=5 // pred_check_branch
        %242 = sbr.rel (%p240) target = $region40
      $region39: #{tpu_custom_call.1} parent=5 // pred_region
        // Predicated region
        $region41: #{tpu_custom_call.1} parent=39 // pred_check
          %p243 = pneg %p37
        $region42: #{tpu_custom_call.1} parent=39 // pred_check_branch
          %245 = sbr.rel (%p243) target = $region44
        $region43: #{tpu_custom_call.1} parent=39 // pred_region
          %p246 = scmp.lt.s32.totalorder %s17, 1
          %s247 = scalar_select %p246, %s17, 1
          %s248 = smul.addr %s247, 54
          %s249 = smul.addr %s248, 8
          %s250 = scalar_lea.vmem %s0, %s249
        $region44: #{tpu_custom_call.1} parent=39 // pred_fallthru
          _
      $region40: #{tpu_custom_call.1} parent=5 // pred_fallthru
        _
      %p251 = scmp.le.s32.totalorder 1, %s17
      %p252 = scmp.lt.s32.totalorder %s17, 3
      %p253 = pnand %p251, %p252
      %p254 = pneg %p253
      // Predicated region
      $region45: #{tpu_custom_call.1} parent=5 // pred_check
        _
      $region46: #{tpu_custom_call.1} parent=5 // pred_check_branch
        %256 = sbr.rel (%p253) target = $region48
      $region47: #{tpu_custom_call.1} parent=5 // pred_region
        %s257 = ssub.s32 %s17, 1
        // Predicated region
        $region49: #{tpu_custom_call.1} parent=47 // pred_check
          %p258 = pneg %p127
        $region50: #{tpu_custom_call.1} parent=47 // pred_check_branch
          %260 = sbr.rel (%p258) target = $region52
        $region51: #{tpu_custom_call.1} parent=47 // pred_region
          %262 = dma.done [#allocation6], 18432
        $region52: #{tpu_custom_call.1} parent=47 // pred_fallthru
          _
        %p263 = scmp.lt.s32.totalorder %s22, 1
        %s264 = scalar_select %p263, %s22, 1
        %s265 = smul.addr %s264, 54
        %s266 = smul.addr %s265, 8
        %s267 = scalar_lea.vmem %s0, %s266
        %p268 = pneg %p43
        %p269 = pneg %p40
        %p270 = pneg %p64
        %p271 = pneg %p61
        %p272 = pneg %p85
        %p273 = pneg %p82
        %p274 = pneg %p106
        %p275 = pneg %p103
        %p276 = pneg %p127
        %p277 = pneg %p124
        %p278 = pneg %p148
        %p279 = pneg %p145
        %p280 = pneg %p169
        %p281 = pneg %p166
        %p282 = pneg %p195
        %p283 = pneg %p192
        %s284 = sand.u32 %s182, 1
        %s285 = scalar_lea.sflag [#allocation7], %s284
        %s286 = sand.u32 %s182, 1
        %s287 = smul.addr %s286, 256
        %s288 = scalar_lea.vmem [#allocation8], %s287
        %p289 = scmp.lt.s32.totalorder %s22, 1
        %s290 = scalar_select %p289, %s22, 1
        %s291 = smul.addr %s290, 54
        %s292 = smul.addr %s291, 8
        %s293 = scalar_lea.vmem %s0, %s292
        %v294 = vld [vmem:[%s293] sm:$0xff]
        %v295 = vld [vmem:[%s293 + $0x8] sm:$0xff]
        %v296 = vld [vmem:[%s293 + $0x18] sm:$0xff]
        %v297 = vld [vmem:[%s293 + $0x20] sm:$0xff]
        %v298 = vld [vmem:[%s293 + $0x30] sm:$0xff]
        %v299 = vld [vmem:[%s293 + $0x38] sm:$0xff]
        %v300 = vld [vmem:[%s293 + $0x48] sm:$0xff]
        %v301 = vld [vmem:[%s293 + $0x50] sm:$0xff]
        %v302 = vld [vmem:[%s293 + $0x60] sm:$0xff]
        %v303 = vld [vmem:[%s293 + $0x68] sm:$0xff]
        %v304 = vld [vmem:[%s293 + $0x78] sm:$0xff]
        %v305 = vld [vmem:[%s293 + $0x80] sm:$0xff]
        %v306 = vld [vmem:[%s293 + $0x90] sm:$0xff]
        %v307 = vld [vmem:[%s293 + $0x98] sm:$0xff]
        %v308 = vld [vmem:[%s293 + $0xa8] sm:$0xff]
        %v309 = vld [vmem:[%s293 + $0xb0] sm:$0xff]
        %v310 = vld [vmem:[%s293 + $0xc0] sm:$0xff]
        %v311 = vld [vmem:[%s293 + $0xc8] sm:$0xff]
        %v312 = vld [vmem:[%s293 + $0xd8] sm:$0xff]
        %v313 = vld [vmem:[%s293 + $0xe0] sm:$0xff]
        %v314 = vld [vmem:[%s293 + $0xf0] sm:$0xff]
        %v315 = vld [vmem:[%s293 + $0xf8] sm:$0xff]
        %v316 = vld [vmem:[%s293 + $0x108] sm:$0xff]
        %v317 = vld [vmem:[%s293 + $0x110] sm:$0xff]
        %v318 = vld [vmem:[%s293 + $0x120] sm:$0xff]
        %v319 = vld [vmem:[%s293 + $0x128] sm:$0xff]
        %v320 = vld [vmem:[%s293 + $0x138] sm:$0xff]
        %v321 = vld [vmem:[%s293 + $0x140] sm:$0xff]
        %v322 = vld [vmem:[%s293 + $0x150] sm:$0xff]
        %v323 = vld [vmem:[%s293 + $0x158] sm:$0xff]
        %v324 = vld [vmem:[%s293 + $0x168] sm:$0xff]
        %v325 = vld [vmem:[%s293 + $0x170] sm:$0xff]
        %326 = vst [vmem:[#allocation2] sm:$0xff] %v294
        %327 = vst [vmem:[#allocation2 + $0x48] sm:$0xff] %v295
        %328 = vst [vmem:[#allocation2 + $0x90] sm:$0xff] %v296
        %329 = vst [vmem:[#allocation2 + $0xd8] sm:$0xff] %v297
        %330 = vst [vmem:[#allocation2 + $0x120] sm:$0xff] %v298
        %331 = vst [vmem:[#allocation2 + $0x168] sm:$0xff] %v299
        %332 = vst [vmem:[#allocation2 + $0x1b0] sm:$0xff] %v300
        %333 = vst [vmem:[#allocation2 + $0x1f8] sm:$0xff] %v301
        %334 = vst [vmem:[#allocation2 + $0x240] sm:$0xff] %v302
        %335 = vst [vmem:[#allocation2 + $0x288] sm:$0xff] %v303
        %336 = vst [vmem:[#allocation2 + $0x2d0] sm:$0xff] %v304
        %337 = vst [vmem:[#allocation2 + $0x318] sm:$0xff] %v305
        %338 = vst [vmem:[#allocation2 + $0x360] sm:$0xff] %v306
        %339 = vst [vmem:[#allocation2 + $0x3a8] sm:$0xff] %v307
        %340 = vst [vmem:[#allocation2 + $0x3f0] sm:$0xff] %v308
        %341 = vst [vmem:[#allocation2 + $0x438] sm:$0xff] %v309
        %342 = vst [vmem:[#allocation2 + $0x480] sm:$0xff] %v310
        %343 = vst [vmem:[#allocation2 + $0x4c8] sm:$0xff] %v311
        %344 = vst [vmem:[#allocation2 + $0x510] sm:$0xff] %v312
        %345 = vst [vmem:[#allocation2 + $0x558] sm:$0xff] %v313
        %346 = vst [vmem:[#allocation2 + $0x5a0] sm:$0xff] %v314
        %347 = vst [vmem:[#allocation2 + $0x5e8] sm:$0xff] %v315
        %348 = vst [vmem:[#allocation2 + $0x630] sm:$0xff] %v316
        %349 = vst [vmem:[#allocation2 + $0x678] sm:$0xff] %v317
        %350 = vst [vmem:[#allocation2 + $0x6c0] sm:$0xff] %v318
        %351 = vst [vmem:[#allocation2 + $0x708] sm:$0xff] %v319
        %352 = vst [vmem:[#allocation2 + $0x750] sm:$0xff] %v320
        %353 = vst [vmem:[#allocation2 + $0x798] sm:$0xff] %v321
        %354 = vst [vmem:[#allocation2 + $0x7e0] sm:$0xff] %v322
        %355 = vst [vmem:[#allocation2 + $0x828] sm:$0xff] %v323
        %356 = vst [vmem:[#allocation2 + $0x870] sm:$0xff] %v324
        %357 = vst [vmem:[#allocation2 + $0x8b8] sm:$0xff] %v325
        %v358 = vld [vmem:[%s293 + $0x1] sm:$0xff]
        %v359 = vld [vmem:[%s293 + $0x9] sm:$0xff]
        %v360 = vld [vmem:[%s293 + $0x19] sm:$0xff]
        %v361 = vld [vmem:[%s293 + $0x21] sm:$0xff]
        %v362 = vld [vmem:[%s293 + $0x31] sm:$0xff]
        %v363 = vld [vmem:[%s293 + $0x39] sm:$0xff]
        %v364 = vld [vmem:[%s293 + $0x49] sm:$0xff]
        %v365 = vld [vmem:[%s293 + $0x51] sm:$0xff]
        %v366 = vld [vmem:[%s293 + $0x61] sm:$0xff]
        %v367 = vld [vmem:[%s293 + $0x69] sm:$0xff]
        %v368 = vld [vmem:[%s293 + $0x79] sm:$0xff]
        %v369 = vld [vmem:[%s293 + $0x81] sm:$0xff]
        %v370 = vld [vmem:[%s293 + $0x91] sm:$0xff]
        %v371 = vld [vmem:[%s293 + $0x99] sm:$0xff]
        %v372 = vld [vmem:[%s293 + $0xa9] sm:$0xff]
        %v373 = vld [vmem:[%s293 + $0xb1] sm:$0xff]
        %v374 = vld [vmem:[%s293 + $0xc1] sm:$0xff]
        %v375 = vld [vmem:[%s293 + $0xc9] sm:$0xff]
        %v376 = vld [vmem:[%s293 + $0xd9] sm:$0xff]
        %v377 = vld [vmem:[%s293 + $0xe1] sm:$0xff]
        %v378 = vld [vmem:[%s293 + $0xf1] sm:$0xff]
        %v379 = vld [vmem:[%s293 + $0xf9] sm:$0xff]
        %v380 = vld [vmem:[%s293 + $0x109] sm:$0xff]
        %v381 = vld [vmem:[%s293 + $0x111] sm:$0xff]
        %v382 = vld [vmem:[%s293 + $0x121] sm:$0xff]
        %v383 = vld [vmem:[%s293 + $0x129] sm:$0xff]
        %v384 = vld [vmem:[%s293 + $0x139] sm:$0xff]
        %v385 = vld [vmem:[%s293 + $0x141] sm:$0xff]
        %v386 = vld [vmem:[%s293 + $0x151] sm:$0xff]
        %v387 = vld [vmem:[%s293 + $0x159] sm:$0xff]
        %v388 = vld [vmem:[%s293 + $0x169] sm:$0xff]
        %v389 = vld [vmem:[%s293 + $0x171] sm:$0xff]
        %390 = vst [vmem:[#allocation2 + $0x8] sm:$0xff] %v358
        %391 = vst [vmem:[#allocation2 + $0x50] sm:$0xff] %v359
        %392 = vst [vmem:[#allocation2 + $0x98] sm:$0xff] %v360
        %393 = vst [vmem:[#allocation2 + $0xe0] sm:$0xff] %v361
        %394 = vst [vmem:[#allocation2 + $0x128] sm:$0xff] %v362
        %395 = vst [vmem:[#allocation2 + $0x170] sm:$0xff] %v363
        %396 = vst [vmem:[#allocation2 + $0x1b8] sm:$0xff] %v364
        %397 = vst [vmem:[#allocation2 + $0x200] sm:$0xff] %v365
        %398 = vst [vmem:[#allocation2 + $0x248] sm:$0xff] %v366
        %399 = vst [vmem:[#allocation2 + $0x290] sm:$0xff] %v367
        %400 = vst [vmem:[#allocation2 + $0x2d8] sm:$0xff] %v368
        %401 = vst [vmem:[#allocation2 + $0x320] sm:$0xff] %v369
        %402 = vst [vmem:[#allocation2 + $0x368] sm:$0xff] %v370
        %403 = vst [vmem:[#allocation2 + $0x3b0] sm:$0xff] %v371
        %404 = vst [vmem:[#allocation2 + $0x3f8] sm:$0xff] %v372
        %405 = vst [vmem:[#allocation2 + $0x440] sm:$0xff] %v373
        %406 = vst [vmem:[#allocation2 + $0x488] sm:$0xff] %v374
        %407 = vst [vmem:[#allocation2 + $0x4d0] sm:$0xff] %v375
        %408 = vst [vmem:[#allocation2 + $0x518] sm:$0xff] %v376
        %409 = vst [vmem:[#allocation2 + $0x560] sm:$0xff] %v377
        %410 = vst [vmem:[#allocation2 + $0x5a8] sm:$0xff] %v378
        %411 = vst [vmem:[#allocation2 + $0x5f0] sm:$0xff] %v379
        %412 = vst [vmem:[#allocation2 + $0x638] sm:$0xff] %v380
        %413 = vst [vmem:[#allocation2 + $0x680] sm:$0xff] %v381
        %414 = vst [vmem:[#allocation2 + $0x6c8] sm:$0xff] %v382
        %415 = vst [vmem:[#allocation2 + $0x710] sm:$0xff] %v383
        %416 = vst [vmem:[#allocation2 + $0x758] sm:$0xff] %v384
        %417 = vst [vmem:[#allocation2 + $0x7a0] sm:$0xff] %v385
        %418 = vst [vmem:[#allocation2 + $0x7e8] sm:$0xff] %v386
        %419 = vst [vmem:[#allocation2 + $0x830] sm:$0xff] %v387
        %420 = vst [vmem:[#allocation2 + $0x878] sm:$0xff] %v388
        %421 = vst [vmem:[#allocation2 + $0x8c0] sm:$0xff] %v389
        %v422 = vld [vmem:[%s293 + $0x2] sm:$0xff]
        %v423 = vld [vmem:[%s293 + $0xa] sm:$0xff]
        %v424 = vld [vmem:[%s293 + $0x1a] sm:$0xff]
        %v425 = vld [vmem:[%s293 + $0x22] sm:$0xff]
        %v426 = vld [vmem:[%s293 + $0x32] sm:$0xff]
        %v427 = vld [vmem:[%s293 + $0x3a] sm:$0xff]
        %v428 = vld [vmem:[%s293 + $0x4a] sm:$0xff]
        %v429 = vld [vmem:[%s293 + $0x52] sm:$0xff]
        %v430 = vld [vmem:[%s293 + $0x62] sm:$0xff]
        %v431 = vld [vmem:[%s293 + $0x6a] sm:$0xff]
        %v432 = vld [vmem:[%s293 + $0x7a] sm:$0xff]
        %v433 = vld [vmem:[%s293 + $0x82] sm:$0xff]
        %v434 = vld [vmem:[%s293 + $0x92] sm:$0xff]
        %v435 = vld [vmem:[%s293 + $0x9a] sm:$0xff]
        %v436 = vld [vmem:[%s293 + $0xaa] sm:$0xff]
        %v437 = vld [vmem:[%s293 + $0xb2] sm:$0xff]
        %v438 = vld [vmem:[%s293 + $0xc2] sm:$0xff]
        %v439 = vld [vmem:[%s293 + $0xca] sm:$0xff]
        %v440 = vld [vmem:[%s293 + $0xda] sm:$0xff]
        %v441 = vld [vmem:[%s293 + $0xe2] sm:$0xff]
        %v442 = vld [vmem:[%s293 + $0xf2] sm:$0xff]
        %v443 = vld [vmem:[%s293 + $0xfa] sm:$0xff]
        %v444 = vld [vmem:[%s293 + $0x10a] sm:$0xff]
        %v445 = vld [vmem:[%s293 + $0x112] sm:$0xff]
        %v446 = vld [vmem:[%s293 + $0x122] sm:$0xff]
        %v447 = vld [vmem:[%s293 + $0x12a] sm:$0xff]
        %v448 = vld [vmem:[%s293 + $0x13a] sm:$0xff]
        %v449 = vld [vmem:[%s293 + $0x142] sm:$0xff]
        %v450 = vld [vmem:[%s293 + $0x152] sm:$0xff]
        %v451 = vld [vmem:[%s293 + $0x15a] sm:$0xff]
        %v452 = vld [vmem:[%s293 + $0x16a] sm:$0xff]
        %v453 = vld [vmem:[%s293 + $0x172] sm:$0xff]
        %454 = vst [vmem:[#allocation2 + $0x10] sm:$0xff] %v422
        %455 = vst [vmem:[#allocation2 + $0x58] sm:$0xff] %v423
        %456 = vst [vmem:[#allocation2 + $0xa0] sm:$0xff] %v424
        %457 = vst [vmem:[#allocation2 + $0xe8] sm:$0xff] %v425
        %458 = vst [vmem:[#allocation2 + $0x130] sm:$0xff] %v426
        %459 = vst [vmem:[#allocation2 + $0x178] sm:$0xff] %v427
        %460 = vst [vmem:[#allocation2 + $0x1c0] sm:$0xff] %v428
        %461 = vst [vmem:[#allocation2 + $0x208] sm:$0xff] %v429
        %462 = vst [vmem:[#allocation2 + $0x250] sm:$0xff] %v430
        %463 = vst [vmem:[#allocation2 + $0x298] sm:$0xff] %v431
        %464 = vst [vmem:[#allocation2 + $0x2e0] sm:$0xff] %v432
        %465 = vst [vmem:[#allocation2 + $0x328] sm:$0xff] %v433
        %466 = vst [vmem:[#allocation2 + $0x370] sm:$0xff] %v434
        %467 = vst [vmem:[#allocation2 + $0x3b8] sm:$0xff] %v435
        %468 = vst [vmem:[#allocation2 + $0x400] sm:$0xff] %v436
        %469 = vst [vmem:[#allocation2 + $0x448] sm:$0xff] %v437
        %470 = vst [vmem:[#allocation2 + $0x490] sm:$0xff] %v438
        %471 = vst [vmem:[#allocation2 + $0x4d8] sm:$0xff] %v439
        %472 = vst [vmem:[#allocation2 + $0x520] sm:$0xff] %v440
        %473 = vst [vmem:[#allocation2 + $0x568] sm:$0xff] %v441
        %474 = vst [vmem:[#allocation2 + $0x5b0] sm:$0xff] %v442
        %475 = vst [vmem:[#allocation2 + $0x5f8] sm:$0xff] %v443
        %476 = vst [vmem:[#allocation2 + $0x640] sm:$0xff] %v444
        %477 = vst [vmem:[#allocation2 + $0x688] sm:$0xff] %v445
        %478 = vst [vmem:[#allocation2 + $0x6d0] sm:$0xff] %v446
        %479 = vst [vmem:[#allocation2 + $0x718] sm:$0xff] %v447
        %480 = vst [vmem:[#allocation2 + $0x760] sm:$0xff] %v448
        %481 = vst [vmem:[#allocation2 + $0x7a8] sm:$0xff] %v449
        %482 = vst [vmem:[#allocation2 + $0x7f0] sm:$0xff] %v450
        %483 = vst [vmem:[#allocation2 + $0x838] sm:$0xff] %v451
        %484 = vst [vmem:[#allocation2 + $0x880] sm:$0xff] %v452
        %485 = vst [vmem:[#allocation2 + $0x8c8] sm:$0xff] %v453
        %s486 = scalar_lea.vmem %s293, 24
        %v487 = vld [vmem:[%s486] sm:$0xff]
        %v488 = vld [vmem:[%s486 + $0x8] sm:$0xff]
        %v489 = vld [vmem:[%s486 + $0x18] sm:$0xff]
        %v490 = vld [vmem:[%s486 + $0x20] sm:$0xff]
        %v491 = vld [vmem:[%s486 + $0x30] sm:$0xff]
        %v492 = vld [vmem:[%s486 + $0x38] sm:$0xff]
        %v493 = vld [vmem:[%s486 + $0x48] sm:$0xff]
        %v494 = vld [vmem:[%s486 + $0x50] sm:$0xff]
        %v495 = vld [vmem:[%s486 + $0x60] sm:$0xff]
        %v496 = vld [vmem:[%s486 + $0x68] sm:$0xff]
        %v497 = vld [vmem:[%s486 + $0x78] sm:$0xff]
        %v498 = vld [vmem:[%s486 + $0x80] sm:$0xff]
        %v499 = vld [vmem:[%s486 + $0x90] sm:$0xff]
        %v500 = vld [vmem:[%s486 + $0x98] sm:$0xff]
        %v501 = vld [vmem:[%s486 + $0xa8] sm:$0xff]
        %v502 = vld [vmem:[%s486 + $0xb0] sm:$0xff]
        %v503 = vld [vmem:[%s486 + $0xc0] sm:$0xff]
        %v504 = vld [vmem:[%s486 + $0xc8] sm:$0xff]
        %v505 = vld [vmem:[%s486 + $0xd8] sm:$0xff]
        %v506 = vld [vmem:[%s486 + $0xe0] sm:$0xff]
        %v507 = vld [vmem:[%s486 + $0xf0] sm:$0xff]
        %v508 = vld [vmem:[%s486 + $0xf8] sm:$0xff]
        %v509 = vld [vmem:[%s486 + $0x108] sm:$0xff]
        %v510 = vld [vmem:[%s486 + $0x110] sm:$0xff]
        %v511 = vld [vmem:[%s486 + $0x120] sm:$0xff]
        %v512 = vld [vmem:[%s486 + $0x128] sm:$0xff]
        %v513 = vld [vmem:[%s486 + $0x138] sm:$0xff]
        %v514 = vld [vmem:[%s486 + $0x140] sm:$0xff]
        %v515 = vld [vmem:[%s486 + $0x150] sm:$0xff]
        %v516 = vld [vmem:[%s486 + $0x158] sm:$0xff]
        %v517 = vld [vmem:[%s486 + $0x168] sm:$0xff]
        %v518 = vld [vmem:[%s486 + $0x170] sm:$0xff]
        %519 = vst [vmem:[#allocation2 + $0x18] sm:$0xff] %v487
        %520 = vst [vmem:[#allocation2 + $0x60] sm:$0xff] %v488
        %521 = vst [vmem:[#allocation2 + $0xa8] sm:$0xff] %v489
        %522 = vst [vmem:[#allocation2 + $0xf0] sm:$0xff] %v490
        %523 = vst [vmem:[#allocation2 + $0x138] sm:$0xff] %v491
        %524 = vst [vmem:[#allocation2 + $0x180] sm:$0xff] %v492
        %525 = vst [vmem:[#allocation2 + $0x1c8] sm:$0xff] %v493
        %526 = vst [vmem:[#allocation2 + $0x210] sm:$0xff] %v494
        %527 = vst [vmem:[#allocation2 + $0x258] sm:$0xff] %v495
        %528 = vst [vmem:[#allocation2 + $0x2a0] sm:$0xff] %v496
        %529 = vst [vmem:[#allocation2 + $0x2e8] sm:$0xff] %v497
        %530 = vst [vmem:[#allocation2 + $0x330] sm:$0xff] %v498
        %531 = vst [vmem:[#allocation2 + $0x378] sm:$0xff] %v499
        %532 = vst [vmem:[#allocation2 + $0x3c0] sm:$0xff] %v500
        %533 = vst [vmem:[#allocation2 + $0x408] sm:$0xff] %v501
        %534 = vst [vmem:[#allocation2 + $0x450] sm:$0xff] %v502
        %535 = vst [vmem:[#allocation2 + $0x498] sm:$0xff] %v503
        %536 = vst [vmem:[#allocation2 + $0x4e0] sm:$0xff] %v504
        %537 = vst [vmem:[#allocation2 + $0x528] sm:$0xff] %v505
        %538 = vst [vmem:[#allocation2 + $0x570] sm:$0xff] %v506
        %539 = vst [vmem:[#allocation2 + $0x5b8] sm:$0xff] %v507
        %540 = vst [vmem:[#allocation2 + $0x600] sm:$0xff] %v508
        %541 = vst [vmem:[#allocation2 + $0x648] sm:$0xff] %v509
        %542 = vst [vmem:[#allocation2 + $0x690] sm:$0xff] %v510
        %543 = vst [vmem:[#allocation2 + $0x6d8] sm:$0xff] %v511
        %544 = vst [vmem:[#allocation2 + $0x720] sm:$0xff] %v512
        %545 = vst [vmem:[#allocation2 + $0x768] sm:$0xff] %v513
        %546 = vst [vmem:[#allocation2 + $0x7b0] sm:$0xff] %v514
        %547 = vst [vmem:[#allocation2 + $0x7f8] sm:$0xff] %v515
        %548 = vst [vmem:[#allocation2 + $0x840] sm:$0xff] %v516
        %549 = vst [vmem:[#allocation2 + $0x888] sm:$0xff] %v517
        %550 = vst [vmem:[#allocation2 + $0x8d0] sm:$0xff] %v518
        %v551 = vld [vmem:[%s486 + $0x1] sm:$0xff]
        %v552 = vld [vmem:[%s486 + $0x9] sm:$0xff]
        %v553 = vld [vmem:[%s486 + $0x19] sm:$0xff]
        %v554 = vld [vmem:[%s486 + $0x21] sm:$0xff]
        %v555 = vld [vmem:[%s486 + $0x31] sm:$0xff]
        %v556 = vld [vmem:[%s486 + $0x39] sm:$0xff]
        %v557 = vld [vmem:[%s486 + $0x49] sm:$0xff]
        %v558 = vld [vmem:[%s486 + $0x51] sm:$0xff]
        %v559 = vld [vmem:[%s486 + $0x61] sm:$0xff]
        %v560 = vld [vmem:[%s486 + $0x69] sm:$0xff]
        %v561 = vld [vmem:[%s486 + $0x79] sm:$0xff]
        %v562 = vld [vmem:[%s486 + $0x81] sm:$0xff]
        %v563 = vld [vmem:[%s486 + $0x91] sm:$0xff]
        %v564 = vld [vmem:[%s486 + $0x99] sm:$0xff]
        %v565 = vld [vmem:[%s486 + $0xa9] sm:$0xff]
        %v566 = vld [vmem:[%s486 + $0xb1] sm:$0xff]
        %v567 = vld [vmem:[%s486 + $0xc1] sm:$0xff]
        %v568 = vld [vmem:[%s486 + $0xc9] sm:$0xff]
        %v569 = vld [vmem:[%s486 + $0xd9] sm:$0xff]
        %v570 = vld [vmem:[%s486 + $0xe1] sm:$0xff]
        %v571 = vld [vmem:[%s486 + $0xf1] sm:$0xff]
        %v572 = vld [vmem:[%s486 + $0xf9] sm:$0xff]
        %v573 = vld [vmem:[%s486 + $0x109] sm:$0xff]
        %v574 = vld [vmem:[%s486 + $0x111] sm:$0xff]
        %v575 = vld [vmem:[%s486 + $0x121] sm:$0xff]
        %v576 = vld [vmem:[%s486 + $0x129] sm:$0xff]
        %v577 = vld [vmem:[%s486 + $0x139] sm:$0xff]
        %v578 = vld [vmem:[%s486 + $0x141] sm:$0xff]
        %v579 = vld [vmem:[%s486 + $0x151] sm:$0xff]
        %v580 = vld [vmem:[%s486 + $0x159] sm:$0xff]
        %v581 = vld [vmem:[%s486 + $0x169] sm:$0xff]
        %v582 = vld [vmem:[%s486 + $0x171] sm:$0xff]
        %583 = vst [vmem:[#allocation2 + $0x20] sm:$0xff] %v551
        %584 = vst [vmem:[#allocation2 + $0x68] sm:$0xff] %v552
        %585 = vst [vmem:[#allocation2 + $0xb0] sm:$0xff] %v553
        %586 = vst [vmem:[#allocation2 + $0xf8] sm:$0xff] %v554
        %587 = vst [vmem:[#allocation2 + $0x140] sm:$0xff] %v555
        %588 = vst [vmem:[#allocation2 + $0x188] sm:$0xff] %v556
        %589 = vst [vmem:[#allocation2 + $0x1d0] sm:$0xff] %v557
        %590 = vst [vmem:[#allocation2 + $0x218] sm:$0xff] %v558
        %591 = vst [vmem:[#allocation2 + $0x260] sm:$0xff] %v559
        %592 = vst [vmem:[#allocation2 + $0x2a8] sm:$0xff] %v560
        %593 = vst [vmem:[#allocation2 + $0x2f0] sm:$0xff] %v561
        %594 = vst [vmem:[#allocation2 + $0x338] sm:$0xff] %v562
        %595 = vst [vmem:[#allocation2 + $0x380] sm:$0xff] %v563
        %596 = vst [vmem:[#allocation2 + $0x3c8] sm:$0xff] %v564
        %597 = vst [vmem:[#allocation2 + $0x410] sm:$0xff] %v565
        %598 = vst [vmem:[#allocation2 + $0x458] sm:$0xff] %v566
        %599 = vst [vmem:[#allocation2 + $0x4a0] sm:$0xff] %v567
        %600 = vst [vmem:[#allocation2 + $0x4e8] sm:$0xff] %v568
        %601 = vst [vmem:[#allocation2 + $0x530] sm:$0xff] %v569
        %602 = vst [vmem:[#allocation2 + $0x578] sm:$0xff] %v570
        %603 = vst [vmem:[#allocation2 + $0x5c0] sm:$0xff] %v571
        %604 = vst [vmem:[#allocation2 + $0x608] sm:$0xff] %v572
        %605 = vst [vmem:[#allocation2 + $0x650] sm:$0xff] %v573
        %606 = vst [vmem:[#allocation2 + $0x698] sm:$0xff] %v574
        %607 = vst [vmem:[#allocation2 + $0x6e0] sm:$0xff] %v575
        %608 = vst [vmem:[#allocation2 + $0x728] sm:$0xff] %v576
        %609 = vst [vmem:[#allocation2 + $0x770] sm:$0xff] %v577
        %610 = vst [vmem:[#allocation2 + $0x7b8] sm:$0xff] %v578
        %611 = vst [vmem:[#allocation2 + $0x800] sm:$0xff] %v579
        %612 = vst [vmem:[#allocation2 + $0x848] sm:$0xff] %v580
        %613 = vst [vmem:[#allocation2 + $0x890] sm:$0xff] %v581
        %614 = vst [vmem:[#allocation2 + $0x8d8] sm:$0xff] %v582
        %v615 = vld [vmem:[%s486 + $0x2] sm:$0xff]
        %v616 = vld [vmem:[%s486 + $0xa] sm:$0xff]
        %v617 = vld [vmem:[%s486 + $0x1a] sm:$0xff]
        %v618 = vld [vmem:[%s486 + $0x22] sm:$0xff]
        %v619 = vld [vmem:[%s486 + $0x32] sm:$0xff]
        %v620 = vld [vmem:[%s486 + $0x3a] sm:$0xff]
        %v621 = vld [vmem:[%s486 + $0x4a] sm:$0xff]
        %v622 = vld [vmem:[%s486 + $0x52] sm:$0xff]
        %v623 = vld [vmem:[%s486 + $0x62] sm:$0xff]
        %v624 = vld [vmem:[%s486 + $0x6a] sm:$0xff]
        %v625 = vld [vmem:[%s486 + $0x7a] sm:$0xff]
        %v626 = vld [vmem:[%s486 + $0x82] sm:$0xff]
        %v627 = vld [vmem:[%s486 + $0x92] sm:$0xff]
        %v628 = vld [vmem:[%s486 + $0x9a] sm:$0xff]
        %v629 = vld [vmem:[%s486 + $0xaa] sm:$0xff]
        %v630 = vld [vmem:[%s486 + $0xb2] sm:$0xff]
        %v631 = vld [vmem:[%s486 + $0xc2] sm:$0xff]
        %v632 = vld [vmem:[%s486 + $0xca] sm:$0xff]
        %v633 = vld [vmem:[%s486 + $0xda] sm:$0xff]
        %v634 = vld [vmem:[%s486 + $0xe2] sm:$0xff]
        %v635 = vld [vmem:[%s486 + $0xf2] sm:$0xff]
        %v636 = vld [vmem:[%s486 + $0xfa] sm:$0xff]
        %v637 = vld [vmem:[%s486 + $0x10a] sm:$0xff]
        %v638 = vld [vmem:[%s486 + $0x112] sm:$0xff]
        %v639 = vld [vmem:[%s486 + $0x122] sm:$0xff]
        %v640 = vld [vmem:[%s486 + $0x12a] sm:$0xff]
        %v641 = vld [vmem:[%s486 + $0x13a] sm:$0xff]
        %v642 = vld [vmem:[%s486 + $0x142] sm:$0xff]
        %v643 = vld [vmem:[%s486 + $0x152] sm:$0xff]
        %v644 = vld [vmem:[%s486 + $0x15a] sm:$0xff]
        %v645 = vld [vmem:[%s486 + $0x16a] sm:$0xff]
        %v646 = vld [vmem:[%s486 + $0x172] sm:$0xff]
        %647 = vst [vmem:[#allocation2 + $0x28] sm:$0xff] %v615
        %648 = vst [vmem:[#allocation2 + $0x70] sm:$0xff] %v616
        %649 = vst [vmem:[#allocation2 + $0xb8] sm:$0xff] %v617
        %650 = vst [vmem:[#allocation2 + $0x100] sm:$0xff] %v618
        %651 = vst [vmem:[#allocation2 + $0x148] sm:$0xff] %v619
        %652 = vst [vmem:[#allocation2 + $0x190] sm:$0xff] %v620
        %653 = vst [vmem:[#allocation2 + $0x1d8] sm:$0xff] %v621
        %654 = vst [vmem:[#allocation2 + $0x220] sm:$0xff] %v622
        %655 = vst [vmem:[#allocation2 + $0x268] sm:$0xff] %v623
        %656 = vst [vmem:[#allocation2 + $0x2b0] sm:$0xff] %v624
        %657 = vst [vmem:[#allocation2 + $0x2f8] sm:$0xff] %v625
        %658 = vst [vmem:[#allocation2 + $0x340] sm:$0xff] %v626
        %659 = vst [vmem:[#allocation2 + $0x388] sm:$0xff] %v627
        %660 = vst [vmem:[#allocation2 + $0x3d0] sm:$0xff] %v628
        %661 = vst [vmem:[#allocation2 + $0x418] sm:$0xff] %v629
        %662 = vst [vmem:[#allocation2 + $0x460] sm:$0xff] %v630
        %663 = vst [vmem:[#allocation2 + $0x4a8] sm:$0xff] %v631
        %664 = vst [vmem:[#allocation2 + $0x4f0] sm:$0xff] %v632
        %665 = vst [vmem:[#allocation2 + $0x538] sm:$0xff] %v633
        %666 = vst [vmem:[#allocation2 + $0x580] sm:$0xff] %v634
        %667 = vst [vmem:[#allocation2 + $0x5c8] sm:$0xff] %v635
        %668 = vst [vmem:[#allocation2 + $0x610] sm:$0xff] %v636
        %669 = vst [vmem:[#allocation2 + $0x658] sm:$0xff] %v637
        %670 = vst [vmem:[#allocation2 + $0x6a0] sm:$0xff] %v638
        %671 = vst [vmem:[#allocation2 + $0x6e8] sm:$0xff] %v639
        %672 = vst [vmem:[#allocation2 + $0x730] sm:$0xff] %v640
        %673 = vst [vmem:[#allocation2 + $0x778] sm:$0xff] %v641
        %674 = vst [vmem:[#allocation2 + $0x7c0] sm:$0xff] %v642
        %675 = vst [vmem:[#allocation2 + $0x808] sm:$0xff] %v643
        %676 = vst [vmem:[#allocation2 + $0x850] sm:$0xff] %v644
        %677 = vst [vmem:[#allocation2 + $0x898] sm:$0xff] %v645
        %678 = vst [vmem:[#allocation2 + $0x8e0] sm:$0xff] %v646
        %s679 = scalar_lea.vmem %s293, 48
        %v680 = vld [vmem:[%s679] sm:$0xff]
        %v681 = vld [vmem:[%s679 + $0x8] sm:$0xff]
        %v682 = vld [vmem:[%s679 + $0x18] sm:$0xff]
        %v683 = vld [vmem:[%s679 + $0x20] sm:$0xff]
        %v684 = vld [vmem:[%s679 + $0x30] sm:$0xff]
        %v685 = vld [vmem:[%s679 + $0x38] sm:$0xff]
        %v686 = vld [vmem:[%s679 + $0x48] sm:$0xff]
        %v687 = vld [vmem:[%s679 + $0x50] sm:$0xff]
        %v688 = vld [vmem:[%s679 + $0x60] sm:$0xff]
        %v689 = vld [vmem:[%s679 + $0x68] sm:$0xff]
        %v690 = vld [vmem:[%s679 + $0x78] sm:$0xff]
        %v691 = vld [vmem:[%s679 + $0x80] sm:$0xff]
        %v692 = vld [vmem:[%s679 + $0x90] sm:$0xff]
        %v693 = vld [vmem:[%s679 + $0x98] sm:$0xff]
        %v694 = vld [vmem:[%s679 + $0xa8] sm:$0xff]
        %v695 = vld [vmem:[%s679 + $0xb0] sm:$0xff]
        %v696 = vld [vmem:[%s679 + $0xc0] sm:$0xff]
        %v697 = vld [vmem:[%s679 + $0xc8] sm:$0xff]
        %v698 = vld [vmem:[%s679 + $0xd8] sm:$0xff]
        %v699 = vld [vmem:[%s679 + $0xe0] sm:$0xff]
        %v700 = vld [vmem:[%s679 + $0xf0] sm:$0xff]
        %v701 = vld [vmem:[%s679 + $0xf8] sm:$0xff]
        %v702 = vld [vmem:[%s679 + $0x108] sm:$0xff]
        %v703 = vld [vmem:[%s679 + $0x110] sm:$0xff]
        %v704 = vld [vmem:[%s679 + $0x120] sm:$0xff]
        %v705 = vld [vmem:[%s679 + $0x128] sm:$0xff]
        %v706 = vld [vmem:[%s679 + $0x138] sm:$0xff]
        %v707 = vld [vmem:[%s679 + $0x140] sm:$0xff]
        %v708 = vld [vmem:[%s679 + $0x150] sm:$0xff]
        %v709 = vld [vmem:[%s679 + $0x158] sm:$0xff]
        %v710 = vld [vmem:[%s679 + $0x168] sm:$0xff]
        %v711 = vld [vmem:[%s679 + $0x170] sm:$0xff]
        %712 = vst [vmem:[#allocation2 + $0x30] sm:$0xff] %v680
        %713 = vst [vmem:[#allocation2 + $0x78] sm:$0xff] %v681
        %714 = vst [vmem:[#allocation2 + $0xc0] sm:$0xff] %v682
        %715 = vst [vmem:[#allocation2 + $0x108] sm:$0xff] %v683
        %716 = vst [vmem:[#allocation2 + $0x150] sm:$0xff] %v684
        %717 = vst [vmem:[#allocation2 + $0x198] sm:$0xff] %v685
        %718 = vst [vmem:[#allocation2 + $0x1e0] sm:$0xff] %v686
        %719 = vst [vmem:[#allocation2 + $0x228] sm:$0xff] %v687
        %720 = vst [vmem:[#allocation2 + $0x270] sm:$0xff] %v688
        %721 = vst [vmem:[#allocation2 + $0x2b8] sm:$0xff] %v689
        %722 = vst [vmem:[#allocation2 + $0x300] sm:$0xff] %v690
        %723 = vst [vmem:[#allocation2 + $0x348] sm:$0xff] %v691
        %724 = vst [vmem:[#allocation2 + $0x390] sm:$0xff] %v692
        %725 = vst [vmem:[#allocation2 + $0x3d8] sm:$0xff] %v693
        %726 = vst [vmem:[#allocation2 + $0x420] sm:$0xff] %v694
        %727 = vst [vmem:[#allocation2 + $0x468] sm:$0xff] %v695
        %728 = vst [vmem:[#allocation2 + $0x4b0] sm:$0xff] %v696
        %729 = vst [vmem:[#allocation2 + $0x4f8] sm:$0xff] %v697
        %730 = vst [vmem:[#allocation2 + $0x540] sm:$0xff] %v698
        %731 = vst [vmem:[#allocation2 + $0x588] sm:$0xff] %v699
        %732 = vst [vmem:[#allocation2 + $0x5d0] sm:$0xff] %v700
        %733 = vst [vmem:[#allocation2 + $0x618] sm:$0xff] %v701
        %734 = vst [vmem:[#allocation2 + $0x660] sm:$0xff] %v702
        %735 = vst [vmem:[#allocation2 + $0x6a8] sm:$0xff] %v703
        %736 = vst [vmem:[#allocation2 + $0x6f0] sm:$0xff] %v704
        %737 = vst [vmem:[#allocation2 + $0x738] sm:$0xff] %v705
        %738 = vst [vmem:[#allocation2 + $0x780] sm:$0xff] %v706
        %739 = vst [vmem:[#allocation2 + $0x7c8] sm:$0xff] %v707
        %740 = vst [vmem:[#allocation2 + $0x810] sm:$0xff] %v708
        %741 = vst [vmem:[#allocation2 + $0x858] sm:$0xff] %v709
        %742 = vst [vmem:[#allocation2 + $0x8a0] sm:$0xff] %v710
        %743 = vst [vmem:[#allocation2 + $0x8e8] sm:$0xff] %v711
        %v744 = vld [vmem:[%s679 + $0x1] sm:$0xff]
        %v745 = vld [vmem:[%s679 + $0x9] sm:$0xff]
        %v746 = vld [vmem:[%s679 + $0x19] sm:$0xff]
        %v747 = vld [vmem:[%s679 + $0x21] sm:$0xff]
        %v748 = vld [vmem:[%s679 + $0x31] sm:$0xff]
        %v749 = vld [vmem:[%s679 + $0x39] sm:$0xff]
        %v750 = vld [vmem:[%s679 + $0x49] sm:$0xff]
        %v751 = vld [vmem:[%s679 + $0x51] sm:$0xff]
        %v752 = vld [vmem:[%s679 + $0x61] sm:$0xff]
        %v753 = vld [vmem:[%s679 + $0x69] sm:$0xff]
        %v754 = vld [vmem:[%s679 + $0x79] sm:$0xff]
        %v755 = vld [vmem:[%s679 + $0x81] sm:$0xff]
        %v756 = vld [vmem:[%s679 + $0x91] sm:$0xff]
        %v757 = vld [vmem:[%s679 + $0x99] sm:$0xff]
        %v758 = vld [vmem:[%s679 + $0xa9] sm:$0xff]
        %v759 = vld [vmem:[%s679 + $0xb1] sm:$0xff]
        %v760 = vld [vmem:[%s679 + $0xc1] sm:$0xff]
        %v761 = vld [vmem:[%s679 + $0xc9] sm:$0xff]
        %v762 = vld [vmem:[%s679 + $0xd9] sm:$0xff]
        %v763 = vld [vmem:[%s679 + $0xe1] sm:$0xff]
        %v764 = vld [vmem:[%s679 + $0xf1] sm:$0xff]
        %v765 = vld [vmem:[%s679 + $0xf9] sm:$0xff]
        %v766 = vld [vmem:[%s679 + $0x109] sm:$0xff]
        %v767 = vld [vmem:[%s679 + $0x111] sm:$0xff]
        %v768 = vld [vmem:[%s679 + $0x121] sm:$0xff]
        %v769 = vld [vmem:[%s679 + $0x129] sm:$0xff]
        %v770 = vld [vmem:[%s679 + $0x139] sm:$0xff]
        %v771 = vld [vmem:[%s679 + $0x141] sm:$0xff]
        %v772 = vld [vmem:[%s679 + $0x151] sm:$0xff]
        %v773 = vld [vmem:[%s679 + $0x159] sm:$0xff]
        %v774 = vld [vmem:[%s679 + $0x169] sm:$0xff]
        %v775 = vld [vmem:[%s679 + $0x171] sm:$0xff]
        %776 = vst [vmem:[#allocation2 + $0x38] sm:$0xff] %v744
        %777 = vst [vmem:[#allocation2 + $0x80] sm:$0xff] %v745
        %778 = vst [vmem:[#allocation2 + $0xc8] sm:$0xff] %v746
        %779 = vst [vmem:[#allocation2 + $0x110] sm:$0xff] %v747
        %780 = vst [vmem:[#allocation2 + $0x158] sm:$0xff] %v748
        %781 = vst [vmem:[#allocation2 + $0x1a0] sm:$0xff] %v749
        %782 = vst [vmem:[#allocation2 + $0x1e8] sm:$0xff] %v750
        %783 = vst [vmem:[#allocation2 + $0x230] sm:$0xff] %v751
        %784 = vst [vmem:[#allocation2 + $0x278] sm:$0xff] %v752
        %785 = vst [vmem:[#allocation2 + $0x2c0] sm:$0xff] %v753
        %786 = vst [vmem:[#allocation2 + $0x308] sm:$0xff] %v754
        %787 = vst [vmem:[#allocation2 + $0x350] sm:$0xff] %v755
        %788 = vst [vmem:[#allocation2 + $0x398] sm:$0xff] %v756
        %789 = vst [vmem:[#allocation2 + $0x3e0] sm:$0xff] %v757
        %790 = vst [vmem:[#allocation2 + $0x428] sm:$0xff] %v758
        %791 = vst [vmem:[#allocation2 + $0x470] sm:$0xff] %v759
        %792 = vst [vmem:[#allocation2 + $0x4b8] sm:$0xff] %v760
        %793 = vst [vmem:[#allocation2 + $0x500] sm:$0xff] %v761
        %794 = vst [vmem:[#allocation2 + $0x548] sm:$0xff] %v762
        %795 = vst [vmem:[#allocation2 + $0x590] sm:$0xff] %v763
        %796 = vst [vmem:[#allocation2 + $0x5d8] sm:$0xff] %v764
        %797 = vst [vmem:[#allocation2 + $0x620] sm:$0xff] %v765
        %798 = vst [vmem:[#allocation2 + $0x668] sm:$0xff] %v766
        %799 = vst [vmem:[#allocation2 + $0x6b0] sm:$0xff] %v767
        %800 = vst [vmem:[#allocation2 + $0x6f8] sm:$0xff] %v768
        %801 = vst [vmem:[#allocation2 + $0x740] sm:$0xff] %v769
        %802 = vst [vmem:[#allocation2 + $0x788] sm:$0xff] %v770
        %803 = vst [vmem:[#allocation2 + $0x7d0] sm:$0xff] %v771
        %804 = vst [vmem:[#allocation2 + $0x818] sm:$0xff] %v772
        %805 = vst [vmem:[#allocation2 + $0x860] sm:$0xff] %v773
        %806 = vst [vmem:[#allocation2 + $0x8a8] sm:$0xff] %v774
        %807 = vst [vmem:[#allocation2 + $0x8f0] sm:$0xff] %v775
        %v808 = vld [vmem:[%s679 + $0x2] sm:$0xff]
        %v809 = vld [vmem:[%s679 + $0xa] sm:$0xff]
        %v810 = vld [vmem:[%s679 + $0x1a] sm:$0xff]
        %v811 = vld [vmem:[%s679 + $0x22] sm:$0xff]
        %v812 = vld [vmem:[%s679 + $0x32] sm:$0xff]
        %v813 = vld [vmem:[%s679 + $0x3a] sm:$0xff]
        %v814 = vld [vmem:[%s679 + $0x4a] sm:$0xff]
        %v815 = vld [vmem:[%s679 + $0x52] sm:$0xff]
        %v816 = vld [vmem:[%s679 + $0x62] sm:$0xff]
        %v817 = vld [vmem:[%s679 + $0x6a] sm:$0xff]
        %v818 = vld [vmem:[%s679 + $0x7a] sm:$0xff]
        %v819 = vld [vmem:[%s679 + $0x82] sm:$0xff]
        %v820 = vld [vmem:[%s679 + $0x92] sm:$0xff]
        %v821 = vld [vmem:[%s679 + $0x9a] sm:$0xff]
        %v822 = vld [vmem:[%s679 + $0xaa] sm:$0xff]
        %v823 = vld [vmem:[%s679 + $0xb2] sm:$0xff]
        %v824 = vld [vmem:[%s679 + $0xc2] sm:$0xff]
        %v825 = vld [vmem:[%s679 + $0xca] sm:$0xff]
        %v826 = vld [vmem:[%s679 + $0xda] sm:$0xff]
        %v827 = vld [vmem:[%s679 + $0xe2] sm:$0xff]
        %v828 = vld [vmem:[%s679 + $0xf2] sm:$0xff]
        %v829 = vld [vmem:[%s679 + $0xfa] sm:$0xff]
        %v830 = vld [vmem:[%s679 + $0x10a] sm:$0xff]
        %v831 = vld [vmem:[%s679 + $0x112] sm:$0xff]
        %v832 = vld [vmem:[%s679 + $0x122] sm:$0xff]
        %v833 = vld [vmem:[%s679 + $0x12a] sm:$0xff]
        %v834 = vld [vmem:[%s679 + $0x13a] sm:$0xff]
        %v835 = vld [vmem:[%s679 + $0x142] sm:$0xff]
        %v836 = vld [vmem:[%s679 + $0x152] sm:$0xff]
        %v837 = vld [vmem:[%s679 + $0x15a] sm:$0xff]
        %v838 = vld [vmem:[%s679 + $0x16a] sm:$0xff]
        %v839 = vld [vmem:[%s679 + $0x172] sm:$0xff]
        %840 = vst [vmem:[#allocation2 + $0x40] sm:$0xff] %v808
        %841 = vst [vmem:[#allocation2 + $0x88] sm:$0xff] %v809
        %842 = vst [vmem:[#allocation2 + $0xd0] sm:$0xff] %v810
        %843 = vst [vmem:[#allocation2 + $0x118] sm:$0xff] %v811
        %844 = vst [vmem:[#allocation2 + $0x160] sm:$0xff] %v812
        %845 = vst [vmem:[#allocation2 + $0x1a8] sm:$0xff] %v813
        %846 = vst [vmem:[#allocation2 + $0x1f0] sm:$0xff] %v814
        %847 = vst [vmem:[#allocation2 + $0x238] sm:$0xff] %v815
        %848 = vst [vmem:[#allocation2 + $0x280] sm:$0xff] %v816
        %849 = vst [vmem:[#allocation2 + $0x2c8] sm:$0xff] %v817
        %850 = vst [vmem:[#allocation2 + $0x310] sm:$0xff] %v818
        %851 = vst [vmem:[#allocation2 + $0x358] sm:$0xff] %v819
        %852 = vst [vmem:[#allocation2 + $0x3a0] sm:$0xff] %v820
        %853 = vst [vmem:[#allocation2 + $0x3e8] sm:$0xff] %v821
        %854 = vst [vmem:[#allocation2 + $0x430] sm:$0xff] %v822
        %855 = vst [vmem:[#allocation2 + $0x478] sm:$0xff] %v823
        %856 = vst [vmem:[#allocation2 + $0x4c0] sm:$0xff] %v824
        %857 = vst [vmem:[#allocation2 + $0x508] sm:$0xff] %v825
        %858 = vst [vmem:[#allocation2 + $0x550] sm:$0xff] %v826
        %859 = vst [vmem:[#allocation2 + $0x598] sm:$0xff] %v827
        %860 = vst [vmem:[#allocation2 + $0x5e0] sm:$0xff] %v828
        %861 = vst [vmem:[#allocation2 + $0x628] sm:$0xff] %v829
        %862 = vst [vmem:[#allocation2 + $0x670] sm:$0xff] %v830
        %863 = vst [vmem:[#allocation2 + $0x6b8] sm:$0xff] %v831
        %864 = vst [vmem:[#allocation2 + $0x700] sm:$0xff] %v832
        %865 = vst [vmem:[#allocation2 + $0x748] sm:$0xff] %v833
        %866 = vst [vmem:[#allocation2 + $0x790] sm:$0xff] %v834
        %867 = vst [vmem:[#allocation2 + $0x7d8] sm:$0xff] %v835
        %868 = vst [vmem:[#allocation2 + $0x820] sm:$0xff] %v836
        %869 = vst [vmem:[#allocation2 + $0x868] sm:$0xff] %v837
        %870 = vst [vmem:[#allocation2 + $0x8b0] sm:$0xff] %v838
        %871 = vst [vmem:[#allocation2 + $0x8f8] sm:$0xff] %v839
        %v872 = vld [vmem:[#allocation2] sm:$0xff]
        %v873 = vld [vmem:[#allocation2 + $0x8] sm:$0xff]
        %v874 = vld [vmem:[#allocation2 + $0x10] sm:$0xff]
        %v875 = vld [vmem:[#allocation2 + $0x18] sm:$0xff]
        %v876 = vld [vmem:[#allocation2 + $0x20] sm:$0xff]
        %v877 = vld [vmem:[#allocation2 + $0x28] sm:$0xff]
        %v878 = vld [vmem:[#allocation2 + $0x30] sm:$0xff]
        %v879 = vld [vmem:[#allocation2 + $0x38] sm:$0xff]
        %v880 = vld [vmem:[#allocation2 + $0x40] sm:$0xff]
        %v881 = vld [vmem:[#allocation2 + $0x48] sm:$0xff]
        %v882 = vld [vmem:[#allocation2 + $0x50] sm:$0xff]
        %v883 = vld [vmem:[#allocation2 + $0x58] sm:$0xff]
        %v884 = vld [vmem:[#allocation2 + $0x60] sm:$0xff]
        %v885 = vld [vmem:[#allocation2 + $0x68] sm:$0xff]
        %v886 = vld [vmem:[#allocation2 + $0x70] sm:$0xff]
        %v887 = vld [vmem:[#allocation2 + $0x78] sm:$0xff]
        %v888 = vld [vmem:[#allocation2 + $0x80] sm:$0xff]
        %v889 = vld [vmem:[#allocation2 + $0x88] sm:$0xff]
        %v890 = vld [vmem:[#allocation2 + $0x90] sm:$0xff]
        %v891 = vld [vmem:[#allocation2 + $0x98] sm:$0xff]
        %v892 = vld [vmem:[#allocation2 + $0xa0] sm:$0xff]
        %v893 = vld [vmem:[#allocation2 + $0xa8] sm:$0xff]
        %v894 = vld [vmem:[#allocation2 + $0xb0] sm:$0xff]
        %v895 = vld [vmem:[#allocation2 + $0xb8] sm:$0xff]
        %v896 = vld [vmem:[#allocation2 + $0xc0] sm:$0xff]
        %v897 = vld [vmem:[#allocation2 + $0xc8] sm:$0xff]
        %v898 = vld [vmem:[#allocation2 + $0xd0] sm:$0xff]
        %v899 = vld [vmem:[#allocation2 + $0xd8] sm:$0xff]
        %v900 = vld [vmem:[#allocation2 + $0xe0] sm:$0xff]
        %v901 = vld [vmem:[#allocation2 + $0xe8] sm:$0xff]
        %v902 = vld [vmem:[#allocation2 + $0xf0] sm:$0xff]
        %v903 = vld [vmem:[#allocation2 + $0xf8] sm:$0xff]
        %v904 = vld [vmem:[#allocation2 + $0x100] sm:$0xff]
        %v905 = vld [vmem:[#allocation2 + $0x108] sm:$0xff]
        %v906 = vld [vmem:[#allocation2 + $0x110] sm:$0xff]
        %v907 = vld [vmem:[#allocation2 + $0x118] sm:$0xff]
        %v908 = vld [vmem:[#allocation2 + $0x120] sm:$0xff]
        %v909 = vld [vmem:[#allocation2 + $0x128] sm:$0xff]
        %v910 = vld [vmem:[#allocation2 + $0x130] sm:$0xff]
        %v911 = vld [vmem:[#allocation2 + $0x138] sm:$0xff]
        %v912 = vld [vmem:[#allocation2 + $0x140] sm:$0xff]
        %v913 = vld [vmem:[#allocation2 + $0x148] sm:$0xff]
        %v914 = vld [vmem:[#allocation2 + $0x150] sm:$0xff]
        %v915 = vld [vmem:[#allocation2 + $0x158] sm:$0xff]
        %v916 = vld [vmem:[#allocation2 + $0x160] sm:$0xff]
        %v917 = vld [vmem:[#allocation2 + $0x168] sm:$0xff]
        %v918 = vld [vmem:[#allocation2 + $0x170] sm:$0xff]
        %v919 = vld [vmem:[#allocation2 + $0x178] sm:$0xff]
        %v920 = vld [vmem:[#allocation2 + $0x180] sm:$0xff]
        %v921 = vld [vmem:[#allocation2 + $0x188] sm:$0xff]
        %v922 = vld [vmem:[#allocation2 + $0x190] sm:$0xff]
        %v923 = vld [vmem:[#allocation2 + $0x198] sm:$0xff]
        %v924 = vld [vmem:[#allocation2 + $0x1a0] sm:$0xff]
        %v925 = vld [vmem:[#allocation2 + $0x1a8] sm:$0xff]
        %v926 = vld [vmem:[#allocation2 + $0x1b0] sm:$0xff]
        %v927 = vld [vmem:[#allocation2 + $0x1b8] sm:$0xff]
        %v928 = vld [vmem:[#allocation2 + $0x1c0] sm:$0xff]
        %v929 = vld [vmem:[#allocation2 + $0x1c8] sm:$0xff]
        %v930 = vld [vmem:[#allocation2 + $0x1d0] sm:$0xff]
        %v931 = vld [vmem:[#allocation2 + $0x1d8] sm:$0xff]
        %v932 = vld [vmem:[#allocation2 + $0x1e0] sm:$0xff]
        %v933 = vld [vmem:[#allocation2 + $0x1e8] sm:$0xff]
        %v934 = vld [vmem:[#allocation2 + $0x1f0] sm:$0xff]
        %v935 = vld [vmem:[#allocation2 + $0x1f8] sm:$0xff]
        %v936 = vld [vmem:[#allocation2 + $0x200] sm:$0xff]
        %v937 = vld [vmem:[#allocation2 + $0x208] sm:$0xff]
        %v938 = vld [vmem:[#allocation2 + $0x210] sm:$0xff]
        %v939 = vld [vmem:[#allocation2 + $0x218] sm:$0xff]
        %v940 = vld [vmem:[#allocation2 + $0x220] sm:$0xff]
        %v941 = vld [vmem:[#allocation2 + $0x228] sm:$0xff]
        %v942 = vld [vmem:[#allocation2 + $0x230] sm:$0xff]
        %v943 = vld [vmem:[#allocation2 + $0x238] sm:$0xff]
        %v944 = vld [vmem:[#allocation2 + $0x240] sm:$0xff]
        %v945 = vld [vmem:[#allocation2 + $0x248] sm:$0xff]
        %v946 = vld [vmem:[#allocation2 + $0x250] sm:$0xff]
        %v947 = vld [vmem:[#allocation2 + $0x258] sm:$0xff]
        %v948 = vld [vmem:[#allocation2 + $0x260] sm:$0xff]
        %v949 = vld [vmem:[#allocation2 + $0x268] sm:$0xff]
        %v950 = vld [vmem:[#allocation2 + $0x270] sm:$0xff]
        %v951 = vld [vmem:[#allocation2 + $0x278] sm:$0xff]
        %v952 = vld [vmem:[#allocation2 + $0x280] sm:$0xff]
        %v953 = vld [vmem:[#allocation2 + $0x288] sm:$0xff]
        %v954 = vld [vmem:[#allocation2 + $0x290] sm:$0xff]
        %v955 = vld [vmem:[#allocation2 + $0x298] sm:$0xff]
        %v956 = vld [vmem:[#allocation2 + $0x2a0] sm:$0xff]
        %v957 = vld [vmem:[#allocation2 + $0x2a8] sm:$0xff]
        %v958 = vld [vmem:[#allocation2 + $0x2b0] sm:$0xff]
        %v959 = vld [vmem:[#allocation2 + $0x2b8] sm:$0xff]
        %v960 = vld [vmem:[#allocation2 + $0x2c0] sm:$0xff]
        %v961 = vld [vmem:[#allocation2 + $0x2c8] sm:$0xff]
        %v962 = vld [vmem:[#allocation2 + $0x2d0] sm:$0xff]
        %v963 = vld [vmem:[#allocation2 + $0x2d8] sm:$0xff]
        %v964 = vld [vmem:[#allocation2 + $0x2e0] sm:$0xff]
        %v965 = vld [vmem:[#allocation2 + $0x2e8] sm:$0xff]
        %v966 = vld [vmem:[#allocation2 + $0x2f0] sm:$0xff]
        %v967 = vld [vmem:[#allocation2 + $0x2f8] sm:$0xff]
        %v968 = vld [vmem:[#allocation2 + $0x300] sm:$0xff]
        %v969 = vld [vmem:[#allocation2 + $0x308] sm:$0xff]
        %v970 = vld [vmem:[#allocation2 + $0x310] sm:$0xff]
        %v971 = vld [vmem:[#allocation2 + $0x318] sm:$0xff]
        %v972 = vld [vmem:[#allocation2 + $0x320] sm:$0xff]
        %v973 = vld [vmem:[#allocation2 + $0x328] sm:$0xff]
        %v974 = vld [vmem:[#allocation2 + $0x330] sm:$0xff]
        %v975 = vld [vmem:[#allocation2 + $0x338] sm:$0xff]
        %v976 = vld [vmem:[#allocation2 + $0x340] sm:$0xff]
        %v977 = vld [vmem:[#allocation2 + $0x348] sm:$0xff]
        %v978 = vld [vmem:[#allocation2 + $0x350] sm:$0xff]
        %v979 = vld [vmem:[#allocation2 + $0x358] sm:$0xff]
        %v980 = vld [vmem:[#allocation2 + $0x360] sm:$0xff]
        %v981 = vld [vmem:[#allocation2 + $0x368] sm:$0xff]
        %v982 = vld [vmem:[#allocation2 + $0x370] sm:$0xff]
        %v983 = vld [vmem:[#allocation2 + $0x378] sm:$0xff]
        %v984 = vld [vmem:[#allocation2 + $0x380] sm:$0xff]
        %v985 = vld [vmem:[#allocation2 + $0x388] sm:$0xff]
        %v986 = vld [vmem:[#allocation2 + $0x390] sm:$0xff]
        %v987 = vld [vmem:[#allocation2 + $0x398] sm:$0xff]
        %v988 = vld [vmem:[#allocation2 + $0x3a0] sm:$0xff]
        %v989 = vld [vmem:[#allocation2 + $0x3a8] sm:$0xff]
        %v990 = vld [vmem:[#allocation2 + $0x3b0] sm:$0xff]
        %v991 = vld [vmem:[#allocation2 + $0x3b8] sm:$0xff]
        %v992 = vld [vmem:[#allocation2 + $0x3c0] sm:$0xff]
        %v993 = vld [vmem:[#allocation2 + $0x3c8] sm:$0xff]
        %v994 = vld [vmem:[#allocation2 + $0x3d0] sm:$0xff]
        %v995 = vld [vmem:[#allocation2 + $0x3d8] sm:$0xff]
        %v996 = vld [vmem:[#allocation2 + $0x3e0] sm:$0xff]
        %v997 = vld [vmem:[#allocation2 + $0x3e8] sm:$0xff]
        %v998 = vld [vmem:[#allocation2 + $0x3f0] sm:$0xff]
        %v999 = vld [vmem:[#allocation2 + $0x3f8] sm:$0xff]
        %v1000 = vld [vmem:[#allocation2 + $0x400] sm:$0xff]
        %v1001 = vld [vmem:[#allocation2 + $0x408] sm:$0xff]
        %v1002 = vld [vmem:[#allocation2 + $0x410] sm:$0xff]
        %v1003 = vld [vmem:[#allocation2 + $0x418] sm:$0xff]
        %v1004 = vld [vmem:[#allocation2 + $0x420] sm:$0xff]
        %v1005 = vld [vmem:[#allocation2 + $0x428] sm:$0xff]
        %v1006 = vld [vmem:[#allocation2 + $0x430] sm:$0xff]
        %v1007 = vld [vmem:[#allocation2 + $0x438] sm:$0xff]
        %v1008 = vld [vmem:[#allocation2 + $0x440] sm:$0xff]
        %v1009 = vld [vmem:[#allocation2 + $0x448] sm:$0xff]
        %v1010 = vld [vmem:[#allocation2 + $0x450] sm:$0xff]
        %v1011 = vld [vmem:[#allocation2 + $0x458] sm:$0xff]
        %v1012 = vld [vmem:[#allocation2 + $0x460] sm:$0xff]
        %v1013 = vld [vmem:[#allocation2 + $0x468] sm:$0xff]
        %v1014 = vld [vmem:[#allocation2 + $0x470] sm:$0xff]
        %v1015 = vld [vmem:[#allocation2 + $0x478] sm:$0xff]
        %v1016 = vld [vmem:[#allocation2 + $0x480] sm:$0xff]
        %v1017 = vld [vmem:[#allocation2 + $0x488] sm:$0xff]
        %v1018 = vld [vmem:[#allocation2 + $0x490] sm:$0xff]
        %v1019 = vld [vmem:[#allocation2 + $0x498] sm:$0xff]
        %v1020 = vld [vmem:[#allocation2 + $0x4a0] sm:$0xff]
        %v1021 = vld [vmem:[#allocation2 + $0x4a8] sm:$0xff]
        %v1022 = vld [vmem:[#allocation2 + $0x4b0] sm:$0xff]
        %v1023 = vld [vmem:[#allocation2 + $0x4b8] sm:$0xff]
        %v1024 = vld [vmem:[#allocation2 + $0x4c0] sm:$0xff]
        %v1025 = vld [vmem:[#allocation2 + $0x4c8] sm:$0xff]
        %v1026 = vld [vmem:[#allocation2 + $0x4d0] sm:$0xff]
        %v1027 = vld [vmem:[#allocation2 + $0x4d8] sm:$0xff]
        %v1028 = vld [vmem:[#allocation2 + $0x4e0] sm:$0xff]
        %v1029 = vld [vmem:[#allocation2 + $0x4e8] sm:$0xff]
        %v1030 = vld [vmem:[#allocation2 + $0x4f0] sm:$0xff]
        %v1031 = vld [vmem:[#allocation2 + $0x4f8] sm:$0xff]
        %v1032 = vld [vmem:[#allocation2 + $0x500] sm:$0xff]
        %v1033 = vld [vmem:[#allocation2 + $0x508] sm:$0xff]
        %v1034 = vld [vmem:[#allocation2 + $0x510] sm:$0xff]
        %v1035 = vld [vmem:[#allocation2 + $0x518] sm:$0xff]
        %v1036 = vld [vmem:[#allocation2 + $0x520] sm:$0xff]
        %v1037 = vld [vmem:[#allocation2 + $0x528] sm:$0xff]
        %v1038 = vld [vmem:[#allocation2 + $0x530] sm:$0xff]
        %v1039 = vld [vmem:[#allocation2 + $0x538] sm:$0xff]
        %v1040 = vld [vmem:[#allocation2 + $0x540] sm:$0xff]
        %v1041 = vld [vmem:[#allocation2 + $0x548] sm:$0xff]
        %v1042 = vld [vmem:[#allocation2 + $0x550] sm:$0xff]
        %v1043 = vld [vmem:[#allocation2 + $0x558] sm:$0xff]
        %v1044 = vld [vmem:[#allocation2 + $0x560] sm:$0xff]
        %v1045 = vld [vmem:[#allocation2 + $0x568] sm:$0xff]
        %v1046 = vld [vmem:[#allocation2 + $0x570] sm:$0xff]
        %v1047 = vld [vmem:[#allocation2 + $0x578] sm:$0xff]
        %v1048 = vld [vmem:[#allocation2 + $0x580] sm:$0xff]
        %v1049 = vld [vmem:[#allocation2 + $0x588] sm:$0xff]
        %v1050 = vld [vmem:[#allocation2 + $0x590] sm:$0xff]
        %v1051 = vld [vmem:[#allocation2 + $0x598] sm:$0xff]
        %v1052 = vld [vmem:[#allocation2 + $0x5a0] sm:$0xff]
        %v1053 = vld [vmem:[#allocation2 + $0x5a8] sm:$0xff]
        %v1054 = vld [vmem:[#allocation2 + $0x5b0] sm:$0xff]
        %v1055 = vld [vmem:[#allocation2 + $0x5b8] sm:$0xff]
        %v1056 = vld [vmem:[#allocation2 + $0x5c0] sm:$0xff]
        %v1057 = vld [vmem:[#allocation2 + $0x5c8] sm:$0xff]
        %v1058 = vld [vmem:[#allocation2 + $0x5d0] sm:$0xff]
        %v1059 = vld [vmem:[#allocation2 + $0x5d8] sm:$0xff]
        %v1060 = vld [vmem:[#allocation2 + $0x5e0] sm:$0xff]
        %v1061 = vld [vmem:[#allocation2 + $0x5e8] sm:$0xff]
        %v1062 = vld [vmem:[#allocation2 + $0x5f0] sm:$0xff]
        %v1063 = vld [vmem:[#allocation2 + $0x5f8] sm:$0xff]
        %v1064 = vld [vmem:[#allocation2 + $0x600] sm:$0xff]
        %v1065 = vld [vmem:[#allocation2 + $0x608] sm:$0xff]
        %v1066 = vld [vmem:[#allocation2 + $0x610] sm:$0xff]
        %v1067 = vld [vmem:[#allocation2 + $0x618] sm:$0xff]
        %v1068 = vld [vmem:[#allocation2 + $0x620] sm:$0xff]
        %v1069 = vld [vmem:[#allocation2 + $0x628] sm:$0xff]
        %v1070 = vld [vmem:[#allocation2 + $0x630] sm:$0xff]
        %v1071 = vld [vmem:[#allocation2 + $0x638] sm:$0xff]
        %v1072 = vld [vmem:[#allocation2 + $0x640] sm:$0xff]
        %v1073 = vld [vmem:[#allocation2 + $0x648] sm:$0xff]
        %v1074 = vld [vmem:[#allocation2 + $0x650] sm:$0xff]
        %v1075 = vld [vmem:[#allocation2 + $0x658] sm:$0xff]
        %v1076 = vld [vmem:[#allocation2 + $0x660] sm:$0xff]
        %v1077 = vld [vmem:[#allocation2 + $0x668] sm:$0xff]
        %v1078 = vld [vmem:[#allocation2 + $0x670] sm:$0xff]
        %v1079 = vld [vmem:[#allocation2 + $0x678] sm:$0xff]
        %v1080 = vld [vmem:[#allocation2 + $0x680] sm:$0xff]
        %v1081 = vld [vmem:[#allocation2 + $0x688] sm:$0xff]
        %v1082 = vld [vmem:[#allocation2 + $0x690] sm:$0xff]
        %v1083 = vld [vmem:[#allocation2 + $0x698] sm:$0xff]
        %v1084 = vld [vmem:[#allocation2 + $0x6a0] sm:$0xff]
        %v1085 = vld [vmem:[#allocation2 + $0x6a8] sm:$0xff]
        %v1086 = vld [vmem:[#allocation2 + $0x6b0] sm:$0xff]
        %v1087 = vld [vmem:[#allocation2 + $0x6b8] sm:$0xff]
        %v1088 = vld [vmem:[#allocation2 + $0x6c0] sm:$0xff]
        %v1089 = vld [vmem:[#allocation2 + $0x6c8] sm:$0xff]
        %v1090 = vld [vmem:[#allocation2 + $0x6d0] sm:$0xff]
        %v1091 = vld [vmem:[#allocation2 + $0x6d8] sm:$0xff]
        %v1092 = vld [vmem:[#allocation2 + $0x6e0] sm:$0xff]
        %v1093 = vld [vmem:[#allocation2 + $0x6e8] sm:$0xff]
        %v1094 = vld [vmem:[#allocation2 + $0x6f0] sm:$0xff]
        %v1095 = vld [vmem:[#allocation2 + $0x6f8] sm:$0xff]
        %v1096 = vld [vmem:[#allocation2 + $0x700] sm:$0xff]
        %v1097 = vld [vmem:[#allocation2 + $0x708] sm:$0xff]
        %v1098 = vld [vmem:[#allocation2 + $0x710] sm:$0xff]
        %v1099 = vld [vmem:[#allocation2 + $0x718] sm:$0xff]
        %v1100 = vld [vmem:[#allocation2 + $0x720] sm:$0xff]
        %v1101 = vld [vmem:[#allocation2 + $0x728] sm:$0xff]
        %v1102 = vld [vmem:[#allocation2 + $0x730] sm:$0xff]
        %v1103 = vld [vmem:[#allocation2 + $0x738] sm:$0xff]
        %v1104 = vld [vmem:[#allocation2 + $0x740] sm:$0xff]
        %v1105 = vld [vmem:[#allocation2 + $0x748] sm:$0xff]
        %v1106 = vld [vmem:[#allocation2 + $0x750] sm:$0xff]
        %v1107 = vld [vmem:[#allocation2 + $0x758] sm:$0xff]
        %v1108 = vld [vmem:[#allocation2 + $0x760] sm:$0xff]
        %v1109 = vld [vmem:[#allocation2 + $0x768] sm:$0xff]
        %v1110 = vld [vmem:[#allocation2 + $0x770] sm:$0xff]
        %v1111 = vld [vmem:[#allocation2 + $0x778] sm:$0xff]
        %v1112 = vld [vmem:[#allocation2 + $0x780] sm:$0xff]
        %v1113 = vld [vmem:[#allocation2 + $0x788] sm:$0xff]
        %v1114 = vld [vmem:[#allocation2 + $0x790] sm:$0xff]
        %v1115 = vld [vmem:[#allocation2 + $0x798] sm:$0xff]
        %v1116 = vld [vmem:[#allocation2 + $0x7a0] sm:$0xff]
        %v1117 = vld [vmem:[#allocation2 + $0x7a8] sm:$0xff]
        %v1118 = vld [vmem:[#allocation2 + $0x7b0] sm:$0xff]
        %v1119 = vld [vmem:[#allocation2 + $0x7b8] sm:$0xff]
        %v1120 = vld [vmem:[#allocation2 + $0x7c0] sm:$0xff]
        %v1121 = vld [vmem:[#allocation2 + $0x7c8] sm:$0xff]
        %v1122 = vld [vmem:[#allocation2 + $0x7d0] sm:$0xff]
        %v1123 = vld [vmem:[#allocation2 + $0x7d8] sm:$0xff]
        %v1124 = vld [vmem:[#allocation2 + $0x7e0] sm:$0xff]
        %v1125 = vld [vmem:[#allocation2 + $0x7e8] sm:$0xff]
        %v1126 = vld [vmem:[#allocation2 + $0x7f0] sm:$0xff]
        %v1127 = vld [vmem:[#allocation2 + $0x7f8] sm:$0xff]
        %v1128 = vld [vmem:[#allocation2 + $0x800] sm:$0xff]
        %v1129 = vld [vmem:[#allocation2 + $0x808] sm:$0xff]
        %v1130 = vld [vmem:[#allocation2 + $0x810] sm:$0xff]
        %v1131 = vld [vmem:[#allocation2 + $0x818] sm:$0xff]
        %v1132 = vld [vmem:[#allocation2 + $0x820] sm:$0xff]
        %v1133 = vld [vmem:[#allocation2 + $0x828] sm:$0xff]
        %v1134 = vld [vmem:[#allocation2 + $0x830] sm:$0xff]
        %v1135 = vld [vmem:[#allocation2 + $0x838] sm:$0xff]
        %v1136 = vld [vmem:[#allocation2 + $0x840] sm:$0xff]
        %v1137 = vld [vmem:[#allocation2 + $0x848] sm:$0xff]
        %v1138 = vld [vmem:[#allocation2 + $0x850] sm:$0xff]
        %v1139 = vld [vmem:[#allocation2 + $0x858] sm:$0xff]
        %v1140 = vld [vmem:[#allocation2 + $0x860] sm:$0xff]
        %v1141 = vld [vmem:[#allocation2 + $0x868] sm:$0xff]
        %v1142 = vld [vmem:[#allocation2 + $0x870] sm:$0xff]
        %v1143 = vld [vmem:[#allocation2 + $0x878] sm:$0xff]
        %v1144 = vld [vmem:[#allocation2 + $0x880] sm:$0xff]
        %v1145 = vld [vmem:[#allocation2 + $0x888] sm:$0xff]
        %v1146 = vld [vmem:[#allocation2 + $0x890] sm:$0xff]
        %v1147 = vld [vmem:[#allocation2 + $0x898] sm:$0xff]
        %v1148 = vld [vmem:[#allocation2 + $0x8a0] sm:$0xff]
        %v1149 = vld [vmem:[#allocation2 + $0x8a8] sm:$0xff]
        %v1150 = vld [vmem:[#allocation2 + $0x8b0] sm:$0xff]
        %v1151 = vld [vmem:[#allocation2 + $0x8b8] sm:$0xff]
        %v1152 = vld [vmem:[#allocation2 + $0x8c0] sm:$0xff]
        %v1153 = vld [vmem:[#allocation2 + $0x8c8] sm:$0xff]
        %v1154 = vld [vmem:[#allocation2 + $0x8d0] sm:$0xff]
        %v1155 = vld [vmem:[#allocation2 + $0x8d8] sm:$0xff]
        %v1156 = vld [vmem:[#allocation2 + $0x8e0] sm:$0xff]
        %v1157 = vld [vmem:[#allocation2 + $0x8e8] sm:$0xff]
        %v1158 = vld [vmem:[#allocation2 + $0x8f0] sm:$0xff]
        %v1159 = vld [vmem:[#allocation2 + $0x8f8] sm:$0xff]
        %v1160 = vld [vmem:[%s1] sm:$0xff]
        %v1161 = vld [vmem:[%s1 + $0x8] sm:$0xff]
        %v1162 = vld [vmem:[%s1 + $0x10] sm:$0xff]
        %v1163 = vld [vmem:[%s1 + $0x18] sm:$0xff]
        %v1164 = vld [vmem:[%s1 + $0x20] sm:$0xff]
        %v1165 = vld [vmem:[%s1 + $0x28] sm:$0xff]
        %v1166 = vld [vmem:[%s1 + $0x30] sm:$0xff]
        %v1167 = vld [vmem:[%s1 + $0x38] sm:$0xff]
        %v1168 = vld [vmem:[%s1 + $0x40] sm:$0xff]
        %v1169 = vld [vmem:[%s1 + $0x48] sm:$0xff]
        %v1170 = vld [vmem:[%s1 + $0x50] sm:$0xff]
        %v1171 = vld [vmem:[%s1 + $0x58] sm:$0xff]
        %v1172 = vld [vmem:[%s1 + $0x60] sm:$0xff]
        %v1173 = vld [vmem:[%s1 + $0x68] sm:$0xff]
        %v1174 = vld [vmem:[%s1 + $0x70] sm:$0xff]
        %v1175 = vld [vmem:[%s1 + $0x78] sm:$0xff]
        %v1176 = vld [vmem:[%s1 + $0x80] sm:$0xff]
        %v1177 = vld [vmem:[%s1 + $0x88] sm:$0xff]
        %v1178 = vld [vmem:[%s1 + $0x90] sm:$0xff]
        %v1179 = vld [vmem:[%s1 + $0x98] sm:$0xff]
        %v1180 = vld [vmem:[%s1 + $0xa0] sm:$0xff]
        %v1181 = vld [vmem:[%s1 + $0xa8] sm:$0xff]
        %v1182 = vld [vmem:[%s1 + $0xb0] sm:$0xff]
        %v1183 = vld [vmem:[%s1 + $0xb8] sm:$0xff]
        %v1184 = vld [vmem:[%s1 + $0xc0] sm:$0xff]
        %v1185 = vld [vmem:[%s1 + $0xc8] sm:$0xff]
        %v1186 = vld [vmem:[%s1 + $0xd0] sm:$0xff]
        %v1187 = vld [vmem:[%s1 + $0xd8] sm:$0xff]
        %v1188 = vld [vmem:[%s1 + $0xe0] sm:$0xff]
        %v1189 = vld [vmem:[%s1 + $0xe8] sm:$0xff]
        %v1190 = vld [vmem:[%s1 + $0xf0] sm:$0xff]
        %v1191 = vld [vmem:[%s1 + $0xf8] sm:$0xff]
        %v1192 = vld [vmem:[%s1 + $0x100] sm:$0xff]
        %v1193 = vld [vmem:[%s1 + $0x108] sm:$0xff]
        %v1194 = vld [vmem:[%s1 + $0x110] sm:$0xff]
        %v1195 = vld [vmem:[%s1 + $0x118] sm:$0xff]
        %v1196 = vld [vmem:[%s1 + $0x120] sm:$0xff]
        %v1197 = vld [vmem:[%s1 + $0x128] sm:$0xff]
        %v1198 = vld [vmem:[%s1 + $0x130] sm:$0xff]
        %v1199 = vld [vmem:[%s1 + $0x138] sm:$0xff]
        %v1200 = vld [vmem:[%s1 + $0x140] sm:$0xff]
        %v1201 = vld [vmem:[%s1 + $0x148] sm:$0xff]
        %v1202 = vld [vmem:[%s1 + $0x150] sm:$0xff]
        %v1203 = vld [vmem:[%s1 + $0x158] sm:$0xff]
        %v1204 = vld [vmem:[%s1 + $0x160] sm:$0xff]
        %v1205 = vld [vmem:[%s1 + $0x168] sm:$0xff]
        %v1206 = vld [vmem:[%s1 + $0x170] sm:$0xff]
        %v1207 = vld [vmem:[%s1 + $0x178] sm:$0xff]
        %v1208 = vld [vmem:[%s1 + $0x180] sm:$0xff]
        %v1209 = vld [vmem:[%s1 + $0x188] sm:$0xff]
        %v1210 = vld [vmem:[%s1 + $0x190] sm:$0xff]
        %v1211 = vld [vmem:[%s1 + $0x198] sm:$0xff]
        %v1212 = vld [vmem:[%s1 + $0x1a0] sm:$0xff]
        %v1213 = vld [vmem:[%s1 + $0x1a8] sm:$0xff]
        %v1214 = vld [vmem:[%s1 + $0x1b0] sm:$0xff]
        %v1215 = vld [vmem:[%s1 + $0x1b8] sm:$0xff]
        %v1216 = vld [vmem:[%s1 + $0x1c0] sm:$0xff]
        %v1217 = vld [vmem:[%s1 + $0x1c8] sm:$0xff]
        %v1218 = vld [vmem:[%s1 + $0x1d0] sm:$0xff]
        %v1219 = vld [vmem:[%s1 + $0x1d8] sm:$0xff]
        %v1220 = vld [vmem:[%s1 + $0x1e0] sm:$0xff]
        %v1221 = vld [vmem:[%s1 + $0x1e8] sm:$0xff]
        %v1222 = vld [vmem:[%s1 + $0x1f0] sm:$0xff]
        %v1223 = vld [vmem:[%s1 + $0x1f8] sm:$0xff]
        %v1224 = vld [vmem:[%s1 + $0x200] sm:$0xff]
        %v1225 = vld [vmem:[%s1 + $0x208] sm:$0xff]
        %v1226 = vld [vmem:[%s1 + $0x210] sm:$0xff]
        %v1227 = vld [vmem:[%s1 + $0x218] sm:$0xff]
        %v1228 = vld [vmem:[%s1 + $0x220] sm:$0xff]
        %v1229 = vld [vmem:[%s1 + $0x228] sm:$0xff]
        %v1230 = vld [vmem:[%s1 + $0x230] sm:$0xff]
        %v1231 = vld [vmem:[%s1 + $0x238] sm:$0xff]
        %v1232 = vld [vmem:[%s1 + $0x240] sm:$0xff]
        %v1233 = vld [vmem:[%s1 + $0x248] sm:$0xff]
        %v1234 = vld [vmem:[%s1 + $0x250] sm:$0xff]
        %v1235 = vld [vmem:[%s1 + $0x258] sm:$0xff]
        %v1236 = vld [vmem:[%s1 + $0x260] sm:$0xff]
        %v1237 = vld [vmem:[%s1 + $0x268] sm:$0xff]
        %v1238 = vld [vmem:[%s1 + $0x270] sm:$0xff]
        %v1239 = vld [vmem:[%s1 + $0x278] sm:$0xff]
        %v1240 = vld [vmem:[%s1 + $0x280] sm:$0xff]
        %v1241 = vld [vmem:[%s1 + $0x288] sm:$0xff]
        %v1242 = vld [vmem:[%s1 + $0x290] sm:$0xff]
        %v1243 = vld [vmem:[%s1 + $0x298] sm:$0xff]
        %v1244 = vld [vmem:[%s1 + $0x2a0] sm:$0xff]
        %v1245 = vld [vmem:[%s1 + $0x2a8] sm:$0xff]
        %v1246 = vld [vmem:[%s1 + $0x2b0] sm:$0xff]
        %v1247 = vld [vmem:[%s1 + $0x2b8] sm:$0xff]
        %v1248 = vld [vmem:[%s1 + $0x2c0] sm:$0xff]
        %v1249 = vld [vmem:[%s1 + $0x2c8] sm:$0xff]
        %v1250 = vld [vmem:[%s1 + $0x2d0] sm:$0xff]
        %v1251 = vld [vmem:[%s1 + $0x2d8] sm:$0xff]
        %v1252 = vld [vmem:[%s1 + $0x2e0] sm:$0xff]
        %v1253 = vld [vmem:[%s1 + $0x2e8] sm:$0xff]
        %v1254 = vld [vmem:[%s1 + $0x2f0] sm:$0xff]
        %v1255 = vld [vmem:[%s1 + $0x2f8] sm:$0xff]
        %v1256 = vld [vmem:[%s1 + $0x300] sm:$0xff]
        %v1257 = vld [vmem:[%s1 + $0x308] sm:$0xff]
        %v1258 = vld [vmem:[%s1 + $0x310] sm:$0xff]
        %v1259 = vld [vmem:[%s1 + $0x318] sm:$0xff]
        %v1260 = vld [vmem:[%s1 + $0x320] sm:$0xff]
        %v1261 = vld [vmem:[%s1 + $0x328] sm:$0xff]
        %v1262 = vld [vmem:[%s1 + $0x330] sm:$0xff]
        %v1263 = vld [vmem:[%s1 + $0x338] sm:$0xff]
        %v1264 = vld [vmem:[%s1 + $0x340] sm:$0xff]
        %v1265 = vld [vmem:[%s1 + $0x348] sm:$0xff]
        %v1266 = vld [vmem:[%s1 + $0x350] sm:$0xff]
        %v1267 = vld [vmem:[%s1 + $0x358] sm:$0xff]
        %v1268 = vld [vmem:[%s1 + $0x360] sm:$0xff]
        %v1269 = vld [vmem:[%s1 + $0x368] sm:$0xff]
        %v1270 = vld [vmem:[%s1 + $0x370] sm:$0xff]
        %v1271 = vld [vmem:[%s1 + $0x378] sm:$0xff]
        %v1272 = vld [vmem:[%s1 + $0x380] sm:$0xff]
        %v1273 = vld [vmem:[%s1 + $0x388] sm:$0xff]
        %v1274 = vld [vmem:[%s1 + $0x390] sm:$0xff]
        %v1275 = vld [vmem:[%s1 + $0x398] sm:$0xff]
        %v1276 = vld [vmem:[%s1 + $0x3a0] sm:$0xff]
        %v1277 = vld [vmem:[%s1 + $0x3a8] sm:$0xff]
        %v1278 = vld [vmem:[%s1 + $0x3b0] sm:$0xff]
        %v1279 = vld [vmem:[%s1 + $0x3b8] sm:$0xff]
        %v1280 = vld [vmem:[%s1 + $0x3c0] sm:$0xff]
        %v1281 = vld [vmem:[%s1 + $0x3c8] sm:$0xff]
        %v1282 = vld [vmem:[%s1 + $0x3d0] sm:$0xff]
        %v1283 = vld [vmem:[%s1 + $0x3d8] sm:$0xff]
        %v1284 = vld [vmem:[%s1 + $0x3e0] sm:$0xff]
        %v1285 = vld [vmem:[%s1 + $0x3e8] sm:$0xff]
        %v1286 = vld [vmem:[%s1 + $0x3f0] sm:$0xff]
        %v1287 = vld [vmem:[%s1 + $0x3f8] sm:$0xff]
        %v1288 = vld [vmem:[%s1 + $0x400] sm:$0xff]
        %v1289 = vld [vmem:[%s1 + $0x408] sm:$0xff]
        %v1290 = vld [vmem:[%s1 + $0x410] sm:$0xff]
        %v1291 = vld [vmem:[%s1 + $0x418] sm:$0xff]
        %v1292 = vld [vmem:[%s1 + $0x420] sm:$0xff]
        %v1293 = vld [vmem:[%s1 + $0x428] sm:$0xff]
        %v1294 = vld [vmem:[%s1 + $0x430] sm:$0xff]
        %v1295 = vld [vmem:[%s1 + $0x438] sm:$0xff]
        %v1296 = vld [vmem:[%s1 + $0x440] sm:$0xff]
        %v1297 = vld [vmem:[%s1 + $0x448] sm:$0xff]
        %v1298 = vld [vmem:[%s1 + $0x450] sm:$0xff]
        %v1299 = vld [vmem:[%s1 + $0x458] sm:$0xff]
        %v1300 = vld [vmem:[%s1 + $0x460] sm:$0xff]
        %v1301 = vld [vmem:[%s1 + $0x468] sm:$0xff]
        %v1302 = vld [vmem:[%s1 + $0x470] sm:$0xff]
        %v1303 = vld [vmem:[%s1 + $0x478] sm:$0xff]
        %1304 = vmatpush.msra.mxu0 %v1175
        %1305 = vmatpush.msra.mxu0 %v1174
        %1306 = vmatpush.msra.mxu0 %v1173
        %1307 = vmatpush.msra.mxu0 %v1172
        %1308 = vmatpush.msra.mxu0 %v1171
        %1309 = vmatpush.msra.mxu0 %v1170
        %1310 = vmatpush.msra.mxu0 %v1169
        %1311 = vmatpush.msra.mxu0 %v1168
        %1312 = vmatpush.msra.mxu0 %v1167
        %1313 = vmatpush.msra.mxu0 %v1166
        %1314 = vmatpush.msra.mxu0 %v1165
        %1315 = vmatpush.msra.mxu0 %v1164
        %1316 = vmatpush.msra.mxu0 %v1163
        %1317 = vmatpush.msra.mxu0 %v1162
        %1318 = vmatpush.msra.mxu0 %v1161
        %1319 = vmatpush.msra.mxu0 %v1160
        %1320 = vmatmul.f32.gmra.mxu0 %v872
        %v1321 = vpop.f32.mrf.mxu0
        %v1322 = vadd.f32 0.0, %v1321
        %1323 = vmatmul.f32.gmra.mxu0 %v881
        %v1324 = vpop.f32.mrf.mxu0
        %v1325 = vadd.f32 0.0, %v1324
        %1326 = vmatmul.f32.gmra.mxu0 %v890
        %v1327 = vpop.f32.mrf.mxu0
        %v1328 = vadd.f32 0.0, %v1327
        %1329 = vmatmul.f32.gmra.mxu0 %v899
        %v1330 = vpop.f32.mrf.mxu0
        %v1331 = vadd.f32 0.0, %v1330
        %1332 = vmatmul.f32.gmra.mxu0 %v908
        %v1333 = vpop.f32.mrf.mxu0
        %v1334 = vadd.f32 0.0, %v1333
        %1335 = vmatmul.f32.gmra.mxu0 %v917
        %v1336 = vpop.f32.mrf.mxu0
        %v1337 = vadd.f32 0.0, %v1336
        %1338 = vmatmul.f32.gmra.mxu0 %v926
        %v1339 = vpop.f32.mrf.mxu0
        %v1340 = vadd.f32 0.0, %v1339
        %1341 = vmatmul.f32.gmra.mxu0 %v935
        %v1342 = vpop.f32.mrf.mxu0
        %v1343 = vadd.f32 0.0, %v1342
        %1344 = vmatmul.f32.gmra.mxu0 %v944
        %v1345 = vpop.f32.mrf.mxu0
        %v1346 = vadd.f32 0.0, %v1345
        %1347 = vmatmul.f32.gmra.mxu0 %v953
        %v1348 = vpop.f32.mrf.mxu0
        %v1349 = vadd.f32 0.0, %v1348
        %1350 = vmatmul.f32.gmra.mxu0 %v962
        %v1351 = vpop.f32.mrf.mxu0
        %v1352 = vadd.f32 0.0, %v1351
        %1353 = vmatmul.f32.gmra.mxu0 %v971
        %v1354 = vpop.f32.mrf.mxu0
        %v1355 = vadd.f32 0.0, %v1354
        %1356 = vmatmul.f32.gmra.mxu0 %v980
        %v1357 = vpop.f32.mrf.mxu0
        %v1358 = vadd.f32 0.0, %v1357
        %1359 = vmatmul.f32.gmra.mxu0 %v989
        %v1360 = vpop.f32.mrf.mxu0
        %v1361 = vadd.f32 0.0, %v1360
        %1362 = vmatmul.f32.gmra.mxu0 %v998
        %v1363 = vpop.f32.mrf.mxu0
        %v1364 = vadd.f32 0.0, %v1363
        %1365 = vmatmul.f32.gmra.mxu0 %v1007
        %v1366 = vpop.f32.mrf.mxu0
        %v1367 = vadd.f32 0.0, %v1366
        %1368 = vmatmul.f32.gmra.mxu0 %v1016
        %v1369 = vpop.f32.mrf.mxu0
        %v1370 = vadd.f32 0.0, %v1369
        %1371 = vmatmul.f32.gmra.mxu0 %v1025
        %v1372 = vpop.f32.mrf.mxu0
        %v1373 = vadd.f32 0.0, %v1372
        %1374 = vmatmul.f32.gmra.mxu0 %v1034
        %v1375 = vpop.f32.mrf.mxu0
        %v1376 = vadd.f32 0.0, %v1375
        %1377 = vmatmul.f32.gmra.mxu0 %v1043
        %v1378 = vpop.f32.mrf.mxu0
        %v1379 = vadd.f32 0.0, %v1378
        %1380 = vmatmul.f32.gmra.mxu0 %v1052
        %v1381 = vpop.f32.mrf.mxu0
        %v1382 = vadd.f32 0.0, %v1381
        %1383 = vmatmul.f32.gmra.mxu0 %v1061
        %v1384 = vpop.f32.mrf.mxu0
        %v1385 = vadd.f32 0.0, %v1384
        %1386 = vmatmul.f32.gmra.mxu0 %v1070
        %v1387 = vpop.f32.mrf.mxu0
        %v1388 = vadd.f32 0.0, %v1387
        %1389 = vmatmul.f32.gmra.mxu0 %v1079
        %v1390 = vpop.f32.mrf.mxu0
        %v1391 = vadd.f32 0.0, %v1390
        %1392 = vmatmul.f32.gmra.mxu0 %v1088
        %v1393 = vpop.f32.mrf.mxu0
        %v1394 = vadd.f32 0.0, %v1393
        %1395 = vmatmul.f32.gmra.mxu0 %v1097
        %v1396 = vpop.f32.mrf.mxu0
        %v1397 = vadd.f32 0.0, %v1396
        %1398 = vmatmul.f32.gmra.mxu0 %v1106
        %v1399 = vpop.f32.mrf.mxu0
        %v1400 = vadd.f32 0.0, %v1399
        %1401 = vmatmul.f32.gmra.mxu0 %v1115
        %v1402 = vpop.f32.mrf.mxu0
        %v1403 = vadd.f32 0.0, %v1402
        %1404 = vmatmul.f32.gmra.mxu0 %v1124
        %v1405 = vpop.f32.mrf.mxu0
        %v1406 = vadd.f32 0.0, %v1405
        %1407 = vmatmul.f32.gmra.mxu0 %v1133
        %v1408 = vpop.f32.mrf.mxu0
        %v1409 = vadd.f32 0.0, %v1408
        %1410 = vmatmul.f32.gmra.mxu0 %v1142
        %v1411 = vpop.f32.mrf.mxu0
        %v1412 = vadd.f32 0.0, %v1411
        %1413 = vmatmul.f32.gmra.mxu0 %v1151
        %v1414 = vpop.f32.mrf.mxu0
        %v1415 = vadd.f32 0.0, %v1414
        %1416 = vdwg.mxu0
        %1417 = vmatpush.msra.mxu0 %v1191
        %1418 = vmatpush.msra.mxu0 %v1190
        %1419 = vmatpush.msra.mxu0 %v1189
        %1420 = vmatpush.msra.mxu0 %v1188
        %1421 = vmatpush.msra.mxu0 %v1187
        %1422 = vmatpush.msra.mxu0 %v1186
        %1423 = vmatpush.msra.mxu0 %v1185
        %1424 = vmatpush.msra.mxu0 %v1184
        %1425 = vmatpush.msra.mxu0 %v1183
        %1426 = vmatpush.msra.mxu0 %v1182
        %1427 = vmatpush.msra.mxu0 %v1181
        %1428 = vmatpush.msra.mxu0 %v1180
        %1429 = vmatpush.msra.mxu0 %v1179
        %1430 = vmatpush.msra.mxu0 %v1178
        %1431 = vmatpush.msra.mxu0 %v1177
        %1432 = vmatpush.msra.mxu0 %v1176
        %1433 = vmatmul.f32.gmra.mxu0 %v873
        %v1434 = vpop.f32.mrf.mxu0
        %v1435 = vadd.f32 %v1322, %v1434
        %1436 = vmatmul.f32.gmra.mxu0 %v882
        %v1437 = vpop.f32.mrf.mxu0
        %v1438 = vadd.f32 %v1325, %v1437
        %1439 = vmatmul.f32.gmra.mxu0 %v891
        %v1440 = vpop.f32.mrf.mxu0
        %v1441 = vadd.f32 %v1328, %v1440
        %1442 = vmatmul.f32.gmra.mxu0 %v900
        %v1443 = vpop.f32.mrf.mxu0
        %v1444 = vadd.f32 %v1331, %v1443
        %1445 = vmatmul.f32.gmra.mxu0 %v909
        %v1446 = vpop.f32.mrf.mxu0
        %v1447 = vadd.f32 %v1334, %v1446
        %1448 = vmatmul.f32.gmra.mxu0 %v918
        %v1449 = vpop.f32.mrf.mxu0
        %v1450 = vadd.f32 %v1337, %v1449
        %1451 = vmatmul.f32.gmra.mxu0 %v927
        %v1452 = vpop.f32.mrf.mxu0
        %v1453 = vadd.f32 %v1340, %v1452
        %1454 = vmatmul.f32.gmra.mxu0 %v936
        %v1455 = vpop.f32.mrf.mxu0
        %v1456 = vadd.f32 %v1343, %v1455
        %1457 = vmatmul.f32.gmra.mxu0 %v945
        %v1458 = vpop.f32.mrf.mxu0
        %v1459 = vadd.f32 %v1346, %v1458
        %1460 = vmatmul.f32.gmra.mxu0 %v954
        %v1461 = vpop.f32.mrf.mxu0
        %v1462 = vadd.f32 %v1349, %v1461
        %1463 = vmatmul.f32.gmra.mxu0 %v963
        %v1464 = vpop.f32.mrf.mxu0
        %v1465 = vadd.f32 %v1352, %v1464
        %1466 = vmatmul.f32.gmra.mxu0 %v972
        %v1467 = vpop.f32.mrf.mxu0
        %v1468 = vadd.f32 %v1355, %v1467
        %1469 = vmatmul.f32.gmra.mxu0 %v981
        %v1470 = vpop.f32.mrf.mxu0
        %v1471 = vadd.f32 %v1358, %v1470
        %1472 = vmatmul.f32.gmra.mxu0 %v990
        %v1473 = vpop.f32.mrf.mxu0
        %v1474 = vadd.f32 %v1361, %v1473
        %1475 = vmatmul.f32.gmra.mxu0 %v999
        %v1476 = vpop.f32.mrf.mxu0
        %v1477 = vadd.f32 %v1364, %v1476
        %1478 = vmatmul.f32.gmra.mxu0 %v1008
        %v1479 = vpop.f32.mrf.mxu0
        %v1480 = vadd.f32 %v1367, %v1479
        %1481 = vmatmul.f32.gmra.mxu0 %v1017
        %v1482 = vpop.f32.mrf.mxu0
        %v1483 = vadd.f32 %v1370, %v1482
        %1484 = vmatmul.f32.gmra.mxu0 %v1026
        %v1485 = vpop.f32.mrf.mxu0
        %v1486 = vadd.f32 %v1373, %v1485
        %1487 = vmatmul.f32.gmra.mxu0 %v1035
        %v1488 = vpop.f32.mrf.mxu0
        %v1489 = vadd.f32 %v1376, %v1488
        %1490 = vmatmul.f32.gmra.mxu0 %v1044
        %v1491 = vpop.f32.mrf.mxu0
        %v1492 = vadd.f32 %v1379, %v1491
        %1493 = vmatmul.f32.gmra.mxu0 %v1053
        %v1494 = vpop.f32.mrf.mxu0
        %v1495 = vadd.f32 %v1382, %v1494
        %1496 = vmatmul.f32.gmra.mxu0 %v1062
        %v1497 = vpop.f32.mrf.mxu0
        %v1498 = vadd.f32 %v1385, %v1497
        %1499 = vmatmul.f32.gmra.mxu0 %v1071
        %v1500 = vpop.f32.mrf.mxu0
        %v1501 = vadd.f32 %v1388, %v1500
        %1502 = vmatmul.f32.gmra.mxu0 %v1080
        %v1503 = vpop.f32.mrf.mxu0
        %v1504 = vadd.f32 %v1391, %v1503
        %1505 = vmatmul.f32.gmra.mxu0 %v1089
        %v1506 = vpop.f32.mrf.mxu0
        %v1507 = vadd.f32 %v1394, %v1506
        %1508 = vmatmul.f32.gmra.mxu0 %v1098
        %v1509 = vpop.f32.mrf.mxu0
        %v1510 = vadd.f32 %v1397, %v1509
        %1511 = vmatmul.f32.gmra.mxu0 %v1107
        %v1512 = vpop.f32.mrf.mxu0
        %v1513 = vadd.f32 %v1400, %v1512
        %1514 = vmatmul.f32.gmra.mxu0 %v1116
        %v1515 = vpop.f32.mrf.mxu0
        %v1516 = vadd.f32 %v1403, %v1515
        %1517 = vmatmul.f32.gmra.mxu0 %v1125
        %v1518 = vpop.f32.mrf.mxu0
        %v1519 = vadd.f32 %v1406, %v1518
        %1520 = vmatmul.f32.gmra.mxu0 %v1134
        %v1521 = vpop.f32.mrf.mxu0
        %v1522 = vadd.f32 %v1409, %v1521
        %1523 = vmatmul.f32.gmra.mxu0 %v1143
        %v1524 = vpop.f32.mrf.mxu0
        %v1525 = vadd.f32 %v1412, %v1524
        %1526 = vmatmul.f32.gmra.mxu0 %v1152
        %v1527 = vpop.f32.mrf.mxu0
        %v1528 = vadd.f32 %v1415, %v1527
        %1529 = vdwg.mxu0
        %1530 = vmatpush.msra.mxu0 %v1207
        %1531 = vmatpush.msra.mxu0 %v1206
        %1532 = vmatpush.msra.mxu0 %v1205
        %1533 = vmatpush.msra.mxu0 %v1204
        %1534 = vmatpush.msra.mxu0 %v1203
        %1535 = vmatpush.msra.mxu0 %v1202
        %1536 = vmatpush.msra.mxu0 %v1201
        %1537 = vmatpush.msra.mxu0 %v1200
        %1538 = vmatpush.msra.mxu0 %v1199
        %1539 = vmatpush.msra.mxu0 %v1198
        %1540 = vmatpush.msra.mxu0 %v1197
        %1541 = vmatpush.msra.mxu0 %v1196
        %1542 = vmatpush.msra.mxu0 %v1195
        %1543 = vmatpush.msra.mxu0 %v1194
        %1544 = vmatpush.msra.mxu0 %v1193
        %1545 = vmatpush.msra.mxu0 %v1192
        %1546 = vmatmul.f32.gmra.mxu0 %v874
        %v1547 = vpop.f32.mrf.mxu0
        %v1548 = vadd.f32 %v1435, %v1547
        %1549 = vmatmul.f32.gmra.mxu0 %v883
        %v1550 = vpop.f32.mrf.mxu0
        %v1551 = vadd.f32 %v1438, %v1550
        %1552 = vmatmul.f32.gmra.mxu0 %v892
        %v1553 = vpop.f32.mrf.mxu0
        %v1554 = vadd.f32 %v1441, %v1553
        %1555 = vmatmul.f32.gmra.mxu0 %v901
        %v1556 = vpop.f32.mrf.mxu0
        %v1557 = vadd.f32 %v1444, %v1556
        %1558 = vmatmul.f32.gmra.mxu0 %v910
        %v1559 = vpop.f32.mrf.mxu0
        %v1560 = vadd.f32 %v1447, %v1559
        %1561 = vmatmul.f32.gmra.mxu0 %v919
        %v1562 = vpop.f32.mrf.mxu0
        %v1563 = vadd.f32 %v1450, %v1562
        %1564 = vmatmul.f32.gmra.mxu0 %v928
        %v1565 = vpop.f32.mrf.mxu0
        %v1566 = vadd.f32 %v1453, %v1565
        %1567 = vmatmul.f32.gmra.mxu0 %v937
        %v1568 = vpop.f32.mrf.mxu0
        %v1569 = vadd.f32 %v1456, %v1568
        %1570 = vmatmul.f32.gmra.mxu0 %v946
        %v1571 = vpop.f32.mrf.mxu0
        %v1572 = vadd.f32 %v1459, %v1571
        %1573 = vmatmul.f32.gmra.mxu0 %v955
        %v1574 = vpop.f32.mrf.mxu0
        %v1575 = vadd.f32 %v1462, %v1574
        %1576 = vmatmul.f32.gmra.mxu0 %v964
        %v1577 = vpop.f32.mrf.mxu0
        %v1578 = vadd.f32 %v1465, %v1577
        %1579 = vmatmul.f32.gmra.mxu0 %v973
        %v1580 = vpop.f32.mrf.mxu0
        %v1581 = vadd.f32 %v1468, %v1580
        %1582 = vmatmul.f32.gmra.mxu0 %v982
        %v1583 = vpop.f32.mrf.mxu0
        %v1584 = vadd.f32 %v1471, %v1583
        %1585 = vmatmul.f32.gmra.mxu0 %v991
        %v1586 = vpop.f32.mrf.mxu0
        %v1587 = vadd.f32 %v1474, %v1586
        %1588 = vmatmul.f32.gmra.mxu0 %v1000
        %v1589 = vpop.f32.mrf.mxu0
        %v1590 = vadd.f32 %v1477, %v1589
        %1591 = vmatmul.f32.gmra.mxu0 %v1009
        %v1592 = vpop.f32.mrf.mxu0
        %v1593 = vadd.f32 %v1480, %v1592
        %1594 = vmatmul.f32.gmra.mxu0 %v1018
        %v1595 = vpop.f32.mrf.mxu0
        %v1596 = vadd.f32 %v1483, %v1595
        %1597 = vmatmul.f32.gmra.mxu0 %v1027
        %v1598 = vpop.f32.mrf.mxu0
        %v1599 = vadd.f32 %v1486, %v1598
        %1600 = vmatmul.f32.gmra.mxu0 %v1036
        %v1601 = vpop.f32.mrf.mxu0
        %v1602 = vadd.f32 %v1489, %v1601
        %1603 = vmatmul.f32.gmra.mxu0 %v1045
        %v1604 = vpop.f32.mrf.mxu0
        %v1605 = vadd.f32 %v1492, %v1604
        %1606 = vmatmul.f32.gmra.mxu0 %v1054
        %v1607 = vpop.f32.mrf.mxu0
        %v1608 = vadd.f32 %v1495, %v1607
        %1609 = vmatmul.f32.gmra.mxu0 %v1063
        %v1610 = vpop.f32.mrf.mxu0
        %v1611 = vadd.f32 %v1498, %v1610
        %1612 = vmatmul.f32.gmra.mxu0 %v1072
        %v1613 = vpop.f32.mrf.mxu0
        %v1614 = vadd.f32 %v1501, %v1613
        %1615 = vmatmul.f32.gmra.mxu0 %v1081
        %v1616 = vpop.f32.mrf.mxu0
        %v1617 = vadd.f32 %v1504, %v1616
        %1618 = vmatmul.f32.gmra.mxu0 %v1090
        %v1619 = vpop.f32.mrf.mxu0
        %v1620 = vadd.f32 %v1507, %v1619
        %1621 = vmatmul.f32.gmra.mxu0 %v1099
        %v1622 = vpop.f32.mrf.mxu0
        %v1623 = vadd.f32 %v1510, %v1622
        %1624 = vmatmul.f32.gmra.mxu0 %v1108
        %v1625 = vpop.f32.mrf.mxu0
        %v1626 = vadd.f32 %v1513, %v1625
        %1627 = vmatmul.f32.gmra.mxu0 %v1117
        %v1628 = vpop.f32.mrf.mxu0
        %v1629 = vadd.f32 %v1516, %v1628
        %1630 = vmatmul.f32.gmra.mxu0 %v1126
        %v1631 = vpop.f32.mrf.mxu0
        %v1632 = vadd.f32 %v1519, %v1631
        %1633 = vmatmul.f32.gmra.mxu0 %v1135
        %v1634 = vpop.f32.mrf.mxu0
        %v1635 = vadd.f32 %v1522, %v1634
        %1636 = vmatmul.f32.gmra.mxu0 %v1144
        %v1637 = vpop.f32.mrf.mxu0
        %v1638 = vadd.f32 %v1525, %v1637
        %1639 = vmatmul.f32.gmra.mxu0 %v1153
        %v1640 = vpop.f32.mrf.mxu0
        %v1641 = vadd.f32 %v1528, %v1640
        %1642 = vdwg.mxu0
        %1643 = vmatpush.msra.mxu0 %v1223
        %1644 = vmatpush.msra.mxu0 %v1222
        %1645 = vmatpush.msra.mxu0 %v1221
        %1646 = vmatpush.msra.mxu0 %v1220
        %1647 = vmatpush.msra.mxu0 %v1219
        %1648 = vmatpush.msra.mxu0 %v1218
        %1649 = vmatpush.msra.mxu0 %v1217
        %1650 = vmatpush.msra.mxu0 %v1216
        %1651 = vmatpush.msra.mxu0 %v1215
        %1652 = vmatpush.msra.mxu0 %v1214
        %1653 = vmatpush.msra.mxu0 %v1213
        %1654 = vmatpush.msra.mxu0 %v1212
        %1655 = vmatpush.msra.mxu0 %v1211
        %1656 = vmatpush.msra.mxu0 %v1210
        %1657 = vmatpush.msra.mxu0 %v1209
        %1658 = vmatpush.msra.mxu0 %v1208
        %1659 = vmatmul.f32.gmra.mxu0 %v875
        %v1660 = vpop.f32.mrf.mxu0
        %v1661 = vadd.f32 %v1548, %v1660
        %1662 = vmatmul.f32.gmra.mxu0 %v884
        %v1663 = vpop.f32.mrf.mxu0
        %v1664 = vadd.f32 %v1551, %v1663
        %1665 = vmatmul.f32.gmra.mxu0 %v893
        %v1666 = vpop.f32.mrf.mxu0
        %v1667 = vadd.f32 %v1554, %v1666
        %1668 = vmatmul.f32.gmra.mxu0 %v902
        %v1669 = vpop.f32.mrf.mxu0
        %v1670 = vadd.f32 %v1557, %v1669
        %1671 = vmatmul.f32.gmra.mxu0 %v911
        %v1672 = vpop.f32.mrf.mxu0
        %v1673 = vadd.f32 %v1560, %v1672
        %1674 = vmatmul.f32.gmra.mxu0 %v920
        %v1675 = vpop.f32.mrf.mxu0
        %v1676 = vadd.f32 %v1563, %v1675
        %1677 = vmatmul.f32.gmra.mxu0 %v929
        %v1678 = vpop.f32.mrf.mxu0
        %v1679 = vadd.f32 %v1566, %v1678
        %1680 = vmatmul.f32.gmra.mxu0 %v938
        %v1681 = vpop.f32.mrf.mxu0
        %v1682 = vadd.f32 %v1569, %v1681
        %1683 = vmatmul.f32.gmra.mxu0 %v947
        %v1684 = vpop.f32.mrf.mxu0
        %v1685 = vadd.f32 %v1572, %v1684
        %1686 = vmatmul.f32.gmra.mxu0 %v956
        %v1687 = vpop.f32.mrf.mxu0
        %v1688 = vadd.f32 %v1575, %v1687
        %1689 = vmatmul.f32.gmra.mxu0 %v965
        %v1690 = vpop.f32.mrf.mxu0
        %v1691 = vadd.f32 %v1578, %v1690
        %1692 = vmatmul.f32.gmra.mxu0 %v974
        %v1693 = vpop.f32.mrf.mxu0
        %v1694 = vadd.f32 %v1581, %v1693
        %1695 = vmatmul.f32.gmra.mxu0 %v983
        %v1696 = vpop.f32.mrf.mxu0
        %v1697 = vadd.f32 %v1584, %v1696
        %1698 = vmatmul.f32.gmra.mxu0 %v992
        %v1699 = vpop.f32.mrf.mxu0
        %v1700 = vadd.f32 %v1587, %v1699
        %1701 = vmatmul.f32.gmra.mxu0 %v1001
        %v1702 = vpop.f32.mrf.mxu0
        %v1703 = vadd.f32 %v1590, %v1702
        %1704 = vmatmul.f32.gmra.mxu0 %v1010
        %v1705 = vpop.f32.mrf.mxu0
        %v1706 = vadd.f32 %v1593, %v1705
        %1707 = vmatmul.f32.gmra.mxu0 %v1019
        %v1708 = vpop.f32.mrf.mxu0
        %v1709 = vadd.f32 %v1596, %v1708
        %1710 = vmatmul.f32.gmra.mxu0 %v1028
        %v1711 = vpop.f32.mrf.mxu0
        %v1712 = vadd.f32 %v1599, %v1711
        %1713 = vmatmul.f32.gmra.mxu0 %v1037
        %v1714 = vpop.f32.mrf.mxu0
        %v1715 = vadd.f32 %v1602, %v1714
        %1716 = vmatmul.f32.gmra.mxu0 %v1046
        %v1717 = vpop.f32.mrf.mxu0
        %v1718 = vadd.f32 %v1605, %v1717
        %1719 = vmatmul.f32.gmra.mxu0 %v1055
        %v1720 = vpop.f32.mrf.mxu0
        %v1721 = vadd.f32 %v1608, %v1720
        %1722 = vmatmul.f32.gmra.mxu0 %v1064
        %v1723 = vpop.f32.mrf.mxu0
        %v1724 = vadd.f32 %v1611, %v1723
        %1725 = vmatmul.f32.gmra.mxu0 %v1073
        %v1726 = vpop.f32.mrf.mxu0
        %v1727 = vadd.f32 %v1614, %v1726
        %1728 = vmatmul.f32.gmra.mxu0 %v1082
        %v1729 = vpop.f32.mrf.mxu0
        %v1730 = vadd.f32 %v1617, %v1729
        %1731 = vmatmul.f32.gmra.mxu0 %v1091
        %v1732 = vpop.f32.mrf.mxu0
        %v1733 = vadd.f32 %v1620, %v1732
        %1734 = vmatmul.f32.gmra.mxu0 %v1100
        %v1735 = vpop.f32.mrf.mxu0
        %v1736 = vadd.f32 %v1623, %v1735
        %1737 = vmatmul.f32.gmra.mxu0 %v1109
        %v1738 = vpop.f32.mrf.mxu0
        %v1739 = vadd.f32 %v1626, %v1738
        %1740 = vmatmul.f32.gmra.mxu0 %v1118
        %v1741 = vpop.f32.mrf.mxu0
        %v1742 = vadd.f32 %v1629, %v1741
        %1743 = vmatmul.f32.gmra.mxu0 %v1127
        %v1744 = vpop.f32.mrf.mxu0
        %v1745 = vadd.f32 %v1632, %v1744
        %1746 = vmatmul.f32.gmra.mxu0 %v1136
        %v1747 = vpop.f32.mrf.mxu0
        %v1748 = vadd.f32 %v1635, %v1747
        %1749 = vmatmul.f32.gmra.mxu0 %v1145
        %v1750 = vpop.f32.mrf.mxu0
        %v1751 = vadd.f32 %v1638, %v1750
        %1752 = vmatmul.f32.gmra.mxu0 %v1154
        %v1753 = vpop.f32.mrf.mxu0
        %v1754 = vadd.f32 %v1641, %v1753
        %1755 = vdwg.mxu0
        %1756 = vmatpush.msra.mxu0 %v1239
        %1757 = vmatpush.msra.mxu0 %v1238
        %1758 = vmatpush.msra.mxu0 %v1237
        %1759 = vmatpush.msra.mxu0 %v1236
        %1760 = vmatpush.msra.mxu0 %v1235
        %1761 = vmatpush.msra.mxu0 %v1234
        %1762 = vmatpush.msra.mxu0 %v1233
        %1763 = vmatpush.msra.mxu0 %v1232
        %1764 = vmatpush.msra.mxu0 %v1231
        %1765 = vmatpush.msra.mxu0 %v1230
        %1766 = vmatpush.msra.mxu0 %v1229
        %1767 = vmatpush.msra.mxu0 %v1228
        %1768 = vmatpush.msra.mxu0 %v1227
        %1769 = vmatpush.msra.mxu0 %v1226
        %1770 = vmatpush.msra.mxu0 %v1225
        %1771 = vmatpush.msra.mxu0 %v1224
        %1772 = vmatmul.f32.gmra.mxu0 %v876
        %v1773 = vpop.f32.mrf.mxu0
        %v1774 = vadd.f32 %v1661, %v1773
        %1775 = vmatmul.f32.gmra.mxu0 %v885
        %v1776 = vpop.f32.mrf.mxu0
        %v1777 = vadd.f32 %v1664, %v1776
        %1778 = vmatmul.f32.gmra.mxu0 %v894
        %v1779 = vpop.f32.mrf.mxu0
        %v1780 = vadd.f32 %v1667, %v1779
        %1781 = vmatmul.f32.gmra.mxu0 %v903
        %v1782 = vpop.f32.mrf.mxu0
        %v1783 = vadd.f32 %v1670, %v1782
        %1784 = vmatmul.f32.gmra.mxu0 %v912
        %v1785 = vpop.f32.mrf.mxu0
        %v1786 = vadd.f32 %v1673, %v1785
        %1787 = vmatmul.f32.gmra.mxu0 %v921
        %v1788 = vpop.f32.mrf.mxu0
        %v1789 = vadd.f32 %v1676, %v1788
        %1790 = vmatmul.f32.gmra.mxu0 %v930
        %v1791 = vpop.f32.mrf.mxu0
        %v1792 = vadd.f32 %v1679, %v1791
        %1793 = vmatmul.f32.gmra.mxu0 %v939
        %v1794 = vpop.f32.mrf.mxu0
        %v1795 = vadd.f32 %v1682, %v1794
        %1796 = vmatmul.f32.gmra.mxu0 %v948
        %v1797 = vpop.f32.mrf.mxu0
        %v1798 = vadd.f32 %v1685, %v1797
        %1799 = vmatmul.f32.gmra.mxu0 %v957
        %v1800 = vpop.f32.mrf.mxu0
        %v1801 = vadd.f32 %v1688, %v1800
        %1802 = vmatmul.f32.gmra.mxu0 %v966
        %v1803 = vpop.f32.mrf.mxu0
        %v1804 = vadd.f32 %v1691, %v1803
        %1805 = vmatmul.f32.gmra.mxu0 %v975
        %v1806 = vpop.f32.mrf.mxu0
        %v1807 = vadd.f32 %v1694, %v1806
        %1808 = vmatmul.f32.gmra.mxu0 %v984
        %v1809 = vpop.f32.mrf.mxu0
        %v1810 = vadd.f32 %v1697, %v1809
        %1811 = vmatmul.f32.gmra.mxu0 %v993
        %v1812 = vpop.f32.mrf.mxu0
        %v1813 = vadd.f32 %v1700, %v1812
        %1814 = vmatmul.f32.gmra.mxu0 %v1002
        %v1815 = vpop.f32.mrf.mxu0
        %v1816 = vadd.f32 %v1703, %v1815
        %1817 = vmatmul.f32.gmra.mxu0 %v1011
        %v1818 = vpop.f32.mrf.mxu0
        %v1819 = vadd.f32 %v1706, %v1818
        %1820 = vmatmul.f32.gmra.mxu0 %v1020
        %v1821 = vpop.f32.mrf.mxu0
        %v1822 = vadd.f32 %v1709, %v1821
        %1823 = vmatmul.f32.gmra.mxu0 %v1029
        %v1824 = vpop.f32.mrf.mxu0
        %v1825 = vadd.f32 %v1712, %v1824
        %1826 = vmatmul.f32.gmra.mxu0 %v1038
        %v1827 = vpop.f32.mrf.mxu0
        %v1828 = vadd.f32 %v1715, %v1827
        %1829 = vmatmul.f32.gmra.mxu0 %v1047
        %v1830 = vpop.f32.mrf.mxu0
        %v1831 = vadd.f32 %v1718, %v1830
        %1832 = vmatmul.f32.gmra.mxu0 %v1056
        %v1833 = vpop.f32.mrf.mxu0
        %v1834 = vadd.f32 %v1721, %v1833
        %1835 = vmatmul.f32.gmra.mxu0 %v1065
        %v1836 = vpop.f32.mrf.mxu0
        %v1837 = vadd.f32 %v1724, %v1836
        %1838 = vmatmul.f32.gmra.mxu0 %v1074
        %v1839 = vpop.f32.mrf.mxu0
        %v1840 = vadd.f32 %v1727, %v1839
        %1841 = vmatmul.f32.gmra.mxu0 %v1083
        %v1842 = vpop.f32.mrf.mxu0
        %v1843 = vadd.f32 %v1730, %v1842
        %1844 = vmatmul.f32.gmra.mxu0 %v1092
        %v1845 = vpop.f32.mrf.mxu0
        %v1846 = vadd.f32 %v1733, %v1845
        %1847 = vmatmul.f32.gmra.mxu0 %v1101
        %v1848 = vpop.f32.mrf.mxu0
        %v1849 = vadd.f32 %v1736, %v1848
        %1850 = vmatmul.f32.gmra.mxu0 %v1110
        %v1851 = vpop.f32.mrf.mxu0
        %v1852 = vadd.f32 %v1739, %v1851
        %1853 = vmatmul.f32.gmra.mxu0 %v1119
        %v1854 = vpop.f32.mrf.mxu0
        %v1855 = vadd.f32 %v1742, %v1854
        %1856 = vmatmul.f32.gmra.mxu0 %v1128
        %v1857 = vpop.f32.mrf.mxu0
        %v1858 = vadd.f32 %v1745, %v1857
        %1859 = vmatmul.f32.gmra.mxu0 %v1137
        %v1860 = vpop.f32.mrf.mxu0
        %v1861 = vadd.f32 %v1748, %v1860
        %1862 = vmatmul.f32.gmra.mxu0 %v1146
        %v1863 = vpop.f32.mrf.mxu0
        %v1864 = vadd.f32 %v1751, %v1863
        %1865 = vmatmul.f32.gmra.mxu0 %v1155
        %v1866 = vpop.f32.mrf.mxu0
        %v1867 = vadd.f32 %v1754, %v1866
        %1868 = vdwg.mxu0
        %1869 = vmatpush.msra.mxu0 %v1255
        %1870 = vmatpush.msra.mxu0 %v1254
        %1871 = vmatpush.msra.mxu0 %v1253
        %1872 = vmatpush.msra.mxu0 %v1252
        %1873 = vmatpush.msra.mxu0 %v1251
        %1874 = vmatpush.msra.mxu0 %v1250
        %1875 = vmatpush.msra.mxu0 %v1249
        %1876 = vmatpush.msra.mxu0 %v1248
        %1877 = vmatpush.msra.mxu0 %v1247
        %1878 = vmatpush.msra.mxu0 %v1246
        %1879 = vmatpush.msra.mxu0 %v1245
        %1880 = vmatpush.msra.mxu0 %v1244
        %1881 = vmatpush.msra.mxu0 %v1243
        %1882 = vmatpush.msra.mxu0 %v1242
        %1883 = vmatpush.msra.mxu0 %v1241
        %1884 = vmatpush.msra.mxu0 %v1240
        %1885 = vmatmul.f32.gmra.mxu0 %v877
        %v1886 = vpop.f32.mrf.mxu0
        %v1887 = vadd.f32 %v1774, %v1886
        %1888 = vmatmul.f32.gmra.mxu0 %v886
        %v1889 = vpop.f32.mrf.mxu0
        %v1890 = vadd.f32 %v1777, %v1889
        %1891 = vmatmul.f32.gmra.mxu0 %v895
        %v1892 = vpop.f32.mrf.mxu0
        %v1893 = vadd.f32 %v1780, %v1892
        %1894 = vmatmul.f32.gmra.mxu0 %v904
        %v1895 = vpop.f32.mrf.mxu0
        %v1896 = vadd.f32 %v1783, %v1895
        %1897 = vmatmul.f32.gmra.mxu0 %v913
        %v1898 = vpop.f32.mrf.mxu0
        %v1899 = vadd.f32 %v1786, %v1898
        %1900 = vmatmul.f32.gmra.mxu0 %v922
        %v1901 = vpop.f32.mrf.mxu0
        %v1902 = vadd.f32 %v1789, %v1901
        %1903 = vmatmul.f32.gmra.mxu0 %v931
        %v1904 = vpop.f32.mrf.mxu0
        %v1905 = vadd.f32 %v1792, %v1904
        %1906 = vmatmul.f32.gmra.mxu0 %v940
        %v1907 = vpop.f32.mrf.mxu0
        %v1908 = vadd.f32 %v1795, %v1907
        %1909 = vmatmul.f32.gmra.mxu0 %v949
        %v1910 = vpop.f32.mrf.mxu0
        %v1911 = vadd.f32 %v1798, %v1910
        %1912 = vmatmul.f32.gmra.mxu0 %v958
        %v1913 = vpop.f32.mrf.mxu0
        %v1914 = vadd.f32 %v1801, %v1913
        %1915 = vmatmul.f32.gmra.mxu0 %v967
        %v1916 = vpop.f32.mrf.mxu0
        %v1917 = vadd.f32 %v1804, %v1916
        %1918 = vmatmul.f32.gmra.mxu0 %v976
        %v1919 = vpop.f32.mrf.mxu0
        %v1920 = vadd.f32 %v1807, %v1919
        %1921 = vmatmul.f32.gmra.mxu0 %v985
        %v1922 = vpop.f32.mrf.mxu0
        %v1923 = vadd.f32 %v1810, %v1922
        %1924 = vmatmul.f32.gmra.mxu0 %v994
        %v1925 = vpop.f32.mrf.mxu0
        %v1926 = vadd.f32 %v1813, %v1925
        %1927 = vmatmul.f32.gmra.mxu0 %v1003
        %v1928 = vpop.f32.mrf.mxu0
        %v1929 = vadd.f32 %v1816, %v1928
        %1930 = vmatmul.f32.gmra.mxu0 %v1012
        %v1931 = vpop.f32.mrf.mxu0
        %v1932 = vadd.f32 %v1819, %v1931
        %1933 = vmatmul.f32.gmra.mxu0 %v1021
        %v1934 = vpop.f32.mrf.mxu0
        %v1935 = vadd.f32 %v1822, %v1934
        %1936 = vmatmul.f32.gmra.mxu0 %v1030
        %v1937 = vpop.f32.mrf.mxu0
        %v1938 = vadd.f32 %v1825, %v1937
        %1939 = vmatmul.f32.gmra.mxu0 %v1039
        %v1940 = vpop.f32.mrf.mxu0
        %v1941 = vadd.f32 %v1828, %v1940
        %1942 = vmatmul.f32.gmra.mxu0 %v1048
        %v1943 = vpop.f32.mrf.mxu0
        %v1944 = vadd.f32 %v1831, %v1943
        %1945 = vmatmul.f32.gmra.mxu0 %v1057
        %v1946 = vpop.f32.mrf.mxu0
        %v1947 = vadd.f32 %v1834, %v1946
        %1948 = vmatmul.f32.gmra.mxu0 %v1066
        %v1949 = vpop.f32.mrf.mxu0
        %v1950 = vadd.f32 %v1837, %v1949
        %1951 = vmatmul.f32.gmra.mxu0 %v1075
        %v1952 = vpop.f32.mrf.mxu0
        %v1953 = vadd.f32 %v1840, %v1952
        %1954 = vmatmul.f32.gmra.mxu0 %v1084
        %v1955 = vpop.f32.mrf.mxu0
        %v1956 = vadd.f32 %v1843, %v1955
        %1957 = vmatmul.f32.gmra.mxu0 %v1093
        %v1958 = vpop.f32.mrf.mxu0
        %v1959 = vadd.f32 %v1846, %v1958
        %1960 = vmatmul.f32.gmra.mxu0 %v1102
        %v1961 = vpop.f32.mrf.mxu0
        %v1962 = vadd.f32 %v1849, %v1961
        %1963 = vmatmul.f32.gmra.mxu0 %v1111
        %v1964 = vpop.f32.mrf.mxu0
        %v1965 = vadd.f32 %v1852, %v1964
        %1966 = vmatmul.f32.gmra.mxu0 %v1120
        %v1967 = vpop.f32.mrf.mxu0
        %v1968 = vadd.f32 %v1855, %v1967
        %1969 = vmatmul.f32.gmra.mxu0 %v1129
        %v1970 = vpop.f32.mrf.mxu0
        %v1971 = vadd.f32 %v1858, %v1970
        %1972 = vmatmul.f32.gmra.mxu0 %v1138
        %v1973 = vpop.f32.mrf.mxu0
        %v1974 = vadd.f32 %v1861, %v1973
        %1975 = vmatmul.f32.gmra.mxu0 %v1147
        %v1976 = vpop.f32.mrf.mxu0
        %v1977 = vadd.f32 %v1864, %v1976
        %1978 = vmatmul.f32.gmra.mxu0 %v1156
        %v1979 = vpop.f32.mrf.mxu0
        %v1980 = vadd.f32 %v1867, %v1979
        %1981 = vdwg.mxu0
        %1982 = vmatpush.msra.mxu0 %v1271
        %1983 = vmatpush.msra.mxu0 %v1270
        %1984 = vmatpush.msra.mxu0 %v1269
        %1985 = vmatpush.msra.mxu0 %v1268
        %1986 = vmatpush.msra.mxu0 %v1267
        %1987 = vmatpush.msra.mxu0 %v1266
        %1988 = vmatpush.msra.mxu0 %v1265
        %1989 = vmatpush.msra.mxu0 %v1264
        %1990 = vmatpush.msra.mxu0 %v1263
        %1991 = vmatpush.msra.mxu0 %v1262
        %1992 = vmatpush.msra.mxu0 %v1261
        %1993 = vmatpush.msra.mxu0 %v1260
        %1994 = vmatpush.msra.mxu0 %v1259
        %1995 = vmatpush.msra.mxu0 %v1258
        %1996 = vmatpush.msra.mxu0 %v1257
        %1997 = vmatpush.msra.mxu0 %v1256
        %1998 = vmatmul.f32.gmra.mxu0 %v878
        %v1999 = vpop.f32.mrf.mxu0
        %v2000 = vadd.f32 %v1887, %v1999
        %2001 = vmatmul.f32.gmra.mxu0 %v887
        %v2002 = vpop.f32.mrf.mxu0
        %v2003 = vadd.f32 %v1890, %v2002
        %2004 = vmatmul.f32.gmra.mxu0 %v896
        %v2005 = vpop.f32.mrf.mxu0
        %v2006 = vadd.f32 %v1893, %v2005
        %2007 = vmatmul.f32.gmra.mxu0 %v905
        %v2008 = vpop.f32.mrf.mxu0
        %v2009 = vadd.f32 %v1896, %v2008
        %2010 = vmatmul.f32.gmra.mxu0 %v914
        %v2011 = vpop.f32.mrf.mxu0
        %v2012 = vadd.f32 %v1899, %v2011
        %2013 = vmatmul.f32.gmra.mxu0 %v923
        %v2014 = vpop.f32.mrf.mxu0
        %v2015 = vadd.f32 %v1902, %v2014
        %2016 = vmatmul.f32.gmra.mxu0 %v932
        %v2017 = vpop.f32.mrf.mxu0
        %v2018 = vadd.f32 %v1905, %v2017
        %2019 = vmatmul.f32.gmra.mxu0 %v941
        %v2020 = vpop.f32.mrf.mxu0
        %v2021 = vadd.f32 %v1908, %v2020
        %2022 = vmatmul.f32.gmra.mxu0 %v950
        %v2023 = vpop.f32.mrf.mxu0
        %v2024 = vadd.f32 %v1911, %v2023
        %2025 = vmatmul.f32.gmra.mxu0 %v959
        %v2026 = vpop.f32.mrf.mxu0
        %v2027 = vadd.f32 %v1914, %v2026
        %2028 = vmatmul.f32.gmra.mxu0 %v968
        %v2029 = vpop.f32.mrf.mxu0
        %v2030 = vadd.f32 %v1917, %v2029
        %2031 = vmatmul.f32.gmra.mxu0 %v977
        %v2032 = vpop.f32.mrf.mxu0
        %v2033 = vadd.f32 %v1920, %v2032
        %2034 = vmatmul.f32.gmra.mxu0 %v986
        %v2035 = vpop.f32.mrf.mxu0
        %v2036 = vadd.f32 %v1923, %v2035
        %2037 = vmatmul.f32.gmra.mxu0 %v995
        %v2038 = vpop.f32.mrf.mxu0
        %v2039 = vadd.f32 %v1926, %v2038
        %2040 = vmatmul.f32.gmra.mxu0 %v1004
        %v2041 = vpop.f32.mrf.mxu0
        %v2042 = vadd.f32 %v1929, %v2041
        %2043 = vmatmul.f32.gmra.mxu0 %v1013
        %v2044 = vpop.f32.mrf.mxu0
        %v2045 = vadd.f32 %v1932, %v2044
        %2046 = vmatmul.f32.gmra.mxu0 %v1022
        %v2047 = vpop.f32.mrf.mxu0
        %v2048 = vadd.f32 %v1935, %v2047
        %2049 = vmatmul.f32.gmra.mxu0 %v1031
        %v2050 = vpop.f32.mrf.mxu0
        %v2051 = vadd.f32 %v1938, %v2050
        %2052 = vmatmul.f32.gmra.mxu0 %v1040
        %v2053 = vpop.f32.mrf.mxu0
        %v2054 = vadd.f32 %v1941, %v2053
        %2055 = vmatmul.f32.gmra.mxu0 %v1049
        %v2056 = vpop.f32.mrf.mxu0
        %v2057 = vadd.f32 %v1944, %v2056
        %2058 = vmatmul.f32.gmra.mxu0 %v1058
        %v2059 = vpop.f32.mrf.mxu0
        %v2060 = vadd.f32 %v1947, %v2059
        %2061 = vmatmul.f32.gmra.mxu0 %v1067
        %v2062 = vpop.f32.mrf.mxu0
        %v2063 = vadd.f32 %v1950, %v2062
        %2064 = vmatmul.f32.gmra.mxu0 %v1076
        %v2065 = vpop.f32.mrf.mxu0
        %v2066 = vadd.f32 %v1953, %v2065
        %2067 = vmatmul.f32.gmra.mxu0 %v1085
        %v2068 = vpop.f32.mrf.mxu0
        %v2069 = vadd.f32 %v1956, %v2068
        %2070 = vmatmul.f32.gmra.mxu0 %v1094
        %v2071 = vpop.f32.mrf.mxu0
        %v2072 = vadd.f32 %v1959, %v2071
        %2073 = vmatmul.f32.gmra.mxu0 %v1103
        %v2074 = vpop.f32.mrf.mxu0
        %v2075 = vadd.f32 %v1962, %v2074
        %2076 = vmatmul.f32.gmra.mxu0 %v1112
        %v2077 = vpop.f32.mrf.mxu0
        %v2078 = vadd.f32 %v1965, %v2077
        %2079 = vmatmul.f32.gmra.mxu0 %v1121
        %v2080 = vpop.f32.mrf.mxu0
        %v2081 = vadd.f32 %v1968, %v2080
        %2082 = vmatmul.f32.gmra.mxu0 %v1130
        %v2083 = vpop.f32.mrf.mxu0
        %v2084 = vadd.f32 %v1971, %v2083
        %2085 = vmatmul.f32.gmra.mxu0 %v1139
        %v2086 = vpop.f32.mrf.mxu0
        %v2087 = vadd.f32 %v1974, %v2086
        %2088 = vmatmul.f32.gmra.mxu0 %v1148
        %v2089 = vpop.f32.mrf.mxu0
        %v2090 = vadd.f32 %v1977, %v2089
        %2091 = vmatmul.f32.gmra.mxu0 %v1157
        %v2092 = vpop.f32.mrf.mxu0
        %v2093 = vadd.f32 %v1980, %v2092
        %2094 = vdwg.mxu0
        %2095 = vmatpush.msra.mxu0 %v1287
        %2096 = vmatpush.msra.mxu0 %v1286
        %2097 = vmatpush.msra.mxu0 %v1285
        %2098 = vmatpush.msra.mxu0 %v1284
        %2099 = vmatpush.msra.mxu0 %v1283
        %2100 = vmatpush.msra.mxu0 %v1282
        %2101 = vmatpush.msra.mxu0 %v1281
        %2102 = vmatpush.msra.mxu0 %v1280
        %2103 = vmatpush.msra.mxu0 %v1279
        %2104 = vmatpush.msra.mxu0 %v1278
        %2105 = vmatpush.msra.mxu0 %v1277
        %2106 = vmatpush.msra.mxu0 %v1276
        %2107 = vmatpush.msra.mxu0 %v1275
        %2108 = vmatpush.msra.mxu0 %v1274
        %2109 = vmatpush.msra.mxu0 %v1273
        %2110 = vmatpush.msra.mxu0 %v1272
        %2111 = vmatmul.f32.gmra.mxu0 %v879
        %v2112 = vpop.f32.mrf.mxu0
        %v2113 = vadd.f32 %v2000, %v2112
        %2114 = vmatmul.f32.gmra.mxu0 %v888
        %v2115 = vpop.f32.mrf.mxu0
        %v2116 = vadd.f32 %v2003, %v2115
        %2117 = vmatmul.f32.gmra.mxu0 %v897
        %v2118 = vpop.f32.mrf.mxu0
        %v2119 = vadd.f32 %v2006, %v2118
        %2120 = vmatmul.f32.gmra.mxu0 %v906
        %v2121 = vpop.f32.mrf.mxu0
        %v2122 = vadd.f32 %v2009, %v2121
        %2123 = vmatmul.f32.gmra.mxu0 %v915
        %v2124 = vpop.f32.mrf.mxu0
        %v2125 = vadd.f32 %v2012, %v2124
        %2126 = vmatmul.f32.gmra.mxu0 %v924
        %v2127 = vpop.f32.mrf.mxu0
        %v2128 = vadd.f32 %v2015, %v2127
        %2129 = vmatmul.f32.gmra.mxu0 %v933
        %v2130 = vpop.f32.mrf.mxu0
        %v2131 = vadd.f32 %v2018, %v2130
        %2132 = vmatmul.f32.gmra.mxu0 %v942
        %v2133 = vpop.f32.mrf.mxu0
        %v2134 = vadd.f32 %v2021, %v2133
        %2135 = vmatmul.f32.gmra.mxu0 %v951
        %v2136 = vpop.f32.mrf.mxu0
        %v2137 = vadd.f32 %v2024, %v2136
        %2138 = vmatmul.f32.gmra.mxu0 %v960
        %v2139 = vpop.f32.mrf.mxu0
        %v2140 = vadd.f32 %v2027, %v2139
        %2141 = vmatmul.f32.gmra.mxu0 %v969
        %v2142 = vpop.f32.mrf.mxu0
        %v2143 = vadd.f32 %v2030, %v2142
        %2144 = vmatmul.f32.gmra.mxu0 %v978
        %v2145 = vpop.f32.mrf.mxu0
        %v2146 = vadd.f32 %v2033, %v2145
        %2147 = vmatmul.f32.gmra.mxu0 %v987
        %v2148 = vpop.f32.mrf.mxu0
        %v2149 = vadd.f32 %v2036, %v2148
        %2150 = vmatmul.f32.gmra.mxu0 %v996
        %v2151 = vpop.f32.mrf.mxu0
        %v2152 = vadd.f32 %v2039, %v2151
        %2153 = vmatmul.f32.gmra.mxu0 %v1005
        %v2154 = vpop.f32.mrf.mxu0
        %v2155 = vadd.f32 %v2042, %v2154
        %2156 = vmatmul.f32.gmra.mxu0 %v1014
        %v2157 = vpop.f32.mrf.mxu0
        %v2158 = vadd.f32 %v2045, %v2157
        %2159 = vmatmul.f32.gmra.mxu0 %v1023
        %v2160 = vpop.f32.mrf.mxu0
        %v2161 = vadd.f32 %v2048, %v2160
        %2162 = vmatmul.f32.gmra.mxu0 %v1032
        %v2163 = vpop.f32.mrf.mxu0
        %v2164 = vadd.f32 %v2051, %v2163
        %2165 = vmatmul.f32.gmra.mxu0 %v1041
        %v2166 = vpop.f32.mrf.mxu0
        %v2167 = vadd.f32 %v2054, %v2166
        %2168 = vmatmul.f32.gmra.mxu0 %v1050
        %v2169 = vpop.f32.mrf.mxu0
        %v2170 = vadd.f32 %v2057, %v2169
        %2171 = vmatmul.f32.gmra.mxu0 %v1059
        %v2172 = vpop.f32.mrf.mxu0
        %v2173 = vadd.f32 %v2060, %v2172
        %2174 = vmatmul.f32.gmra.mxu0 %v1068
        %v2175 = vpop.f32.mrf.mxu0
        %v2176 = vadd.f32 %v2063, %v2175
        %2177 = vmatmul.f32.gmra.mxu0 %v1077
        %v2178 = vpop.f32.mrf.mxu0
        %v2179 = vadd.f32 %v2066, %v2178
        %2180 = vmatmul.f32.gmra.mxu0 %v1086
        %v2181 = vpop.f32.mrf.mxu0
        %v2182 = vadd.f32 %v2069, %v2181
        %2183 = vmatmul.f32.gmra.mxu0 %v1095
        %v2184 = vpop.f32.mrf.mxu0
        %v2185 = vadd.f32 %v2072, %v2184
        %2186 = vmatmul.f32.gmra.mxu0 %v1104
        %v2187 = vpop.f32.mrf.mxu0
        %v2188 = vadd.f32 %v2075, %v2187
        %2189 = vmatmul.f32.gmra.mxu0 %v1113
        %v2190 = vpop.f32.mrf.mxu0
        %v2191 = vadd.f32 %v2078, %v2190
        %2192 = vmatmul.f32.gmra.mxu0 %v1122
        %v2193 = vpop.f32.mrf.mxu0
        %v2194 = vadd.f32 %v2081, %v2193
        %2195 = vmatmul.f32.gmra.mxu0 %v1131
        %v2196 = vpop.f32.mrf.mxu0
        %v2197 = vadd.f32 %v2084, %v2196
        %2198 = vmatmul.f32.gmra.mxu0 %v1140
        %v2199 = vpop.f32.mrf.mxu0
        %v2200 = vadd.f32 %v2087, %v2199
        %2201 = vmatmul.f32.gmra.mxu0 %v1149
        %v2202 = vpop.f32.mrf.mxu0
        %v2203 = vadd.f32 %v2090, %v2202
        %2204 = vmatmul.f32.gmra.mxu0 %v1158
        %v2205 = vpop.f32.mrf.mxu0
        %v2206 = vadd.f32 %v2093, %v2205
        %2207 = vdwg.mxu0
        %2208 = vmatpush.msra.mxu0 %v1303
        %2209 = vmatpush.msra.mxu0 %v1302
        %2210 = vmatpush.msra.mxu0 %v1301
        %2211 = vmatpush.msra.mxu0 %v1300
        %2212 = vmatpush.msra.mxu0 %v1299
        %2213 = vmatpush.msra.mxu0 %v1298
        %2214 = vmatpush.msra.mxu0 %v1297
        %2215 = vmatpush.msra.mxu0 %v1296
        %2216 = vmatpush.msra.mxu0 %v1295
        %2217 = vmatpush.msra.mxu0 %v1294
        %2218 = vmatpush.msra.mxu0 %v1293
        %2219 = vmatpush.msra.mxu0 %v1292
        %2220 = vmatpush.msra.mxu0 %v1291
        %2221 = vmatpush.msra.mxu0 %v1290
        %2222 = vmatpush.msra.mxu0 %v1289
        %2223 = vmatpush.msra.mxu0 %v1288
        %2224 = vmatmul.f32.gmra.mxu0 %v880
        %v2225 = vpop.f32.mrf.mxu0
        %v2226 = vadd.f32 %v2113, %v2225
        %2227 = vmatmul.f32.gmra.mxu0 %v889
        %v2228 = vpop.f32.mrf.mxu0
        %v2229 = vadd.f32 %v2116, %v2228
        %2230 = vmatmul.f32.gmra.mxu0 %v898
        %v2231 = vpop.f32.mrf.mxu0
        %v2232 = vadd.f32 %v2119, %v2231
        %2233 = vmatmul.f32.gmra.mxu0 %v907
        %v2234 = vpop.f32.mrf.mxu0
        %v2235 = vadd.f32 %v2122, %v2234
        %2236 = vmatmul.f32.gmra.mxu0 %v916
        %v2237 = vpop.f32.mrf.mxu0
        %v2238 = vadd.f32 %v2125, %v2237
        %2239 = vmatmul.f32.gmra.mxu0 %v925
        %v2240 = vpop.f32.mrf.mxu0
        %v2241 = vadd.f32 %v2128, %v2240
        %2242 = vmatmul.f32.gmra.mxu0 %v934
        %v2243 = vpop.f32.mrf.mxu0
        %v2244 = vadd.f32 %v2131, %v2243
        %2245 = vmatmul.f32.gmra.mxu0 %v943
        %v2246 = vpop.f32.mrf.mxu0
        %v2247 = vadd.f32 %v2134, %v2246
        %2248 = vmatmul.f32.gmra.mxu0 %v952
        %v2249 = vpop.f32.mrf.mxu0
        %v2250 = vadd.f32 %v2137, %v2249
        %2251 = vmatmul.f32.gmra.mxu0 %v961
        %v2252 = vpop.f32.mrf.mxu0
        %v2253 = vadd.f32 %v2140, %v2252
        %2254 = vmatmul.f32.gmra.mxu0 %v970
        %v2255 = vpop.f32.mrf.mxu0
        %v2256 = vadd.f32 %v2143, %v2255
        %2257 = vmatmul.f32.gmra.mxu0 %v979
        %v2258 = vpop.f32.mrf.mxu0
        %v2259 = vadd.f32 %v2146, %v2258
        %2260 = vmatmul.f32.gmra.mxu0 %v988
        %v2261 = vpop.f32.mrf.mxu0
        %v2262 = vadd.f32 %v2149, %v2261
        %2263 = vmatmul.f32.gmra.mxu0 %v997
        %v2264 = vpop.f32.mrf.mxu0
        %v2265 = vadd.f32 %v2152, %v2264
        %2266 = vmatmul.f32.gmra.mxu0 %v1006
        %v2267 = vpop.f32.mrf.mxu0
        %v2268 = vadd.f32 %v2155, %v2267
        %2269 = vmatmul.f32.gmra.mxu0 %v1015
        %v2270 = vpop.f32.mrf.mxu0
        %v2271 = vadd.f32 %v2158, %v2270
        %2272 = vmatmul.f32.gmra.mxu0 %v1024
        %v2273 = vpop.f32.mrf.mxu0
        %v2274 = vadd.f32 %v2161, %v2273
        %2275 = vmatmul.f32.gmra.mxu0 %v1033
        %v2276 = vpop.f32.mrf.mxu0
        %v2277 = vadd.f32 %v2164, %v2276
        %2278 = vmatmul.f32.gmra.mxu0 %v1042
        %v2279 = vpop.f32.mrf.mxu0
        %v2280 = vadd.f32 %v2167, %v2279
        %2281 = vmatmul.f32.gmra.mxu0 %v1051
        %v2282 = vpop.f32.mrf.mxu0
        %v2283 = vadd.f32 %v2170, %v2282
        %2284 = vmatmul.f32.gmra.mxu0 %v1060
        %v2285 = vpop.f32.mrf.mxu0
        %v2286 = vadd.f32 %v2173, %v2285
        %2287 = vmatmul.f32.gmra.mxu0 %v1069
        %v2288 = vpop.f32.mrf.mxu0
        %v2289 = vadd.f32 %v2176, %v2288
        %2290 = vmatmul.f32.gmra.mxu0 %v1078
        %v2291 = vpop.f32.mrf.mxu0
        %v2292 = vadd.f32 %v2179, %v2291
        %2293 = vmatmul.f32.gmra.mxu0 %v1087
        %v2294 = vpop.f32.mrf.mxu0
        %v2295 = vadd.f32 %v2182, %v2294
        %2296 = vmatmul.f32.gmra.mxu0 %v1096
        %v2297 = vpop.f32.mrf.mxu0
        %v2298 = vadd.f32 %v2185, %v2297
        %2299 = vmatmul.f32.gmra.mxu0 %v1105
        %v2300 = vpop.f32.mrf.mxu0
        %v2301 = vadd.f32 %v2188, %v2300
        %2302 = vmatmul.f32.gmra.mxu0 %v1114
        %v2303 = vpop.f32.mrf.mxu0
        %v2304 = vadd.f32 %v2191, %v2303
        %2305 = vmatmul.f32.gmra.mxu0 %v1123
        %v2306 = vpop.f32.mrf.mxu0
        %v2307 = vadd.f32 %v2194, %v2306
        %2308 = vmatmul.f32.gmra.mxu0 %v1132
        %v2309 = vpop.f32.mrf.mxu0
        %v2310 = vadd.f32 %v2197, %v2309
        %2311 = vmatmul.f32.gmra.mxu0 %v1141
        %v2312 = vpop.f32.mrf.mxu0
        %v2313 = vadd.f32 %v2200, %v2312
        %2314 = vmatmul.f32.gmra.mxu0 %v1150
        %v2315 = vpop.f32.mrf.mxu0
        %v2316 = vadd.f32 %v2203, %v2315
        %2317 = vmatmul.f32.gmra.mxu0 %v1159
        %v2318 = vpop.f32.mrf.mxu0
        %v2319 = vadd.f32 %v2206, %v2318
        %2320 = vdwg.mxu0
        %v2321 = vld [vmem:[%s2] sm:$0x1]
        %v2323 = vperm.slane %v2321, 0
        %v2325 = vmul.f32 %v2226, %v2323
        %v2326 = vmul.f32 %v2229, %v2323
        %v2327 = vmul.f32 %v2232, %v2323
        %v2328 = vmul.f32 %v2235, %v2323
        %v2329 = vmul.f32 %v2238, %v2323
        %v2330 = vmul.f32 %v2241, %v2323
        %v2331 = vmul.f32 %v2244, %v2323
        %v2332 = vmul.f32 %v2247, %v2323
        %v2333 = vmul.f32 %v2250, %v2323
        %v2334 = vmul.f32 %v2253, %v2323
        %v2335 = vmul.f32 %v2256, %v2323
        %v2336 = vmul.f32 %v2259, %v2323
        %v2337 = vmul.f32 %v2262, %v2323
        %v2338 = vmul.f32 %v2265, %v2323
        %v2339 = vmul.f32 %v2268, %v2323
        %v2340 = vmul.f32 %v2271, %v2323
        %v2341 = vmul.f32 %v2274, %v2323
        %v2342 = vmul.f32 %v2277, %v2323
        %v2343 = vmul.f32 %v2280, %v2323
        %v2344 = vmul.f32 %v2283, %v2323
        %v2345 = vmul.f32 %v2286, %v2323
        %v2346 = vmul.f32 %v2289, %v2323
        %v2347 = vmul.f32 %v2292, %v2323
        %v2348 = vmul.f32 %v2295, %v2323
        %v2349 = vmul.f32 %v2298, %v2323
        %v2350 = vmul.f32 %v2301, %v2323
        %v2351 = vmul.f32 %v2304, %v2323
        %v2352 = vmul.f32 %v2307, %v2323
        %v2353 = vmul.f32 %v2310, %v2323
        %v2354 = vmul.f32 %v2313, %v2323
        %v2355 = vmul.f32 %v2316, %v2323
        %v2356 = vmul.f32 %v2319, %v2323
        %v2357 = vld [vmem:[%s3] sm:$0x1]
        %v2359 = vperm.slane %v2357, 0
        %v2361 = vadd.f32 %v2325, %v2359
        %v2362 = vadd.f32 %v2326, %v2359
        %v2363 = vadd.f32 %v2327, %v2359
        %v2364 = vadd.f32 %v2328, %v2359
        %v2365 = vadd.f32 %v2329, %v2359
        %v2366 = vadd.f32 %v2330, %v2359
        %v2367 = vadd.f32 %v2331, %v2359
        %v2368 = vadd.f32 %v2332, %v2359
        %v2369 = vadd.f32 %v2333, %v2359
        %v2370 = vadd.f32 %v2334, %v2359
        %v2371 = vadd.f32 %v2335, %v2359
        %v2372 = vadd.f32 %v2336, %v2359
        %v2373 = vadd.f32 %v2337, %v2359
        %v2374 = vadd.f32 %v2338, %v2359
        %v2375 = vadd.f32 %v2339, %v2359
        %v2376 = vadd.f32 %v2340, %v2359
        %v2377 = vadd.f32 %v2341, %v2359
        %v2378 = vadd.f32 %v2342, %v2359
        %v2379 = vadd.f32 %v2343, %v2359
        %v2380 = vadd.f32 %v2344, %v2359
        %v2381 = vadd.f32 %v2345, %v2359
        %v2382 = vadd.f32 %v2346, %v2359
        %v2383 = vadd.f32 %v2347, %v2359
        %v2384 = vadd.f32 %v2348, %v2359
        %v2385 = vadd.f32 %v2349, %v2359
        %v2386 = vadd.f32 %v2350, %v2359
        %v2387 = vadd.f32 %v2351, %v2359
        %v2388 = vadd.f32 %v2352, %v2359
        %v2389 = vadd.f32 %v2353, %v2359
        %v2390 = vadd.f32 %v2354, %v2359
        %v2391 = vadd.f32 %v2355, %v2359
        %v2392 = vadd.f32 %v2356, %v2359
        %v2393 = vmax.f32 %v2361, 0.0
        %v2394 = vmax.f32 %v2362, 0.0
        %v2395 = vmax.f32 %v2363, 0.0
        %v2396 = vmax.f32 %v2364, 0.0
        %v2397 = vmax.f32 %v2365, 0.0
        %v2398 = vmax.f32 %v2366, 0.0
        %v2399 = vmax.f32 %v2367, 0.0
        %v2400 = vmax.f32 %v2368, 0.0
        %v2401 = vmax.f32 %v2369, 0.0
        %v2402 = vmax.f32 %v2370, 0.0
        %v2403 = vmax.f32 %v2371, 0.0
        %v2404 = vmax.f32 %v2372, 0.0
        %v2405 = vmax.f32 %v2373, 0.0
        %v2406 = vmax.f32 %v2374, 0.0
        %v2407 = vmax.f32 %v2375, 0.0
        %v2408 = vmax.f32 %v2376, 0.0
        %v2409 = vmax.f32 %v2377, 0.0
        %v2410 = vmax.f32 %v2378, 0.0
        %v2411 = vmax.f32 %v2379, 0.0
        %v2412 = vmax.f32 %v2380, 0.0
        %v2413 = vmax.f32 %v2381, 0.0
        %v2414 = vmax.f32 %v2382, 0.0
        %v2415 = vmax.f32 %v2383, 0.0
        %v2416 = vmax.f32 %v2384, 0.0
        %v2417 = vmax.f32 %v2385, 0.0
        %v2418 = vmax.f32 %v2386, 0.0
        %v2419 = vmax.f32 %v2387, 0.0
        %v2420 = vmax.f32 %v2388, 0.0
        %v2421 = vmax.f32 %v2389, 0.0
        %v2422 = vmax.f32 %v2390, 0.0
        %v2423 = vmax.f32 %v2391, 0.0
        %v2424 = vmax.f32 %v2392, 0.0
        %2425 = vst [vmem:[#allocation3] sm:$0xff] 0.0
        %2426 = vst [vmem:[#allocation3 + $0x8] sm:$0xff] 0.0
        %2427 = vst [vmem:[#allocation3 + $0x10] sm:$0x3] 0.0
        %s2428 = scalar_lea.vmem [#allocation3], 408
        %2429 = vst [vmem:[%s2428] sm:$0xff] 0.0
        %2430 = vst [vmem:[%s2428 + $0x8] sm:$0xff] 0.0
        %2431 = vst [vmem:[%s2428 + $0x10] sm:$0x3] 0.0
        %2432 = vst [vmem:[#allocation3] sm:$0x1] 0.0
        %2433 = vst [vmem:[#allocation3 + $0x18] sm:$0x1] 0.0
        %2434 = vst [vmem:[#allocation3 + $0x30] sm:$0x1] 0.0
        %2435 = vst [vmem:[#allocation3 + $0x48] sm:$0x1] 0.0
        %2436 = vst [vmem:[#allocation3 + $0x60] sm:$0x1] 0.0
        %2437 = vst [vmem:[#allocation3 + $0x78] sm:$0x1] 0.0
        %2438 = vst [vmem:[#allocation3 + $0x90] sm:$0x1] 0.0
        %2439 = vst [vmem:[#allocation3 + $0xa8] sm:$0x1] 0.0
        %2440 = vst [vmem:[#allocation3 + $0xc0] sm:$0x1] 0.0
        %2441 = vst [vmem:[#allocation3 + $0xd8] sm:$0x1] 0.0
        %2442 = vst [vmem:[#allocation3 + $0xf0] sm:$0x1] 0.0
        %2443 = vst [vmem:[#allocation3 + $0x108] sm:$0x1] 0.0
        %2444 = vst [vmem:[#allocation3 + $0x120] sm:$0x1] 0.0
        %2445 = vst [vmem:[#allocation3 + $0x138] sm:$0x1] 0.0
        %2446 = vst [vmem:[#allocation3 + $0x150] sm:$0x1] 0.0
        %2447 = vst [vmem:[#allocation3 + $0x168] sm:$0x1] 0.0
        %2448 = vst [vmem:[#allocation3 + $0x180] sm:$0x1] 0.0
        %2449 = vst [vmem:[#allocation3 + $0x198] sm:$0x1] 0.0
        %2450 = vst [vmem:[#allocation3 + $0x11] sm:$0x1] 0.0
        %2451 = vst [vmem:[#allocation3 + $0x29] sm:$0x1] 0.0
        %2452 = vst [vmem:[#allocation3 + $0x41] sm:$0x1] 0.0
        %2453 = vst [vmem:[#allocation3 + $0x59] sm:$0x1] 0.0
        %2454 = vst [vmem:[#allocation3 + $0x71] sm:$0x1] 0.0
        %2455 = vst [vmem:[#allocation3 + $0x89] sm:$0x1] 0.0
        %2456 = vst [vmem:[#allocation3 + $0xa1] sm:$0x1] 0.0
        %2457 = vst [vmem:[#allocation3 + $0xb9] sm:$0x1] 0.0
        %2458 = vst [vmem:[#allocation3 + $0xd1] sm:$0x1] 0.0
        %2459 = vst [vmem:[#allocation3 + $0xe9] sm:$0x1] 0.0
        %2460 = vst [vmem:[#allocation3 + $0x101] sm:$0x1] 0.0
        %2461 = vst [vmem:[#allocation3 + $0x119] sm:$0x1] 0.0
        %2462 = vst [vmem:[#allocation3 + $0x131] sm:$0x1] 0.0
        %2463 = vst [vmem:[#allocation3 + $0x149] sm:$0x1] 0.0
        %2464 = vst [vmem:[#allocation3 + $0x161] sm:$0x1] 0.0
        %2465 = vst [vmem:[#allocation3 + $0x179] sm:$0x1] 0.0
        %2466 = vst [vmem:[#allocation3 + $0x191] sm:$0x1] 0.0
        %2467 = vst [vmem:[#allocation3 + $0x1a9] sm:$0x1] 0.0
        %s2468 = scalar_lea.vmem [#allocation3], 24
        %2469 = vst [vmem:[%s2468 + $0x1] sm:$0xff] %v2393
        %2470 = vst [vmem:[%s2468 + $0x9] sm:$0xff] %v2394
        %2471 = vst [vmem:[%s2468 + $0x19] sm:$0xff] %v2395
        %2472 = vst [vmem:[%s2468 + $0x21] sm:$0xff] %v2396
        %2473 = vst [vmem:[%s2468 + $0x31] sm:$0xff] %v2397
        %2474 = vst [vmem:[%s2468 + $0x39] sm:$0xff] %v2398
        %2475 = vst [vmem:[%s2468 + $0x49] sm:$0xff] %v2399
        %2476 = vst [vmem:[%s2468 + $0x51] sm:$0xff] %v2400
        %2477 = vst [vmem:[%s2468 + $0x61] sm:$0xff] %v2401
        %2478 = vst [vmem:[%s2468 + $0x69] sm:$0xff] %v2402
        %2479 = vst [vmem:[%s2468 + $0x79] sm:$0xff] %v2403
        %2480 = vst [vmem:[%s2468 + $0x81] sm:$0xff] %v2404
        %2481 = vst [vmem:[%s2468 + $0x91] sm:$0xff] %v2405
        %2482 = vst [vmem:[%s2468 + $0x99] sm:$0xff] %v2406
        %2483 = vst [vmem:[%s2468 + $0xa9] sm:$0xff] %v2407
        %2484 = vst [vmem:[%s2468 + $0xb1] sm:$0xff] %v2408
        %2485 = vst [vmem:[%s2468 + $0xc1] sm:$0xff] %v2409
        %2486 = vst [vmem:[%s2468 + $0xc9] sm:$0xff] %v2410
        %2487 = vst [vmem:[%s2468 + $0xd9] sm:$0xff] %v2411
        %2488 = vst [vmem:[%s2468 + $0xe1] sm:$0xff] %v2412
        %2489 = vst [vmem:[%s2468 + $0xf1] sm:$0xff] %v2413
        %2490 = vst [vmem:[%s2468 + $0xf9] sm:$0xff] %v2414
        %2491 = vst [vmem:[%s2468 + $0x109] sm:$0xff] %v2415
        %2492 = vst [vmem:[%s2468 + $0x111] sm:$0xff] %v2416
        %2493 = vst [vmem:[%s2468 + $0x121] sm:$0xff] %v2417
        %2494 = vst [vmem:[%s2468 + $0x129] sm:$0xff] %v2418
        %2495 = vst [vmem:[%s2468 + $0x139] sm:$0xff] %v2419
        %2496 = vst [vmem:[%s2468 + $0x141] sm:$0xff] %v2420
        %2497 = vst [vmem:[%s2468 + $0x151] sm:$0xff] %v2421
        %2498 = vst [vmem:[%s2468 + $0x159] sm:$0xff] %v2422
        %2499 = vst [vmem:[%s2468 + $0x169] sm:$0xff] %v2423
        %2500 = vst [vmem:[%s2468 + $0x171] sm:$0xff] %v2424
        %v2501 = vld [vmem:[#allocation3] sm:$0xff]
        %v2502 = vld [vmem:[#allocation3 + $0x8] sm:$0xff]
        %v2503 = vld [vmem:[#allocation3 + $0x18] sm:$0xff]
        %v2504 = vld [vmem:[#allocation3 + $0x20] sm:$0xff]
        %v2505 = vld [vmem:[#allocation3 + $0x30] sm:$0xff]
        %v2506 = vld [vmem:[#allocation3 + $0x38] sm:$0xff]
        %v2507 = vld [vmem:[#allocation3 + $0x48] sm:$0xff]
        %v2508 = vld [vmem:[#allocation3 + $0x50] sm:$0xff]
        %v2509 = vld [vmem:[#allocation3 + $0x60] sm:$0xff]
        %v2510 = vld [vmem:[#allocation3 + $0x68] sm:$0xff]
        %v2511 = vld [vmem:[#allocation3 + $0x78] sm:$0xff]
        %v2512 = vld [vmem:[#allocation3 + $0x80] sm:$0xff]
        %v2513 = vld [vmem:[#allocation3 + $0x90] sm:$0xff]
        %v2514 = vld [vmem:[#allocation3 + $0x98] sm:$0xff]
        %v2515 = vld [vmem:[#allocation3 + $0xa8] sm:$0xff]
        %v2516 = vld [vmem:[#allocation3 + $0xb0] sm:$0xff]
        %v2517 = vld [vmem:[#allocation3 + $0xc0] sm:$0xff]
        %v2518 = vld [vmem:[#allocation3 + $0xc8] sm:$0xff]
        %v2519 = vld [vmem:[#allocation3 + $0xd8] sm:$0xff]
        %v2520 = vld [vmem:[#allocation3 + $0xe0] sm:$0xff]
        %v2521 = vld [vmem:[#allocation3 + $0xf0] sm:$0xff]
        %v2522 = vld [vmem:[#allocation3 + $0xf8] sm:$0xff]
        %v2523 = vld [vmem:[#allocation3 + $0x108] sm:$0xff]
        %v2524 = vld [vmem:[#allocation3 + $0x110] sm:$0xff]
        %v2525 = vld [vmem:[#allocation3 + $0x120] sm:$0xff]
        %v2526 = vld [vmem:[#allocation3 + $0x128] sm:$0xff]
        %v2527 = vld [vmem:[#allocation3 + $0x138] sm:$0xff]
        %v2528 = vld [vmem:[#allocation3 + $0x140] sm:$0xff]
        %v2529 = vld [vmem:[#allocation3 + $0x150] sm:$0xff]
        %v2530 = vld [vmem:[#allocation3 + $0x158] sm:$0xff]
        %v2531 = vld [vmem:[#allocation3 + $0x168] sm:$0xff]
        %v2532 = vld [vmem:[#allocation3 + $0x170] sm:$0xff]
        %2533 = vst [vmem:[#allocation4] sm:$0xff] %v2501
        %2534 = vst [vmem:[#allocation4 + $0x48] sm:$0xff] %v2502
        %2535 = vst [vmem:[#allocation4 + $0x90] sm:$0xff] %v2503
        %2536 = vst [vmem:[#allocation4 + $0xd8] sm:$0xff] %v2504
        %2537 = vst [vmem:[#allocation4 + $0x120] sm:$0xff] %v2505
        %2538 = vst [vmem:[#allocation4 + $0x168] sm:$0xff] %v2506
        %2539 = vst [vmem:[#allocation4 + $0x1b0] sm:$0xff] %v2507
        %2540 = vst [vmem:[#allocation4 + $0x1f8] sm:$0xff] %v2508
        %2541 = vst [vmem:[#allocation4 + $0x240] sm:$0xff] %v2509
        %2542 = vst [vmem:[#allocation4 + $0x288] sm:$0xff] %v2510
        %2543 = vst [vmem:[#allocation4 + $0x2d0] sm:$0xff] %v2511
        %2544 = vst [vmem:[#allocation4 + $0x318] sm:$0xff] %v2512
        %2545 = vst [vmem:[#allocation4 + $0x360] sm:$0xff] %v2513
        %2546 = vst [vmem:[#allocation4 + $0x3a8] sm:$0xff] %v2514
        %2547 = vst [vmem:[#allocation4 + $0x3f0] sm:$0xff] %v2515
        %2548 = vst [vmem:[#allocation4 + $0x438] sm:$0xff] %v2516
        %2549 = vst [vmem:[#allocation4 + $0x480] sm:$0xff] %v2517
        %2550 = vst [vmem:[#allocation4 + $0x4c8] sm:$0xff] %v2518
        %2551 = vst [vmem:[#allocation4 + $0x510] sm:$0xff] %v2519
        %2552 = vst [vmem:[#allocation4 + $0x558] sm:$0xff] %v2520
        %2553 = vst [vmem:[#allocation4 + $0x5a0] sm:$0xff] %v2521
        %2554 = vst [vmem:[#allocation4 + $0x5e8] sm:$0xff] %v2522
        %2555 = vst [vmem:[#allocation4 + $0x630] sm:$0xff] %v2523
        %2556 = vst [vmem:[#allocation4 + $0x678] sm:$0xff] %v2524
        %2557 = vst [vmem:[#allocation4 + $0x6c0] sm:$0xff] %v2525
        %2558 = vst [vmem:[#allocation4 + $0x708] sm:$0xff] %v2526
        %2559 = vst [vmem:[#allocation4 + $0x750] sm:$0xff] %v2527
        %2560 = vst [vmem:[#allocation4 + $0x798] sm:$0xff] %v2528
        %2561 = vst [vmem:[#allocation4 + $0x7e0] sm:$0xff] %v2529
        %2562 = vst [vmem:[#allocation4 + $0x828] sm:$0xff] %v2530
        %2563 = vst [vmem:[#allocation4 + $0x870] sm:$0xff] %v2531
        %2564 = vst [vmem:[#allocation4 + $0x8b8] sm:$0xff] %v2532
        %v2565 = vld [vmem:[#allocation3 + $0x1] sm:$0xff]
        %v2566 = vld [vmem:[#allocation3 + $0x9] sm:$0xff]
        %v2567 = vld [vmem:[#allocation3 + $0x19] sm:$0xff]
        %v2568 = vld [vmem:[#allocation3 + $0x21] sm:$0xff]
        %v2569 = vld [vmem:[#allocation3 + $0x31] sm:$0xff]
        %v2570 = vld [vmem:[#allocation3 + $0x39] sm:$0xff]
        %v2571 = vld [vmem:[#allocation3 + $0x49] sm:$0xff]
        %v2572 = vld [vmem:[#allocation3 + $0x51] sm:$0xff]
        %v2573 = vld [vmem:[#allocation3 + $0x61] sm:$0xff]
        %v2574 = vld [vmem:[#allocation3 + $0x69] sm:$0xff]
        %v2575 = vld [vmem:[#allocation3 + $0x79] sm:$0xff]
        %v2576 = vld [vmem:[#allocation3 + $0x81] sm:$0xff]
        %v2577 = vld [vmem:[#allocation3 + $0x91] sm:$0xff]
        %v2578 = vld [vmem:[#allocation3 + $0x99] sm:$0xff]
        %v2579 = vld [vmem:[#allocation3 + $0xa9] sm:$0xff]
        %v2580 = vld [vmem:[#allocation3 + $0xb1] sm:$0xff]
        %v2581 = vld [vmem:[#allocation3 + $0xc1] sm:$0xff]
        %v2582 = vld [vmem:[#allocation3 + $0xc9] sm:$0xff]
        %v2583 = vld [vmem:[#allocation3 + $0xd9] sm:$0xff]
        %v2584 = vld [vmem:[#allocation3 + $0xe1] sm:$0xff]
        %v2585 = vld [vmem:[#allocation3 + $0xf1] sm:$0xff]
        %v2586 = vld [vmem:[#allocation3 + $0xf9] sm:$0xff]
        %v2587 = vld [vmem:[#allocation3 + $0x109] sm:$0xff]
        %v2588 = vld [vmem:[#allocation3 + $0x111] sm:$0xff]
        %v2589 = vld [vmem:[#allocation3 + $0x121] sm:$0xff]
        %v2590 = vld [vmem:[#allocation3 + $0x129] sm:$0xff]
        %v2591 = vld [vmem:[#allocation3 + $0x139] sm:$0xff]
        %v2592 = vld [vmem:[#allocation3 + $0x141] sm:$0xff]
        %v2593 = vld [vmem:[#allocation3 + $0x151] sm:$0xff]
        %v2594 = vld [vmem:[#allocation3 + $0x159] sm:$0xff]
        %v2595 = vld [vmem:[#allocation3 + $0x169] sm:$0xff]
        %v2596 = vld [vmem:[#allocation3 + $0x171] sm:$0xff]
        %2597 = vst [vmem:[#allocation4 + $0x8] sm:$0xff] %v2565
        %2598 = vst [vmem:[#allocation4 + $0x50] sm:$0xff] %v2566
        %2599 = vst [vmem:[#allocation4 + $0x98] sm:$0xff] %v2567
        %2600 = vst [vmem:[#allocation4 + $0xe0] sm:$0xff] %v2568
        %2601 = vst [vmem:[#allocation4 + $0x128] sm:$0xff] %v2569
        %2602 = vst [vmem:[#allocation4 + $0x170] sm:$0xff] %v2570
        %2603 = vst [vmem:[#allocation4 + $0x1b8] sm:$0xff] %v2571
        %2604 = vst [vmem:[#allocation4 + $0x200] sm:$0xff] %v2572
        %2605 = vst [vmem:[#allocation4 + $0x248] sm:$0xff] %v2573
        %2606 = vst [vmem:[#allocation4 + $0x290] sm:$0xff] %v2574
        %2607 = vst [vmem:[#allocation4 + $0x2d8] sm:$0xff] %v2575
        %2608 = vst [vmem:[#allocation4 + $0x320] sm:$0xff] %v2576
        %2609 = vst [vmem:[#allocation4 + $0x368] sm:$0xff] %v2577
        %2610 = vst [vmem:[#allocation4 + $0x3b0] sm:$0xff] %v2578
        %2611 = vst [vmem:[#allocation4 + $0x3f8] sm:$0xff] %v2579
        %2612 = vst [vmem:[#allocation4 + $0x440] sm:$0xff] %v2580
        %2613 = vst [vmem:[#allocation4 + $0x488] sm:$0xff] %v2581
        %2614 = vst [vmem:[#allocation4 + $0x4d0] sm:$0xff] %v2582
        %2615 = vst [vmem:[#allocation4 + $0x518] sm:$0xff] %v2583
        %2616 = vst [vmem:[#allocation4 + $0x560] sm:$0xff] %v2584
        %2617 = vst [vmem:[#allocation4 + $0x5a8] sm:$0xff] %v2585
        %2618 = vst [vmem:[#allocation4 + $0x5f0] sm:$0xff] %v2586
        %2619 = vst [vmem:[#allocation4 + $0x638] sm:$0xff] %v2587
        %2620 = vst [vmem:[#allocation4 + $0x680] sm:$0xff] %v2588
        %2621 = vst [vmem:[#allocation4 + $0x6c8] sm:$0xff] %v2589
        %2622 = vst [vmem:[#allocation4 + $0x710] sm:$0xff] %v2590
        %2623 = vst [vmem:[#allocation4 + $0x758] sm:$0xff] %v2591
        %2624 = vst [vmem:[#allocation4 + $0x7a0] sm:$0xff] %v2592
        %2625 = vst [vmem:[#allocation4 + $0x7e8] sm:$0xff] %v2593
        %2626 = vst [vmem:[#allocation4 + $0x830] sm:$0xff] %v2594
        %2627 = vst [vmem:[#allocation4 + $0x878] sm:$0xff] %v2595
        %2628 = vst [vmem:[#allocation4 + $0x8c0] sm:$0xff] %v2596
        %v2629 = vld [vmem:[#allocation3 + $0x2] sm:$0xff]
        %v2630 = vld [vmem:[#allocation3 + $0xa] sm:$0xff]
        %v2631 = vld [vmem:[#allocation3 + $0x1a] sm:$0xff]
        %v2632 = vld [vmem:[#allocation3 + $0x22] sm:$0xff]
        %v2633 = vld [vmem:[#allocation3 + $0x32] sm:$0xff]
        %v2634 = vld [vmem:[#allocation3 + $0x3a] sm:$0xff]
        %v2635 = vld [vmem:[#allocation3 + $0x4a] sm:$0xff]
        %v2636 = vld [vmem:[#allocation3 + $0x52] sm:$0xff]
        %v2637 = vld [vmem:[#allocation3 + $0x62] sm:$0xff]
        %v2638 = vld [vmem:[#allocation3 + $0x6a] sm:$0xff]
        %v2639 = vld [vmem:[#allocation3 + $0x7a] sm:$0xff]
        %v2640 = vld [vmem:[#allocation3 + $0x82] sm:$0xff]
        %v2641 = vld [vmem:[#allocation3 + $0x92] sm:$0xff]
        %v2642 = vld [vmem:[#allocation3 + $0x9a] sm:$0xff]
        %v2643 = vld [vmem:[#allocation3 + $0xaa] sm:$0xff]
        %v2644 = vld [vmem:[#allocation3 + $0xb2] sm:$0xff]
        %v2645 = vld [vmem:[#allocation3 + $0xc2] sm:$0xff]
        %v2646 = vld [vmem:[#allocation3 + $0xca] sm:$0xff]
        %v2647 = vld [vmem:[#allocation3 + $0xda] sm:$0xff]
        %v2648 = vld [vmem:[#allocation3 + $0xe2] sm:$0xff]
        %v2649 = vld [vmem:[#allocation3 + $0xf2] sm:$0xff]
        %v2650 = vld [vmem:[#allocation3 + $0xfa] sm:$0xff]
        %v2651 = vld [vmem:[#allocation3 + $0x10a] sm:$0xff]
        %v2652 = vld [vmem:[#allocation3 + $0x112] sm:$0xff]
        %v2653 = vld [vmem:[#allocation3 + $0x122] sm:$0xff]
        %v2654 = vld [vmem:[#allocation3 + $0x12a] sm:$0xff]
        %v2655 = vld [vmem:[#allocation3 + $0x13a] sm:$0xff]
        %v2656 = vld [vmem:[#allocation3 + $0x142] sm:$0xff]
        %v2657 = vld [vmem:[#allocation3 + $0x152] sm:$0xff]
        %v2658 = vld [vmem:[#allocation3 + $0x15a] sm:$0xff]
        %v2659 = vld [vmem:[#allocation3 + $0x16a] sm:$0xff]
        %v2660 = vld [vmem:[#allocation3 + $0x172] sm:$0xff]
        %2661 = vst [vmem:[#allocation4 + $0x10] sm:$0xff] %v2629
        %2662 = vst [vmem:[#allocation4 + $0x58] sm:$0xff] %v2630
        %2663 = vst [vmem:[#allocation4 + $0xa0] sm:$0xff] %v2631
        %2664 = vst [vmem:[#allocation4 + $0xe8] sm:$0xff] %v2632
        %2665 = vst [vmem:[#allocation4 + $0x130] sm:$0xff] %v2633
        %2666 = vst [vmem:[#allocation4 + $0x178] sm:$0xff] %v2634
        %2667 = vst [vmem:[#allocation4 + $0x1c0] sm:$0xff] %v2635
        %2668 = vst [vmem:[#allocation4 + $0x208] sm:$0xff] %v2636
        %2669 = vst [vmem:[#allocation4 + $0x250] sm:$0xff] %v2637
        %2670 = vst [vmem:[#allocation4 + $0x298] sm:$0xff] %v2638
        %2671 = vst [vmem:[#allocation4 + $0x2e0] sm:$0xff] %v2639
        %2672 = vst [vmem:[#allocation4 + $0x328] sm:$0xff] %v2640
        %2673 = vst [vmem:[#allocation4 + $0x370] sm:$0xff] %v2641
        %2674 = vst [vmem:[#allocation4 + $0x3b8] sm:$0xff] %v2642
        %2675 = vst [vmem:[#allocation4 + $0x400] sm:$0xff] %v2643
        %2676 = vst [vmem:[#allocation4 + $0x448] sm:$0xff] %v2644
        %2677 = vst [vmem:[#allocation4 + $0x490] sm:$0xff] %v2645
        %2678 = vst [vmem:[#allocation4 + $0x4d8] sm:$0xff] %v2646
        %2679 = vst [vmem:[#allocation4 + $0x520] sm:$0xff] %v2647
        %2680 = vst [vmem:[#allocation4 + $0x568] sm:$0xff] %v2648
        %2681 = vst [vmem:[#allocation4 + $0x5b0] sm:$0xff] %v2649
        %2682 = vst [vmem:[#allocation4 + $0x5f8] sm:$0xff] %v2650
        %2683 = vst [vmem:[#allocation4 + $0x640] sm:$0xff] %v2651
        %2684 = vst [vmem:[#allocation4 + $0x688] sm:$0xff] %v2652
        %2685 = vst [vmem:[#allocation4 + $0x6d0] sm:$0xff] %v2653
        %2686 = vst [vmem:[#allocation4 + $0x718] sm:$0xff] %v2654
        %2687 = vst [vmem:[#allocation4 + $0x760] sm:$0xff] %v2655
        %2688 = vst [vmem:[#allocation4 + $0x7a8] sm:$0xff] %v2656
        %2689 = vst [vmem:[#allocation4 + $0x7f0] sm:$0xff] %v2657
        %2690 = vst [vmem:[#allocation4 + $0x838] sm:$0xff] %v2658
        %2691 = vst [vmem:[#allocation4 + $0x880] sm:$0xff] %v2659
        %2692 = vst [vmem:[#allocation4 + $0x8c8] sm:$0xff] %v2660
        %v2693 = vld [vmem:[%s2468] sm:$0xff]
        %v2694 = vld [vmem:[%s2468 + $0x8] sm:$0xff]
        %v2695 = vld [vmem:[%s2468 + $0x18] sm:$0xff]
        %v2696 = vld [vmem:[%s2468 + $0x20] sm:$0xff]
        %v2697 = vld [vmem:[%s2468 + $0x30] sm:$0xff]
        %v2698 = vld [vmem:[%s2468 + $0x38] sm:$0xff]
        %v2699 = vld [vmem:[%s2468 + $0x48] sm:$0xff]
        %v2700 = vld [vmem:[%s2468 + $0x50] sm:$0xff]
        %v2701 = vld [vmem:[%s2468 + $0x60] sm:$0xff]
        %v2702 = vld [vmem:[%s2468 + $0x68] sm:$0xff]
        %v2703 = vld [vmem:[%s2468 + $0x78] sm:$0xff]
        %v2704 = vld [vmem:[%s2468 + $0x80] sm:$0xff]
        %v2705 = vld [vmem:[%s2468 + $0x90] sm:$0xff]
        %v2706 = vld [vmem:[%s2468 + $0x98] sm:$0xff]
        %v2707 = vld [vmem:[%s2468 + $0xa8] sm:$0xff]
        %v2708 = vld [vmem:[%s2468 + $0xb0] sm:$0xff]
        %v2709 = vld [vmem:[%s2468 + $0xc0] sm:$0xff]
        %v2710 = vld [vmem:[%s2468 + $0xc8] sm:$0xff]
        %v2711 = vld [vmem:[%s2468 + $0xd8] sm:$0xff]
        %v2712 = vld [vmem:[%s2468 + $0xe0] sm:$0xff]
        %v2713 = vld [vmem:[%s2468 + $0xf0] sm:$0xff]
        %v2714 = vld [vmem:[%s2468 + $0xf8] sm:$0xff]
        %v2715 = vld [vmem:[%s2468 + $0x108] sm:$0xff]
        %v2716 = vld [vmem:[%s2468 + $0x110] sm:$0xff]
        %v2717 = vld [vmem:[%s2468 + $0x120] sm:$0xff]
        %v2718 = vld [vmem:[%s2468 + $0x128] sm:$0xff]
        %v2719 = vld [vmem:[%s2468 + $0x138] sm:$0xff]
        %v2720 = vld [vmem:[%s2468 + $0x140] sm:$0xff]
        %v2721 = vld [vmem:[%s2468 + $0x150] sm:$0xff]
        %v2722 = vld [vmem:[%s2468 + $0x158] sm:$0xff]
        %v2723 = vld [vmem:[%s2468 + $0x168] sm:$0xff]
        %v2724 = vld [vmem:[%s2468 + $0x170] sm:$0xff]
        %2725 = vst [vmem:[#allocation4 + $0x18] sm:$0xff] %v2693
        %2726 = vst [vmem:[#allocation4 + $0x60] sm:$0xff] %v2694
        %2727 = vst [vmem:[#allocation4 + $0xa8] sm:$0xff] %v2695
        %2728 = vst [vmem:[#allocation4 + $0xf0] sm:$0xff] %v2696
        %2729 = vst [vmem:[#allocation4 + $0x138] sm:$0xff] %v2697
        %2730 = vst [vmem:[#allocation4 + $0x180] sm:$0xff] %v2698
        %2731 = vst [vmem:[#allocation4 + $0x1c8] sm:$0xff] %v2699
        %2732 = vst [vmem:[#allocation4 + $0x210] sm:$0xff] %v2700
        %2733 = vst [vmem:[#allocation4 + $0x258] sm:$0xff] %v2701
        %2734 = vst [vmem:[#allocation4 + $0x2a0] sm:$0xff] %v2702
        %2735 = vst [vmem:[#allocation4 + $0x2e8] sm:$0xff] %v2703
        %2736 = vst [vmem:[#allocation4 + $0x330] sm:$0xff] %v2704
        %2737 = vst [vmem:[#allocation4 + $0x378] sm:$0xff] %v2705
        %2738 = vst [vmem:[#allocation4 + $0x3c0] sm:$0xff] %v2706
        %2739 = vst [vmem:[#allocation4 + $0x408] sm:$0xff] %v2707
        %2740 = vst [vmem:[#allocation4 + $0x450] sm:$0xff] %v2708
        %2741 = vst [vmem:[#allocation4 + $0x498] sm:$0xff] %v2709
        %2742 = vst [vmem:[#allocation4 + $0x4e0] sm:$0xff] %v2710
        %2743 = vst [vmem:[#allocation4 + $0x528] sm:$0xff] %v2711
        %2744 = vst [vmem:[#allocation4 + $0x570] sm:$0xff] %v2712
        %2745 = vst [vmem:[#allocation4 + $0x5b8] sm:$0xff] %v2713
        %2746 = vst [vmem:[#allocation4 + $0x600] sm:$0xff] %v2714
        %2747 = vst [vmem:[#allocation4 + $0x648] sm:$0xff] %v2715
        %2748 = vst [vmem:[#allocation4 + $0x690] sm:$0xff] %v2716
        %2749 = vst [vmem:[#allocation4 + $0x6d8] sm:$0xff] %v2717
        %2750 = vst [vmem:[#allocation4 + $0x720] sm:$0xff] %v2718
        %2751 = vst [vmem:[#allocation4 + $0x768] sm:$0xff] %v2719
        %2752 = vst [vmem:[#allocation4 + $0x7b0] sm:$0xff] %v2720
        %2753 = vst [vmem:[#allocation4 + $0x7f8] sm:$0xff] %v2721
        %2754 = vst [vmem:[#allocation4 + $0x840] sm:$0xff] %v2722
        %2755 = vst [vmem:[#allocation4 + $0x888] sm:$0xff] %v2723
        %2756 = vst [vmem:[#allocation4 + $0x8d0] sm:$0xff] %v2724
        %v2757 = vld [vmem:[%s2468 + $0x1] sm:$0xff]
        %v2758 = vld [vmem:[%s2468 + $0x9] sm:$0xff]
        %v2759 = vld [vmem:[%s2468 + $0x19] sm:$0xff]
        %v2760 = vld [vmem:[%s2468 + $0x21] sm:$0xff]
        %v2761 = vld [vmem:[%s2468 + $0x31] sm:$0xff]
        %v2762 = vld [vmem:[%s2468 + $0x39] sm:$0xff]
        %v2763 = vld [vmem:[%s2468 + $0x49] sm:$0xff]
        %v2764 = vld [vmem:[%s2468 + $0x51] sm:$0xff]
        %v2765 = vld [vmem:[%s2468 + $0x61] sm:$0xff]
        %v2766 = vld [vmem:[%s2468 + $0x69] sm:$0xff]
        %v2767 = vld [vmem:[%s2468 + $0x79] sm:$0xff]
        %v2768 = vld [vmem:[%s2468 + $0x81] sm:$0xff]
        %v2769 = vld [vmem:[%s2468 + $0x91] sm:$0xff]
        %v2770 = vld [vmem:[%s2468 + $0x99] sm:$0xff]
        %v2771 = vld [vmem:[%s2468 + $0xa9] sm:$0xff]
        %v2772 = vld [vmem:[%s2468 + $0xb1] sm:$0xff]
        %v2773 = vld [vmem:[%s2468 + $0xc1] sm:$0xff]
        %v2774 = vld [vmem:[%s2468 + $0xc9] sm:$0xff]
        %v2775 = vld [vmem:[%s2468 + $0xd9] sm:$0xff]
        %v2776 = vld [vmem:[%s2468 + $0xe1] sm:$0xff]
        %v2777 = vld [vmem:[%s2468 + $0xf1] sm:$0xff]
        %v2778 = vld [vmem:[%s2468 + $0xf9] sm:$0xff]
        %v2779 = vld [vmem:[%s2468 + $0x109] sm:$0xff]
        %v2780 = vld [vmem:[%s2468 + $0x111] sm:$0xff]
        %v2781 = vld [vmem:[%s2468 + $0x121] sm:$0xff]
        %v2782 = vld [vmem:[%s2468 + $0x129] sm:$0xff]
        %v2783 = vld [vmem:[%s2468 + $0x139] sm:$0xff]
        %v2784 = vld [vmem:[%s2468 + $0x141] sm:$0xff]
        %v2785 = vld [vmem:[%s2468 + $0x151] sm:$0xff]
        %v2786 = vld [vmem:[%s2468 + $0x159] sm:$0xff]
        %v2787 = vld [vmem:[%s2468 + $0x169] sm:$0xff]
        %v2788 = vld [vmem:[%s2468 + $0x171] sm:$0xff]
        %2789 = vst [vmem:[#allocation4 + $0x20] sm:$0xff] %v2757
        %2790 = vst [vmem:[#allocation4 + $0x68] sm:$0xff] %v2758
        %2791 = vst [vmem:[#allocation4 + $0xb0] sm:$0xff] %v2759
        %2792 = vst [vmem:[#allocation4 + $0xf8] sm:$0xff] %v2760
        %2793 = vst [vmem:[#allocation4 + $0x140] sm:$0xff] %v2761
        %2794 = vst [vmem:[#allocation4 + $0x188] sm:$0xff] %v2762
        %2795 = vst [vmem:[#allocation4 + $0x1d0] sm:$0xff] %v2763
        %2796 = vst [vmem:[#allocation4 + $0x218] sm:$0xff] %v2764
        %2797 = vst [vmem:[#allocation4 + $0x260] sm:$0xff] %v2765
        %2798 = vst [vmem:[#allocation4 + $0x2a8] sm:$0xff] %v2766
        %2799 = vst [vmem:[#allocation4 + $0x2f0] sm:$0xff] %v2767
        %2800 = vst [vmem:[#allocation4 + $0x338] sm:$0xff] %v2768
        %2801 = vst [vmem:[#allocation4 + $0x380] sm:$0xff] %v2769
        %2802 = vst [vmem:[#allocation4 + $0x3c8] sm:$0xff] %v2770
        %2803 = vst [vmem:[#allocation4 + $0x410] sm:$0xff] %v2771
        %2804 = vst [vmem:[#allocation4 + $0x458] sm:$0xff] %v2772
        %2805 = vst [vmem:[#allocation4 + $0x4a0] sm:$0xff] %v2773
        %2806 = vst [vmem:[#allocation4 + $0x4e8] sm:$0xff] %v2774
        %2807 = vst [vmem:[#allocation4 + $0x530] sm:$0xff] %v2775
        %2808 = vst [vmem:[#allocation4 + $0x578] sm:$0xff] %v2776
        %2809 = vst [vmem:[#allocation4 + $0x5c0] sm:$0xff] %v2777
        %2810 = vst [vmem:[#allocation4 + $0x608] sm:$0xff] %v2778
        %2811 = vst [vmem:[#allocation4 + $0x650] sm:$0xff] %v2779
        %2812 = vst [vmem:[#allocation4 + $0x698] sm:$0xff] %v2780
        %2813 = vst [vmem:[#allocation4 + $0x6e0] sm:$0xff] %v2781
        %2814 = vst [vmem:[#allocation4 + $0x728] sm:$0xff] %v2782
        %2815 = vst [vmem:[#allocation4 + $0x770] sm:$0xff] %v2783
        %2816 = vst [vmem:[#allocation4 + $0x7b8] sm:$0xff] %v2784
        %2817 = vst [vmem:[#allocation4 + $0x800] sm:$0xff] %v2785
        %2818 = vst [vmem:[#allocation4 + $0x848] sm:$0xff] %v2786
        %2819 = vst [vmem:[#allocation4 + $0x890] sm:$0xff] %v2787
        %2820 = vst [vmem:[#allocation4 + $0x8d8] sm:$0xff] %v2788
        %v2821 = vld [vmem:[%s2468 + $0x2] sm:$0xff]
        %v2822 = vld [vmem:[%s2468 + $0xa] sm:$0xff]
        %v2823 = vld [vmem:[%s2468 + $0x1a] sm:$0xff]
        %v2824 = vld [vmem:[%s2468 + $0x22] sm:$0xff]
        %v2825 = vld [vmem:[%s2468 + $0x32] sm:$0xff]
        %v2826 = vld [vmem:[%s2468 + $0x3a] sm:$0xff]
        %v2827 = vld [vmem:[%s2468 + $0x4a] sm:$0xff]
        %v2828 = vld [vmem:[%s2468 + $0x52] sm:$0xff]
        %v2829 = vld [vmem:[%s2468 + $0x62] sm:$0xff]
        %v2830 = vld [vmem:[%s2468 + $0x6a] sm:$0xff]
        %v2831 = vld [vmem:[%s2468 + $0x7a] sm:$0xff]
        %v2832 = vld [vmem:[%s2468 + $0x82] sm:$0xff]
        %v2833 = vld [vmem:[%s2468 + $0x92] sm:$0xff]
        %v2834 = vld [vmem:[%s2468 + $0x9a] sm:$0xff]
        %v2835 = vld [vmem:[%s2468 + $0xaa] sm:$0xff]
        %v2836 = vld [vmem:[%s2468 + $0xb2] sm:$0xff]
        %v2837 = vld [vmem:[%s2468 + $0xc2] sm:$0xff]
        %v2838 = vld [vmem:[%s2468 + $0xca] sm:$0xff]
        %v2839 = vld [vmem:[%s2468 + $0xda] sm:$0xff]
        %v2840 = vld [vmem:[%s2468 + $0xe2] sm:$0xff]
        %v2841 = vld [vmem:[%s2468 + $0xf2] sm:$0xff]
        %v2842 = vld [vmem:[%s2468 + $0xfa] sm:$0xff]
        %v2843 = vld [vmem:[%s2468 + $0x10a] sm:$0xff]
        %v2844 = vld [vmem:[%s2468 + $0x112] sm:$0xff]
        %v2845 = vld [vmem:[%s2468 + $0x122] sm:$0xff]
        %v2846 = vld [vmem:[%s2468 + $0x12a] sm:$0xff]
        %v2847 = vld [vmem:[%s2468 + $0x13a] sm:$0xff]
        %v2848 = vld [vmem:[%s2468 + $0x142] sm:$0xff]
        %v2849 = vld [vmem:[%s2468 + $0x152] sm:$0xff]
        %v2850 = vld [vmem:[%s2468 + $0x15a] sm:$0xff]
        %v2851 = vld [vmem:[%s2468 + $0x16a] sm:$0xff]
        %v2852 = vld [vmem:[%s2468 + $0x172] sm:$0xff]
        %2853 = vst [vmem:[#allocation4 + $0x28] sm:$0xff] %v2821
        %2854 = vst [vmem:[#allocation4 + $0x70] sm:$0xff] %v2822
        %2855 = vst [vmem:[#allocation4 + $0xb8] sm:$0xff] %v2823
        %2856 = vst [vmem:[#allocation4 + $0x100] sm:$0xff] %v2824
        %2857 = vst [vmem:[#allocation4 + $0x148] sm:$0xff] %v2825
        %2858 = vst [vmem:[#allocation4 + $0x190] sm:$0xff] %v2826
        %2859 = vst [vmem:[#allocation4 + $0x1d8] sm:$0xff] %v2827
        %2860 = vst [vmem:[#allocation4 + $0x220] sm:$0xff] %v2828
        %2861 = vst [vmem:[#allocation4 + $0x268] sm:$0xff] %v2829
        %2862 = vst [vmem:[#allocation4 + $0x2b0] sm:$0xff] %v2830
        %2863 = vst [vmem:[#allocation4 + $0x2f8] sm:$0xff] %v2831
        %2864 = vst [vmem:[#allocation4 + $0x340] sm:$0xff] %v2832
        %2865 = vst [vmem:[#allocation4 + $0x388] sm:$0xff] %v2833
        %2866 = vst [vmem:[#allocation4 + $0x3d0] sm:$0xff] %v2834
        %2867 = vst [vmem:[#allocation4 + $0x418] sm:$0xff] %v2835
        %2868 = vst [vmem:[#allocation4 + $0x460] sm:$0xff] %v2836
        %2869 = vst [vmem:[#allocation4 + $0x4a8] sm:$0xff] %v2837
        %2870 = vst [vmem:[#allocation4 + $0x4f0] sm:$0xff] %v2838
        %2871 = vst [vmem:[#allocation4 + $0x538] sm:$0xff] %v2839
        %2872 = vst [vmem:[#allocation4 + $0x580] sm:$0xff] %v2840
        %2873 = vst [vmem:[#allocation4 + $0x5c8] sm:$0xff] %v2841
        %2874 = vst [vmem:[#allocation4 + $0x610] sm:$0xff] %v2842
        %2875 = vst [vmem:[#allocation4 + $0x658] sm:$0xff] %v2843
        %2876 = vst [vmem:[#allocation4 + $0x6a0] sm:$0xff] %v2844
        %2877 = vst [vmem:[#allocation4 + $0x6e8] sm:$0xff] %v2845
        %2878 = vst [vmem:[#allocation4 + $0x730] sm:$0xff] %v2846
        %2879 = vst [vmem:[#allocation4 + $0x778] sm:$0xff] %v2847
        %2880 = vst [vmem:[#allocation4 + $0x7c0] sm:$0xff] %v2848
        %2881 = vst [vmem:[#allocation4 + $0x808] sm:$0xff] %v2849
        %2882 = vst [vmem:[#allocation4 + $0x850] sm:$0xff] %v2850
        %2883 = vst [vmem:[#allocation4 + $0x898] sm:$0xff] %v2851
        %2884 = vst [vmem:[#allocation4 + $0x8e0] sm:$0xff] %v2852
        %s2885 = scalar_lea.vmem [#allocation3], 48
        %v2886 = vld [vmem:[%s2885] sm:$0xff]
        %v2887 = vld [vmem:[%s2885 + $0x8] sm:$0xff]
        %v2888 = vld [vmem:[%s2885 + $0x18] sm:$0xff]
        %v2889 = vld [vmem:[%s2885 + $0x20] sm:$0xff]
        %v2890 = vld [vmem:[%s2885 + $0x30] sm:$0xff]
        %v2891 = vld [vmem:[%s2885 + $0x38] sm:$0xff]
        %v2892 = vld [vmem:[%s2885 + $0x48] sm:$0xff]
        %v2893 = vld [vmem:[%s2885 + $0x50] sm:$0xff]
        %v2894 = vld [vmem:[%s2885 + $0x60] sm:$0xff]
        %v2895 = vld [vmem:[%s2885 + $0x68] sm:$0xff]
        %v2896 = vld [vmem:[%s2885 + $0x78] sm:$0xff]
        %v2897 = vld [vmem:[%s2885 + $0x80] sm:$0xff]
        %v2898 = vld [vmem:[%s2885 + $0x90] sm:$0xff]
        %v2899 = vld [vmem:[%s2885 + $0x98] sm:$0xff]
        %v2900 = vld [vmem:[%s2885 + $0xa8] sm:$0xff]
        %v2901 = vld [vmem:[%s2885 + $0xb0] sm:$0xff]
        %v2902 = vld [vmem:[%s2885 + $0xc0] sm:$0xff]
        %v2903 = vld [vmem:[%s2885 + $0xc8] sm:$0xff]
        %v2904 = vld [vmem:[%s2885 + $0xd8] sm:$0xff]
        %v2905 = vld [vmem:[%s2885 + $0xe0] sm:$0xff]
        %v2906 = vld [vmem:[%s2885 + $0xf0] sm:$0xff]
        %v2907 = vld [vmem:[%s2885 + $0xf8] sm:$0xff]
        %v2908 = vld [vmem:[%s2885 + $0x108] sm:$0xff]
        %v2909 = vld [vmem:[%s2885 + $0x110] sm:$0xff]
        %v2910 = vld [vmem:[%s2885 + $0x120] sm:$0xff]
        %v2911 = vld [vmem:[%s2885 + $0x128] sm:$0xff]
        %v2912 = vld [vmem:[%s2885 + $0x138] sm:$0xff]
        %v2913 = vld [vmem:[%s2885 + $0x140] sm:$0xff]
        %v2914 = vld [vmem:[%s2885 + $0x150] sm:$0xff]
        %v2915 = vld [vmem:[%s2885 + $0x158] sm:$0xff]
        %v2916 = vld [vmem:[%s2885 + $0x168] sm:$0xff]
        %v2917 = vld [vmem:[%s2885 + $0x170] sm:$0xff]
        %2918 = vst [vmem:[#allocation4 + $0x30] sm:$0xff] %v2886
        %2919 = vst [vmem:[#allocation4 + $0x78] sm:$0xff] %v2887
        %2920 = vst [vmem:[#allocation4 + $0xc0] sm:$0xff] %v2888
        %2921 = vst [vmem:[#allocation4 + $0x108] sm:$0xff] %v2889
        %2922 = vst [vmem:[#allocation4 + $0x150] sm:$0xff] %v2890
        %2923 = vst [vmem:[#allocation4 + $0x198] sm:$0xff] %v2891
        %2924 = vst [vmem:[#allocation4 + $0x1e0] sm:$0xff] %v2892
        %2925 = vst [vmem:[#allocation4 + $0x228] sm:$0xff] %v2893
        %2926 = vst [vmem:[#allocation4 + $0x270] sm:$0xff] %v2894
        %2927 = vst [vmem:[#allocation4 + $0x2b8] sm:$0xff] %v2895
        %2928 = vst [vmem:[#allocation4 + $0x300] sm:$0xff] %v2896
        %2929 = vst [vmem:[#allocation4 + $0x348] sm:$0xff] %v2897
        %2930 = vst [vmem:[#allocation4 + $0x390] sm:$0xff] %v2898
        %2931 = vst [vmem:[#allocation4 + $0x3d8] sm:$0xff] %v2899
        %2932 = vst [vmem:[#allocation4 + $0x420] sm:$0xff] %v2900
        %2933 = vst [vmem:[#allocation4 + $0x468] sm:$0xff] %v2901
        %2934 = vst [vmem:[#allocation4 + $0x4b0] sm:$0xff] %v2902
        %2935 = vst [vmem:[#allocation4 + $0x4f8] sm:$0xff] %v2903
        %2936 = vst [vmem:[#allocation4 + $0x540] sm:$0xff] %v2904
        %2937 = vst [vmem:[#allocation4 + $0x588] sm:$0xff] %v2905
        %2938 = vst [vmem:[#allocation4 + $0x5d0] sm:$0xff] %v2906
        %2939 = vst [vmem:[#allocation4 + $0x618] sm:$0xff] %v2907
        %2940 = vst [vmem:[#allocation4 + $0x660] sm:$0xff] %v2908
        %2941 = vst [vmem:[#allocation4 + $0x6a8] sm:$0xff] %v2909
        %2942 = vst [vmem:[#allocation4 + $0x6f0] sm:$0xff] %v2910
        %2943 = vst [vmem:[#allocation4 + $0x738] sm:$0xff] %v2911
        %2944 = vst [vmem:[#allocation4 + $0x780] sm:$0xff] %v2912
        %2945 = vst [vmem:[#allocation4 + $0x7c8] sm:$0xff] %v2913
        %2946 = vst [vmem:[#allocation4 + $0x810] sm:$0xff] %v2914
        %2947 = vst [vmem:[#allocation4 + $0x858] sm:$0xff] %v2915
        %2948 = vst [vmem:[#allocation4 + $0x8a0] sm:$0xff] %v2916
        %2949 = vst [vmem:[#allocation4 + $0x8e8] sm:$0xff] %v2917
        %v2950 = vld [vmem:[%s2885 + $0x1] sm:$0xff]
        %v2951 = vld [vmem:[%s2885 + $0x9] sm:$0xff]
        %v2952 = vld [vmem:[%s2885 + $0x19] sm:$0xff]
        %v2953 = vld [vmem:[%s2885 + $0x21] sm:$0xff]
        %v2954 = vld [vmem:[%s2885 + $0x31] sm:$0xff]
        %v2955 = vld [vmem:[%s2885 + $0x39] sm:$0xff]
        %v2956 = vld [vmem:[%s2885 + $0x49] sm:$0xff]
        %v2957 = vld [vmem:[%s2885 + $0x51] sm:$0xff]
        %v2958 = vld [vmem:[%s2885 + $0x61] sm:$0xff]
        %v2959 = vld [vmem:[%s2885 + $0x69] sm:$0xff]
        %v2960 = vld [vmem:[%s2885 + $0x79] sm:$0xff]
        %v2961 = vld [vmem:[%s2885 + $0x81] sm:$0xff]
        %v2962 = vld [vmem:[%s2885 + $0x91] sm:$0xff]
        %v2963 = vld [vmem:[%s2885 + $0x99] sm:$0xff]
        %v2964 = vld [vmem:[%s2885 + $0xa9] sm:$0xff]
        %v2965 = vld [vmem:[%s2885 + $0xb1] sm:$0xff]
        %v2966 = vld [vmem:[%s2885 + $0xc1] sm:$0xff]
        %v2967 = vld [vmem:[%s2885 + $0xc9] sm:$0xff]
        %v2968 = vld [vmem:[%s2885 + $0xd9] sm:$0xff]
        %v2969 = vld [vmem:[%s2885 + $0xe1] sm:$0xff]
        %v2970 = vld [vmem:[%s2885 + $0xf1] sm:$0xff]
        %v2971 = vld [vmem:[%s2885 + $0xf9] sm:$0xff]
        %v2972 = vld [vmem:[%s2885 + $0x109] sm:$0xff]
        %v2973 = vld [vmem:[%s2885 + $0x111] sm:$0xff]
        %v2974 = vld [vmem:[%s2885 + $0x121] sm:$0xff]
        %v2975 = vld [vmem:[%s2885 + $0x129] sm:$0xff]
        %v2976 = vld [vmem:[%s2885 + $0x139] sm:$0xff]
        %v2977 = vld [vmem:[%s2885 + $0x141] sm:$0xff]
        %v2978 = vld [vmem:[%s2885 + $0x151] sm:$0xff]
        %v2979 = vld [vmem:[%s2885 + $0x159] sm:$0xff]
        %v2980 = vld [vmem:[%s2885 + $0x169] sm:$0xff]
        %v2981 = vld [vmem:[%s2885 + $0x171] sm:$0xff]
        %2982 = vst [vmem:[#allocation4 + $0x38] sm:$0xff] %v2950
        %2983 = vst [vmem:[#allocation4 + $0x80] sm:$0xff] %v2951
        %2984 = vst [vmem:[#allocation4 + $0xc8] sm:$0xff] %v2952
        %2985 = vst [vmem:[#allocation4 + $0x110] sm:$0xff] %v2953
        %2986 = vst [vmem:[#allocation4 + $0x158] sm:$0xff] %v2954
        %2987 = vst [vmem:[#allocation4 + $0x1a0] sm:$0xff] %v2955
        %2988 = vst [vmem:[#allocation4 + $0x1e8] sm:$0xff] %v2956
        %2989 = vst [vmem:[#allocation4 + $0x230] sm:$0xff] %v2957
        %2990 = vst [vmem:[#allocation4 + $0x278] sm:$0xff] %v2958
        %2991 = vst [vmem:[#allocation4 + $0x2c0] sm:$0xff] %v2959
        %2992 = vst [vmem:[#allocation4 + $0x308] sm:$0xff] %v2960
        %2993 = vst [vmem:[#allocation4 + $0x350] sm:$0xff] %v2961
        %2994 = vst [vmem:[#allocation4 + $0x398] sm:$0xff] %v2962
        %2995 = vst [vmem:[#allocation4 + $0x3e0] sm:$0xff] %v2963
        %2996 = vst [vmem:[#allocation4 + $0x428] sm:$0xff] %v2964
        %2997 = vst [vmem:[#allocation4 + $0x470] sm:$0xff] %v2965
        %2998 = vst [vmem:[#allocation4 + $0x4b8] sm:$0xff] %v2966
        %2999 = vst [vmem:[#allocation4 + $0x500] sm:$0xff] %v2967
        %3000 = vst [vmem:[#allocation4 + $0x548] sm:$0xff] %v2968
        %3001 = vst [vmem:[#allocation4 + $0x590] sm:$0xff] %v2969
        %3002 = vst [vmem:[#allocation4 + $0x5d8] sm:$0xff] %v2970
        %3003 = vst [vmem:[#allocation4 + $0x620] sm:$0xff] %v2971
        %3004 = vst [vmem:[#allocation4 + $0x668] sm:$0xff] %v2972
        %3005 = vst [vmem:[#allocation4 + $0x6b0] sm:$0xff] %v2973
        %3006 = vst [vmem:[#allocation4 + $0x6f8] sm:$0xff] %v2974
        %3007 = vst [vmem:[#allocation4 + $0x740] sm:$0xff] %v2975
        %3008 = vst [vmem:[#allocation4 + $0x788] sm:$0xff] %v2976
        %3009 = vst [vmem:[#allocation4 + $0x7d0] sm:$0xff] %v2977
        %3010 = vst [vmem:[#allocation4 + $0x818] sm:$0xff] %v2978
        %3011 = vst [vmem:[#allocation4 + $0x860] sm:$0xff] %v2979
        %3012 = vst [vmem:[#allocation4 + $0x8a8] sm:$0xff] %v2980
        %3013 = vst [vmem:[#allocation4 + $0x8f0] sm:$0xff] %v2981
        %v3014 = vld [vmem:[%s2885 + $0x2] sm:$0xff]
        %v3015 = vld [vmem:[%s2885 + $0xa] sm:$0xff]
        %v3016 = vld [vmem:[%s2885 + $0x1a] sm:$0xff]
        %v3017 = vld [vmem:[%s2885 + $0x22] sm:$0xff]
        %v3018 = vld [vmem:[%s2885 + $0x32] sm:$0xff]
        %v3019 = vld [vmem:[%s2885 + $0x3a] sm:$0xff]
        %v3020 = vld [vmem:[%s2885 + $0x4a] sm:$0xff]
        %v3021 = vld [vmem:[%s2885 + $0x52] sm:$0xff]
        %v3022 = vld [vmem:[%s2885 + $0x62] sm:$0xff]
        %v3023 = vld [vmem:[%s2885 + $0x6a] sm:$0xff]
        %v3024 = vld [vmem:[%s2885 + $0x7a] sm:$0xff]
        %v3025 = vld [vmem:[%s2885 + $0x82] sm:$0xff]
        %v3026 = vld [vmem:[%s2885 + $0x92] sm:$0xff]
        %v3027 = vld [vmem:[%s2885 + $0x9a] sm:$0xff]
        %v3028 = vld [vmem:[%s2885 + $0xaa] sm:$0xff]
        %v3029 = vld [vmem:[%s2885 + $0xb2] sm:$0xff]
        %v3030 = vld [vmem:[%s2885 + $0xc2] sm:$0xff]
        %v3031 = vld [vmem:[%s2885 + $0xca] sm:$0xff]
        %v3032 = vld [vmem:[%s2885 + $0xda] sm:$0xff]
        %v3033 = vld [vmem:[%s2885 + $0xe2] sm:$0xff]
        %v3034 = vld [vmem:[%s2885 + $0xf2] sm:$0xff]
        %v3035 = vld [vmem:[%s2885 + $0xfa] sm:$0xff]
        %v3036 = vld [vmem:[%s2885 + $0x10a] sm:$0xff]
        %v3037 = vld [vmem:[%s2885 + $0x112] sm:$0xff]
        %v3038 = vld [vmem:[%s2885 + $0x122] sm:$0xff]
        %v3039 = vld [vmem:[%s2885 + $0x12a] sm:$0xff]
        %v3040 = vld [vmem:[%s2885 + $0x13a] sm:$0xff]
        %v3041 = vld [vmem:[%s2885 + $0x142] sm:$0xff]
        %v3042 = vld [vmem:[%s2885 + $0x152] sm:$0xff]
        %v3043 = vld [vmem:[%s2885 + $0x15a] sm:$0xff]
        %v3044 = vld [vmem:[%s2885 + $0x16a] sm:$0xff]
        %v3045 = vld [vmem:[%s2885 + $0x172] sm:$0xff]
        %3046 = vst [vmem:[#allocation4 + $0x40] sm:$0xff] %v3014
        %3047 = vst [vmem:[#allocation4 + $0x88] sm:$0xff] %v3015
        %3048 = vst [vmem:[#allocation4 + $0xd0] sm:$0xff] %v3016
        %3049 = vst [vmem:[#allocation4 + $0x118] sm:$0xff] %v3017
        %3050 = vst [vmem:[#allocation4 + $0x160] sm:$0xff] %v3018
        %3051 = vst [vmem:[#allocation4 + $0x1a8] sm:$0xff] %v3019
        %3052 = vst [vmem:[#allocation4 + $0x1f0] sm:$0xff] %v3020
        %3053 = vst [vmem:[#allocation4 + $0x238] sm:$0xff] %v3021
        %3054 = vst [vmem:[#allocation4 + $0x280] sm:$0xff] %v3022
        %3055 = vst [vmem:[#allocation4 + $0x2c8] sm:$0xff] %v3023
        %3056 = vst [vmem:[#allocation4 + $0x310] sm:$0xff] %v3024
        %3057 = vst [vmem:[#allocation4 + $0x358] sm:$0xff] %v3025
        %3058 = vst [vmem:[#allocation4 + $0x3a0] sm:$0xff] %v3026
        %3059 = vst [vmem:[#allocation4 + $0x3e8] sm:$0xff] %v3027
        %3060 = vst [vmem:[#allocation4 + $0x430] sm:$0xff] %v3028
        %3061 = vst [vmem:[#allocation4 + $0x478] sm:$0xff] %v3029
        %3062 = vst [vmem:[#allocation4 + $0x4c0] sm:$0xff] %v3030
        %3063 = vst [vmem:[#allocation4 + $0x508] sm:$0xff] %v3031
        %3064 = vst [vmem:[#allocation4 + $0x550] sm:$0xff] %v3032
        %3065 = vst [vmem:[#allocation4 + $0x598] sm:$0xff] %v3033
        %3066 = vst [vmem:[#allocation4 + $0x5e0] sm:$0xff] %v3034
        %3067 = vst [vmem:[#allocation4 + $0x628] sm:$0xff] %v3035
        %3068 = vst [vmem:[#allocation4 + $0x670] sm:$0xff] %v3036
        %3069 = vst [vmem:[#allocation4 + $0x6b8] sm:$0xff] %v3037
        %3070 = vst [vmem:[#allocation4 + $0x700] sm:$0xff] %v3038
        %3071 = vst [vmem:[#allocation4 + $0x748] sm:$0xff] %v3039
        %3072 = vst [vmem:[#allocation4 + $0x790] sm:$0xff] %v3040
        %3073 = vst [vmem:[#allocation4 + $0x7d8] sm:$0xff] %v3041
        %3074 = vst [vmem:[#allocation4 + $0x820] sm:$0xff] %v3042
        %3075 = vst [vmem:[#allocation4 + $0x868] sm:$0xff] %v3043
        %3076 = vst [vmem:[#allocation4 + $0x8b0] sm:$0xff] %v3044
        %3077 = vst [vmem:[#allocation4 + $0x8f8] sm:$0xff] %v3045
        %v3078 = vld [vmem:[#allocation4] sm:$0xff]
        %v3079 = vld [vmem:[#allocation4 + $0x8] sm:$0xff]
        %v3080 = vld [vmem:[#allocation4 + $0x10] sm:$0xff]
        %v3081 = vld [vmem:[#allocation4 + $0x18] sm:$0xff]
        %v3082 = vld [vmem:[#allocation4 + $0x20] sm:$0xff]
        %v3083 = vld [vmem:[#allocation4 + $0x28] sm:$0xff]
        %v3084 = vld [vmem:[#allocation4 + $0x30] sm:$0xff]
        %v3085 = vld [vmem:[#allocation4 + $0x38] sm:$0xff]
        %v3086 = vld [vmem:[#allocation4 + $0x40] sm:$0xff]
        %v3087 = vld [vmem:[#allocation4 + $0x48] sm:$0xff]
        %v3088 = vld [vmem:[#allocation4 + $0x50] sm:$0xff]
        %v3089 = vld [vmem:[#allocation4 + $0x58] sm:$0xff]
        %v3090 = vld [vmem:[#allocation4 + $0x60] sm:$0xff]
        %v3091 = vld [vmem:[#allocation4 + $0x68] sm:$0xff]
        %v3092 = vld [vmem:[#allocation4 + $0x70] sm:$0xff]
        %v3093 = vld [vmem:[#allocation4 + $0x78] sm:$0xff]
        %v3094 = vld [vmem:[#allocation4 + $0x80] sm:$0xff]
        %v3095 = vld [vmem:[#allocation4 + $0x88] sm:$0xff]
        %v3096 = vld [vmem:[#allocation4 + $0x90] sm:$0xff]
        %v3097 = vld [vmem:[#allocation4 + $0x98] sm:$0xff]
        %v3098 = vld [vmem:[#allocation4 + $0xa0] sm:$0xff]
        %v3099 = vld [vmem:[#allocation4 + $0xa8] sm:$0xff]
        %v3100 = vld [vmem:[#allocation4 + $0xb0] sm:$0xff]
        %v3101 = vld [vmem:[#allocation4 + $0xb8] sm:$0xff]
        %v3102 = vld [vmem:[#allocation4 + $0xc0] sm:$0xff]
        %v3103 = vld [vmem:[#allocation4 + $0xc8] sm:$0xff]
        %v3104 = vld [vmem:[#allocation4 + $0xd0] sm:$0xff]
        %v3105 = vld [vmem:[#allocation4 + $0xd8] sm:$0xff]
        %v3106 = vld [vmem:[#allocation4 + $0xe0] sm:$0xff]
        %v3107 = vld [vmem:[#allocation4 + $0xe8] sm:$0xff]
        %v3108 = vld [vmem:[#allocation4 + $0xf0] sm:$0xff]
        %v3109 = vld [vmem:[#allocation4 + $0xf8] sm:$0xff]
        %v3110 = vld [vmem:[#allocation4 + $0x100] sm:$0xff]
        %v3111 = vld [vmem:[#allocation4 + $0x108] sm:$0xff]
        %v3112 = vld [vmem:[#allocation4 + $0x110] sm:$0xff]
        %v3113 = vld [vmem:[#allocation4 + $0x118] sm:$0xff]
        %v3114 = vld [vmem:[#allocation4 + $0x120] sm:$0xff]
        %v3115 = vld [vmem:[#allocation4 + $0x128] sm:$0xff]
        %v3116 = vld [vmem:[#allocation4 + $0x130] sm:$0xff]
        %v3117 = vld [vmem:[#allocation4 + $0x138] sm:$0xff]
        %v3118 = vld [vmem:[#allocation4 + $0x140] sm:$0xff]
        %v3119 = vld [vmem:[#allocation4 + $0x148] sm:$0xff]
        %v3120 = vld [vmem:[#allocation4 + $0x150] sm:$0xff]
        %v3121 = vld [vmem:[#allocation4 + $0x158] sm:$0xff]
        %v3122 = vld [vmem:[#allocation4 + $0x160] sm:$0xff]
        %v3123 = vld [vmem:[#allocation4 + $0x168] sm:$0xff]
        %v3124 = vld [vmem:[#allocation4 + $0x170] sm:$0xff]
        %v3125 = vld [vmem:[#allocation4 + $0x178] sm:$0xff]
        %v3126 = vld [vmem:[#allocation4 + $0x180] sm:$0xff]
        %v3127 = vld [vmem:[#allocation4 + $0x188] sm:$0xff]
        %v3128 = vld [vmem:[#allocation4 + $0x190] sm:$0xff]
        %v3129 = vld [vmem:[#allocation4 + $0x198] sm:$0xff]
        %v3130 = vld [vmem:[#allocation4 + $0x1a0] sm:$0xff]
        %v3131 = vld [vmem:[#allocation4 + $0x1a8] sm:$0xff]
        %v3132 = vld [vmem:[#allocation4 + $0x1b0] sm:$0xff]
        %v3133 = vld [vmem:[#allocation4 + $0x1b8] sm:$0xff]
        %v3134 = vld [vmem:[#allocation4 + $0x1c0] sm:$0xff]
        %v3135 = vld [vmem:[#allocation4 + $0x1c8] sm:$0xff]
        %v3136 = vld [vmem:[#allocation4 + $0x1d0] sm:$0xff]
        %v3137 = vld [vmem:[#allocation4 + $0x1d8] sm:$0xff]
        %v3138 = vld [vmem:[#allocation4 + $0x1e0] sm:$0xff]
        %v3139 = vld [vmem:[#allocation4 + $0x1e8] sm:$0xff]
        %v3140 = vld [vmem:[#allocation4 + $0x1f0] sm:$0xff]
        %v3141 = vld [vmem:[#allocation4 + $0x1f8] sm:$0xff]
        %v3142 = vld [vmem:[#allocation4 + $0x200] sm:$0xff]
        %v3143 = vld [vmem:[#allocation4 + $0x208] sm:$0xff]
        %v3144 = vld [vmem:[#allocation4 + $0x210] sm:$0xff]
        %v3145 = vld [vmem:[#allocation4 + $0x218] sm:$0xff]
        %v3146 = vld [vmem:[#allocation4 + $0x220] sm:$0xff]
        %v3147 = vld [vmem:[#allocation4 + $0x228] sm:$0xff]
        %v3148 = vld [vmem:[#allocation4 + $0x230] sm:$0xff]
        %v3149 = vld [vmem:[#allocation4 + $0x238] sm:$0xff]
        %v3150 = vld [vmem:[#allocation4 + $0x240] sm:$0xff]
        %v3151 = vld [vmem:[#allocation4 + $0x248] sm:$0xff]
        %v3152 = vld [vmem:[#allocation4 + $0x250] sm:$0xff]
        %v3153 = vld [vmem:[#allocation4 + $0x258] sm:$0xff]
        %v3154 = vld [vmem:[#allocation4 + $0x260] sm:$0xff]
        %v3155 = vld [vmem:[#allocation4 + $0x268] sm:$0xff]
        %v3156 = vld [vmem:[#allocation4 + $0x270] sm:$0xff]
        %v3157 = vld [vmem:[#allocation4 + $0x278] sm:$0xff]
        %v3158 = vld [vmem:[#allocation4 + $0x280] sm:$0xff]
        %v3159 = vld [vmem:[#allocation4 + $0x288] sm:$0xff]
        %v3160 = vld [vmem:[#allocation4 + $0x290] sm:$0xff]
        %v3161 = vld [vmem:[#allocation4 + $0x298] sm:$0xff]
        %v3162 = vld [vmem:[#allocation4 + $0x2a0] sm:$0xff]
        %v3163 = vld [vmem:[#allocation4 + $0x2a8] sm:$0xff]
        %v3164 = vld [vmem:[#allocation4 + $0x2b0] sm:$0xff]
        %v3165 = vld [vmem:[#allocation4 + $0x2b8] sm:$0xff]
        %v3166 = vld [vmem:[#allocation4 + $0x2c0] sm:$0xff]
        %v3167 = vld [vmem:[#allocation4 + $0x2c8] sm:$0xff]
        %v3168 = vld [vmem:[#allocation4 + $0x2d0] sm:$0xff]
        %v3169 = vld [vmem:[#allocation4 + $0x2d8] sm:$0xff]
        %v3170 = vld [vmem:[#allocation4 + $0x2e0] sm:$0xff]
        %v3171 = vld [vmem:[#allocation4 + $0x2e8] sm:$0xff]
        %v3172 = vld [vmem:[#allocation4 + $0x2f0] sm:$0xff]
        %v3173 = vld [vmem:[#allocation4 + $0x2f8] sm:$0xff]
        %v3174 = vld [vmem:[#allocation4 + $0x300] sm:$0xff]
        %v3175 = vld [vmem:[#allocation4 + $0x308] sm:$0xff]
        %v3176 = vld [vmem:[#allocation4 + $0x310] sm:$0xff]
        %v3177 = vld [vmem:[#allocation4 + $0x318] sm:$0xff]
        %v3178 = vld [vmem:[#allocation4 + $0x320] sm:$0xff]
        %v3179 = vld [vmem:[#allocation4 + $0x328] sm:$0xff]
        %v3180 = vld [vmem:[#allocation4 + $0x330] sm:$0xff]
        %v3181 = vld [vmem:[#allocation4 + $0x338] sm:$0xff]
        %v3182 = vld [vmem:[#allocation4 + $0x340] sm:$0xff]
        %v3183 = vld [vmem:[#allocation4 + $0x348] sm:$0xff]
        %v3184 = vld [vmem:[#allocation4 + $0x350] sm:$0xff]
        %v3185 = vld [vmem:[#allocation4 + $0x358] sm:$0xff]
        %v3186 = vld [vmem:[#allocation4 + $0x360] sm:$0xff]
        %v3187 = vld [vmem:[#allocation4 + $0x368] sm:$0xff]
        %v3188 = vld [vmem:[#allocation4 + $0x370] sm:$0xff]
        %v3189 = vld [vmem:[#allocation4 + $0x378] sm:$0xff]
        %v3190 = vld [vmem:[#allocation4 + $0x380] sm:$0xff]
        %v3191 = vld [vmem:[#allocation4 + $0x388] sm:$0xff]
        %v3192 = vld [vmem:[#allocation4 + $0x390] sm:$0xff]
        %v3193 = vld [vmem:[#allocation4 + $0x398] sm:$0xff]
        %v3194 = vld [vmem:[#allocation4 + $0x3a0] sm:$0xff]
        %v3195 = vld [vmem:[#allocation4 + $0x3a8] sm:$0xff]
        %v3196 = vld [vmem:[#allocation4 + $0x3b0] sm:$0xff]
        %v3197 = vld [vmem:[#allocation4 + $0x3b8] sm:$0xff]
        %v3198 = vld [vmem:[#allocation4 + $0x3c0] sm:$0xff]
        %v3199 = vld [vmem:[#allocation4 + $0x3c8] sm:$0xff]
        %v3200 = vld [vmem:[#allocation4 + $0x3d0] sm:$0xff]
        %v3201 = vld [vmem:[#allocation4 + $0x3d8] sm:$0xff]
        %v3202 = vld [vmem:[#allocation4 + $0x3e0] sm:$0xff]
        %v3203 = vld [vmem:[#allocation4 + $0x3e8] sm:$0xff]
        %v3204 = vld [vmem:[#allocation4 + $0x3f0] sm:$0xff]
        %v3205 = vld [vmem:[#allocation4 + $0x3f8] sm:$0xff]
        %v3206 = vld [vmem:[#allocation4 + $0x400] sm:$0xff]
        %v3207 = vld [vmem:[#allocation4 + $0x408] sm:$0xff]
        %v3208 = vld [vmem:[#allocation4 + $0x410] sm:$0xff]
        %v3209 = vld [vmem:[#allocation4 + $0x418] sm:$0xff]
        %v3210 = vld [vmem:[#allocation4 + $0x420] sm:$0xff]
        %v3211 = vld [vmem:[#allocation4 + $0x428] sm:$0xff]
        %v3212 = vld [vmem:[#allocation4 + $0x430] sm:$0xff]
        %v3213 = vld [vmem:[#allocation4 + $0x438] sm:$0xff]
        %v3214 = vld [vmem:[#allocation4 + $0x440] sm:$0xff]
        %v3215 = vld [vmem:[#allocation4 + $0x448] sm:$0xff]
        %v3216 = vld [vmem:[#allocation4 + $0x450] sm:$0xff]
        %v3217 = vld [vmem:[#allocation4 + $0x458] sm:$0xff]
        %v3218 = vld [vmem:[#allocation4 + $0x460] sm:$0xff]
        %v3219 = vld [vmem:[#allocation4 + $0x468] sm:$0xff]
        %v3220 = vld [vmem:[#allocation4 + $0x470] sm:$0xff]
        %v3221 = vld [vmem:[#allocation4 + $0x478] sm:$0xff]
        %v3222 = vld [vmem:[#allocation4 + $0x480] sm:$0xff]
        %v3223 = vld [vmem:[#allocation4 + $0x488] sm:$0xff]
        %v3224 = vld [vmem:[#allocation4 + $0x490] sm:$0xff]
        %v3225 = vld [vmem:[#allocation4 + $0x498] sm:$0xff]
        %v3226 = vld [vmem:[#allocation4 + $0x4a0] sm:$0xff]
        %v3227 = vld [vmem:[#allocation4 + $0x4a8] sm:$0xff]
        %v3228 = vld [vmem:[#allocation4 + $0x4b0] sm:$0xff]
        %v3229 = vld [vmem:[#allocation4 + $0x4b8] sm:$0xff]
        %v3230 = vld [vmem:[#allocation4 + $0x4c0] sm:$0xff]
        %v3231 = vld [vmem:[#allocation4 + $0x4c8] sm:$0xff]
        %v3232 = vld [vmem:[#allocation4 + $0x4d0] sm:$0xff]
        %v3233 = vld [vmem:[#allocation4 + $0x4d8] sm:$0xff]
        %v3234 = vld [vmem:[#allocation4 + $0x4e0] sm:$0xff]
        %v3235 = vld [vmem:[#allocation4 + $0x4e8] sm:$0xff]
        %v3236 = vld [vmem:[#allocation4 + $0x4f0] sm:$0xff]
        %v3237 = vld [vmem:[#allocation4 + $0x4f8] sm:$0xff]
        %v3238 = vld [vmem:[#allocation4 + $0x500] sm:$0xff]
        %v3239 = vld [vmem:[#allocation4 + $0x508] sm:$0xff]
        %v3240 = vld [vmem:[#allocation4 + $0x510] sm:$0xff]
        %v3241 = vld [vmem:[#allocation4 + $0x518] sm:$0xff]
        %v3242 = vld [vmem:[#allocation4 + $0x520] sm:$0xff]
        %v3243 = vld [vmem:[#allocation4 + $0x528] sm:$0xff]
        %v3244 = vld [vmem:[#allocation4 + $0x530] sm:$0xff]
        %v3245 = vld [vmem:[#allocation4 + $0x538] sm:$0xff]
        %v3246 = vld [vmem:[#allocation4 + $0x540] sm:$0xff]
        %v3247 = vld [vmem:[#allocation4 + $0x548] sm:$0xff]
        %v3248 = vld [vmem:[#allocation4 + $0x550] sm:$0xff]
        %v3249 = vld [vmem:[#allocation4 + $0x558] sm:$0xff]
        %v3250 = vld [vmem:[#allocation4 + $0x560] sm:$0xff]
        %v3251 = vld [vmem:[#allocation4 + $0x568] sm:$0xff]
        %v3252 = vld [vmem:[#allocation4 + $0x570] sm:$0xff]
        %v3253 = vld [vmem:[#allocation4 + $0x578] sm:$0xff]
        %v3254 = vld [vmem:[#allocation4 + $0x580] sm:$0xff]
        %v3255 = vld [vmem:[#allocation4 + $0x588] sm:$0xff]
        %v3256 = vld [vmem:[#allocation4 + $0x590] sm:$0xff]
        %v3257 = vld [vmem:[#allocation4 + $0x598] sm:$0xff]
        %v3258 = vld [vmem:[#allocation4 + $0x5a0] sm:$0xff]
        %v3259 = vld [vmem:[#allocation4 + $0x5a8] sm:$0xff]
        %v3260 = vld [vmem:[#allocation4 + $0x5b0] sm:$0xff]
        %v3261 = vld [vmem:[#allocation4 + $0x5b8] sm:$0xff]
        %v3262 = vld [vmem:[#allocation4 + $0x5c0] sm:$0xff]
        %v3263 = vld [vmem:[#allocation4 + $0x5c8] sm:$0xff]
        %v3264 = vld [vmem:[#allocation4 + $0x5d0] sm:$0xff]
        %v3265 = vld [vmem:[#allocation4 + $0x5d8] sm:$0xff]
        %v3266 = vld [vmem:[#allocation4 + $0x5e0] sm:$0xff]
        %v3267 = vld [vmem:[#allocation4 + $0x5e8] sm:$0xff]
        %v3268 = vld [vmem:[#allocation4 + $0x5f0] sm:$0xff]
        %v3269 = vld [vmem:[#allocation4 + $0x5f8] sm:$0xff]
        %v3270 = vld [vmem:[#allocation4 + $0x600] sm:$0xff]
        %v3271 = vld [vmem:[#allocation4 + $0x608] sm:$0xff]
        %v3272 = vld [vmem:[#allocation4 + $0x610] sm:$0xff]
        %v3273 = vld [vmem:[#allocation4 + $0x618] sm:$0xff]
        %v3274 = vld [vmem:[#allocation4 + $0x620] sm:$0xff]
        %v3275 = vld [vmem:[#allocation4 + $0x628] sm:$0xff]
        %v3276 = vld [vmem:[#allocation4 + $0x630] sm:$0xff]
        %v3277 = vld [vmem:[#allocation4 + $0x638] sm:$0xff]
        %v3278 = vld [vmem:[#allocation4 + $0x640] sm:$0xff]
        %v3279 = vld [vmem:[#allocation4 + $0x648] sm:$0xff]
        %v3280 = vld [vmem:[#allocation4 + $0x650] sm:$0xff]
        %v3281 = vld [vmem:[#allocation4 + $0x658] sm:$0xff]
        %v3282 = vld [vmem:[#allocation4 + $0x660] sm:$0xff]
        %v3283 = vld [vmem:[#allocation4 + $0x668] sm:$0xff]
        %v3284 = vld [vmem:[#allocation4 + $0x670] sm:$0xff]
        %v3285 = vld [vmem:[#allocation4 + $0x678] sm:$0xff]
        %v3286 = vld [vmem:[#allocation4 + $0x680] sm:$0xff]
        %v3287 = vld [vmem:[#allocation4 + $0x688] sm:$0xff]
        %v3288 = vld [vmem:[#allocation4 + $0x690] sm:$0xff]
        %v3289 = vld [vmem:[#allocation4 + $0x698] sm:$0xff]
        %v3290 = vld [vmem:[#allocation4 + $0x6a0] sm:$0xff]
        %v3291 = vld [vmem:[#allocation4 + $0x6a8] sm:$0xff]
        %v3292 = vld [vmem:[#allocation4 + $0x6b0] sm:$0xff]
        %v3293 = vld [vmem:[#allocation4 + $0x6b8] sm:$0xff]
        %v3294 = vld [vmem:[#allocation4 + $0x6c0] sm:$0xff]
        %v3295 = vld [vmem:[#allocation4 + $0x6c8] sm:$0xff]
        %v3296 = vld [vmem:[#allocation4 + $0x6d0] sm:$0xff]
        %v3297 = vld [vmem:[#allocation4 + $0x6d8] sm:$0xff]
        %v3298 = vld [vmem:[#allocation4 + $0x6e0] sm:$0xff]
        %v3299 = vld [vmem:[#allocation4 + $0x6e8] sm:$0xff]
        %v3300 = vld [vmem:[#allocation4 + $0x6f0] sm:$0xff]
        %v3301 = vld [vmem:[#allocation4 + $0x6f8] sm:$0xff]
        %v3302 = vld [vmem:[#allocation4 + $0x700] sm:$0xff]
        %v3303 = vld [vmem:[#allocation4 + $0x708] sm:$0xff]
        %v3304 = vld [vmem:[#allocation4 + $0x710] sm:$0xff]
        %v3305 = vld [vmem:[#allocation4 + $0x718] sm:$0xff]
        %v3306 = vld [vmem:[#allocation4 + $0x720] sm:$0xff]
        %v3307 = vld [vmem:[#allocation4 + $0x728] sm:$0xff]
        %v3308 = vld [vmem:[#allocation4 + $0x730] sm:$0xff]
        %v3309 = vld [vmem:[#allocation4 + $0x738] sm:$0xff]
        %v3310 = vld [vmem:[#allocation4 + $0x740] sm:$0xff]
        %v3311 = vld [vmem:[#allocation4 + $0x748] sm:$0xff]
        %v3312 = vld [vmem:[#allocation4 + $0x750] sm:$0xff]
        %v3313 = vld [vmem:[#allocation4 + $0x758] sm:$0xff]
        %v3314 = vld [vmem:[#allocation4 + $0x760] sm:$0xff]
        %v3315 = vld [vmem:[#allocation4 + $0x768] sm:$0xff]
        %v3316 = vld [vmem:[#allocation4 + $0x770] sm:$0xff]
        %v3317 = vld [vmem:[#allocation4 + $0x778] sm:$0xff]
        %v3318 = vld [vmem:[#allocation4 + $0x780] sm:$0xff]
        %v3319 = vld [vmem:[#allocation4 + $0x788] sm:$0xff]
        %v3320 = vld [vmem:[#allocation4 + $0x790] sm:$0xff]
        %v3321 = vld [vmem:[#allocation4 + $0x798] sm:$0xff]
        %v3322 = vld [vmem:[#allocation4 + $0x7a0] sm:$0xff]
        %v3323 = vld [vmem:[#allocation4 + $0x7a8] sm:$0xff]
        %v3324 = vld [vmem:[#allocation4 + $0x7b0] sm:$0xff]
        %v3325 = vld [vmem:[#allocation4 + $0x7b8] sm:$0xff]
        %v3326 = vld [vmem:[#allocation4 + $0x7c0] sm:$0xff]
        %v3327 = vld [vmem:[#allocation4 + $0x7c8] sm:$0xff]
        %v3328 = vld [vmem:[#allocation4 + $0x7d0] sm:$0xff]
        %v3329 = vld [vmem:[#allocation4 + $0x7d8] sm:$0xff]
        %v3330 = vld [vmem:[#allocation4 + $0x7e0] sm:$0xff]
        %v3331 = vld [vmem:[#allocation4 + $0x7e8] sm:$0xff]
        %v3332 = vld [vmem:[#allocation4 + $0x7f0] sm:$0xff]
        %v3333 = vld [vmem:[#allocation4 + $0x7f8] sm:$0xff]
        %v3334 = vld [vmem:[#allocation4 + $0x800] sm:$0xff]
        %v3335 = vld [vmem:[#allocation4 + $0x808] sm:$0xff]
        %v3336 = vld [vmem:[#allocation4 + $0x810] sm:$0xff]
        %v3337 = vld [vmem:[#allocation4 + $0x818] sm:$0xff]
        %v3338 = vld [vmem:[#allocation4 + $0x820] sm:$0xff]
        %v3339 = vld [vmem:[#allocation4 + $0x828] sm:$0xff]
        %v3340 = vld [vmem:[#allocation4 + $0x830] sm:$0xff]
        %v3341 = vld [vmem:[#allocation4 + $0x838] sm:$0xff]
        %v3342 = vld [vmem:[#allocation4 + $0x840] sm:$0xff]
        %v3343 = vld [vmem:[#allocation4 + $0x848] sm:$0xff]
        %v3344 = vld [vmem:[#allocation4 + $0x850] sm:$0xff]
        %v3345 = vld [vmem:[#allocation4 + $0x858] sm:$0xff]
        %v3346 = vld [vmem:[#allocation4 + $0x860] sm:$0xff]
        %v3347 = vld [vmem:[#allocation4 + $0x868] sm:$0xff]
        %v3348 = vld [vmem:[#allocation4 + $0x870] sm:$0xff]
        %v3349 = vld [vmem:[#allocation4 + $0x878] sm:$0xff]
        %v3350 = vld [vmem:[#allocation4 + $0x880] sm:$0xff]
        %v3351 = vld [vmem:[#allocation4 + $0x888] sm:$0xff]
        %v3352 = vld [vmem:[#allocation4 + $0x890] sm:$0xff]
        %v3353 = vld [vmem:[#allocation4 + $0x898] sm:$0xff]
        %v3354 = vld [vmem:[#allocation4 + $0x8a0] sm:$0xff]
        %v3355 = vld [vmem:[#allocation4 + $0x8a8] sm:$0xff]
        %v3356 = vld [vmem:[#allocation4 + $0x8b0] sm:$0xff]
        %v3357 = vld [vmem:[#allocation4 + $0x8b8] sm:$0xff]
        %v3358 = vld [vmem:[#allocation4 + $0x8c0] sm:$0xff]
        %v3359 = vld [vmem:[#allocation4 + $0x8c8] sm:$0xff]
        %v3360 = vld [vmem:[#allocation4 + $0x8d0] sm:$0xff]
        %v3361 = vld [vmem:[#allocation4 + $0x8d8] sm:$0xff]
        %v3362 = vld [vmem:[#allocation4 + $0x8e0] sm:$0xff]
        %v3363 = vld [vmem:[#allocation4 + $0x8e8] sm:$0xff]
        %v3364 = vld [vmem:[#allocation4 + $0x8f0] sm:$0xff]
        %v3365 = vld [vmem:[#allocation4 + $0x8f8] sm:$0xff]
        %v3366 = vld [vmem:[#allocation5] sm:$0xff]
        %v3367 = vld [vmem:[#allocation5 + $0x8] sm:$0xff]
        %v3368 = vld [vmem:[#allocation5 + $0x10] sm:$0xff]
        %v3369 = vld [vmem:[#allocation5 + $0x18] sm:$0xff]
        %v3370 = vld [vmem:[#allocation5 + $0x20] sm:$0xff]
        %v3371 = vld [vmem:[#allocation5 + $0x28] sm:$0xff]
        %v3372 = vld [vmem:[#allocation5 + $0x30] sm:$0xff]
        %v3373 = vld [vmem:[#allocation5 + $0x38] sm:$0xff]
        %v3374 = vld [vmem:[#allocation5 + $0x40] sm:$0xff]
        %v3375 = vld [vmem:[#allocation5 + $0x48] sm:$0xff]
        %v3376 = vld [vmem:[#allocation5 + $0x50] sm:$0xff]
        %v3377 = vld [vmem:[#allocation5 + $0x58] sm:$0xff]
        %v3378 = vld [vmem:[#allocation5 + $0x60] sm:$0xff]
        %v3379 = vld [vmem:[#allocation5 + $0x68] sm:$0xff]
        %v3380 = vld [vmem:[#allocation5 + $0x70] sm:$0xff]
        %v3381 = vld [vmem:[#allocation5 + $0x78] sm:$0xff]
        %v3382 = vld [vmem:[#allocation5 + $0x80] sm:$0xff]
        %v3383 = vld [vmem:[#allocation5 + $0x88] sm:$0xff]
        %v3384 = vld [vmem:[#allocation5 + $0x90] sm:$0xff]
        %v3385 = vld [vmem:[#allocation5 + $0x98] sm:$0xff]
        %v3386 = vld [vmem:[#allocation5 + $0xa0] sm:$0xff]
        %v3387 = vld [vmem:[#allocation5 + $0xa8] sm:$0xff]
        %v3388 = vld [vmem:[#allocation5 + $0xb0] sm:$0xff]
        %v3389 = vld [vmem:[#allocation5 + $0xb8] sm:$0xff]
        %v3390 = vld [vmem:[#allocation5 + $0xc0] sm:$0xff]
        %v3391 = vld [vmem:[#allocation5 + $0xc8] sm:$0xff]
        %v3392 = vld [vmem:[#allocation5 + $0xd0] sm:$0xff]
        %v3393 = vld [vmem:[#allocation5 + $0xd8] sm:$0xff]
        %v3394 = vld [vmem:[#allocation5 + $0xe0] sm:$0xff]
        %v3395 = vld [vmem:[#allocation5 + $0xe8] sm:$0xff]
        %v3396 = vld [vmem:[#allocation5 + $0xf0] sm:$0xff]
        %v3397 = vld [vmem:[#allocation5 + $0xf8] sm:$0xff]
        %v3398 = vld [vmem:[#allocation5 + $0x100] sm:$0xff]
        %v3399 = vld [vmem:[#allocation5 + $0x108] sm:$0xff]
        %v3400 = vld [vmem:[#allocation5 + $0x110] sm:$0xff]
        %v3401 = vld [vmem:[#allocation5 + $0x118] sm:$0xff]
        %v3402 = vld [vmem:[#allocation5 + $0x120] sm:$0xff]
        %v3403 = vld [vmem:[#allocation5 + $0x128] sm:$0xff]
        %v3404 = vld [vmem:[#allocation5 + $0x130] sm:$0xff]
        %v3405 = vld [vmem:[#allocation5 + $0x138] sm:$0xff]
        %v3406 = vld [vmem:[#allocation5 + $0x140] sm:$0xff]
        %v3407 = vld [vmem:[#allocation5 + $0x148] sm:$0xff]
        %v3408 = vld [vmem:[#allocation5 + $0x150] sm:$0xff]
        %v3409 = vld [vmem:[#allocation5 + $0x158] sm:$0xff]
        %v3410 = vld [vmem:[#allocation5 + $0x160] sm:$0xff]
        %v3411 = vld [vmem:[#allocation5 + $0x168] sm:$0xff]
        %v3412 = vld [vmem:[#allocation5 + $0x170] sm:$0xff]
        %v3413 = vld [vmem:[#allocation5 + $0x178] sm:$0xff]
        %v3414 = vld [vmem:[#allocation5 + $0x180] sm:$0xff]
        %v3415 = vld [vmem:[#allocation5 + $0x188] sm:$0xff]
        %v3416 = vld [vmem:[#allocation5 + $0x190] sm:$0xff]
        %v3417 = vld [vmem:[#allocation5 + $0x198] sm:$0xff]
        %v3418 = vld [vmem:[#allocation5 + $0x1a0] sm:$0xff]
        %v3419 = vld [vmem:[#allocation5 + $0x1a8] sm:$0xff]
        %v3420 = vld [vmem:[#allocation5 + $0x1b0] sm:$0xff]
        %v3421 = vld [vmem:[#allocation5 + $0x1b8] sm:$0xff]
        %v3422 = vld [vmem:[#allocation5 + $0x1c0] sm:$0xff]
        %v3423 = vld [vmem:[#allocation5 + $0x1c8] sm:$0xff]
        %v3424 = vld [vmem:[#allocation5 + $0x1d0] sm:$0xff]
        %v3425 = vld [vmem:[#allocation5 + $0x1d8] sm:$0xff]
        %v3426 = vld [vmem:[#allocation5 + $0x1e0] sm:$0xff]
        %v3427 = vld [vmem:[#allocation5 + $0x1e8] sm:$0xff]
        %v3428 = vld [vmem:[#allocation5 + $0x1f0] sm:$0xff]
        %v3429 = vld [vmem:[#allocation5 + $0x1f8] sm:$0xff]
        %v3430 = vld [vmem:[#allocation5 + $0x200] sm:$0xff]
        %v3431 = vld [vmem:[#allocation5 + $0x208] sm:$0xff]
        %v3432 = vld [vmem:[#allocation5 + $0x210] sm:$0xff]
        %v3433 = vld [vmem:[#allocation5 + $0x218] sm:$0xff]
        %v3434 = vld [vmem:[#allocation5 + $0x220] sm:$0xff]
        %v3435 = vld [vmem:[#allocation5 + $0x228] sm:$0xff]
        %v3436 = vld [vmem:[#allocation5 + $0x230] sm:$0xff]
        %v3437 = vld [vmem:[#allocation5 + $0x238] sm:$0xff]
        %v3438 = vld [vmem:[#allocation5 + $0x240] sm:$0xff]
        %v3439 = vld [vmem:[#allocation5 + $0x248] sm:$0xff]
        %v3440 = vld [vmem:[#allocation5 + $0x250] sm:$0xff]
        %v3441 = vld [vmem:[#allocation5 + $0x258] sm:$0xff]
        %v3442 = vld [vmem:[#allocation5 + $0x260] sm:$0xff]
        %v3443 = vld [vmem:[#allocation5 + $0x268] sm:$0xff]
        %v3444 = vld [vmem:[#allocation5 + $0x270] sm:$0xff]
        %v3445 = vld [vmem:[#allocation5 + $0x278] sm:$0xff]
        %v3446 = vld [vmem:[#allocation5 + $0x280] sm:$0xff]
        %v3447 = vld [vmem:[#allocation5 + $0x288] sm:$0xff]
        %v3448 = vld [vmem:[#allocation5 + $0x290] sm:$0xff]
        %v3449 = vld [vmem:[#allocation5 + $0x298] sm:$0xff]
        %v3450 = vld [vmem:[#allocation5 + $0x2a0] sm:$0xff]
        %v3451 = vld [vmem:[#allocation5 + $0x2a8] sm:$0xff]
        %v3452 = vld [vmem:[#allocation5 + $0x2b0] sm:$0xff]
        %v3453 = vld [vmem:[#allocation5 + $0x2b8] sm:$0xff]
        %v3454 = vld [vmem:[#allocation5 + $0x2c0] sm:$0xff]
        %v3455 = vld [vmem:[#allocation5 + $0x2c8] sm:$0xff]
        %v3456 = vld [vmem:[#allocation5 + $0x2d0] sm:$0xff]
        %v3457 = vld [vmem:[#allocation5 + $0x2d8] sm:$0xff]
        %v3458 = vld [vmem:[#allocation5 + $0x2e0] sm:$0xff]
        %v3459 = vld [vmem:[#allocation5 + $0x2e8] sm:$0xff]
        %v3460 = vld [vmem:[#allocation5 + $0x2f0] sm:$0xff]
        %v3461 = vld [vmem:[#allocation5 + $0x2f8] sm:$0xff]
        %v3462 = vld [vmem:[#allocation5 + $0x300] sm:$0xff]
        %v3463 = vld [vmem:[#allocation5 + $0x308] sm:$0xff]
        %v3464 = vld [vmem:[#allocation5 + $0x310] sm:$0xff]
        %v3465 = vld [vmem:[#allocation5 + $0x318] sm:$0xff]
        %v3466 = vld [vmem:[#allocation5 + $0x320] sm:$0xff]
        %v3467 = vld [vmem:[#allocation5 + $0x328] sm:$0xff]
        %v3468 = vld [vmem:[#allocation5 + $0x330] sm:$0xff]
        %v3469 = vld [vmem:[#allocation5 + $0x338] sm:$0xff]
        %v3470 = vld [vmem:[#allocation5 + $0x340] sm:$0xff]
        %v3471 = vld [vmem:[#allocation5 + $0x348] sm:$0xff]
        %v3472 = vld [vmem:[#allocation5 + $0x350] sm:$0xff]
        %v3473 = vld [vmem:[#allocation5 + $0x358] sm:$0xff]
        %v3474 = vld [vmem:[#allocation5 + $0x360] sm:$0xff]
        %v3475 = vld [vmem:[#allocation5 + $0x368] sm:$0xff]
        %v3476 = vld [vmem:[#allocation5 + $0x370] sm:$0xff]
        %v3477 = vld [vmem:[#allocation5 + $0x378] sm:$0xff]
        %v3478 = vld [vmem:[#allocation5 + $0x380] sm:$0xff]
        %v3479 = vld [vmem:[#allocation5 + $0x388] sm:$0xff]
        %v3480 = vld [vmem:[#allocation5 + $0x390] sm:$0xff]
        %v3481 = vld [vmem:[#allocation5 + $0x398] sm:$0xff]
        %v3482 = vld [vmem:[#allocation5 + $0x3a0] sm:$0xff]
        %v3483 = vld [vmem:[#allocation5 + $0x3a8] sm:$0xff]
        %v3484 = vld [vmem:[#allocation5 + $0x3b0] sm:$0xff]
        %v3485 = vld [vmem:[#allocation5 + $0x3b8] sm:$0xff]
        %v3486 = vld [vmem:[#allocation5 + $0x3c0] sm:$0xff]
        %v3487 = vld [vmem:[#allocation5 + $0x3c8] sm:$0xff]
        %v3488 = vld [vmem:[#allocation5 + $0x3d0] sm:$0xff]
        %v3489 = vld [vmem:[#allocation5 + $0x3d8] sm:$0xff]
        %v3490 = vld [vmem:[#allocation5 + $0x3e0] sm:$0xff]
        %v3491 = vld [vmem:[#allocation5 + $0x3e8] sm:$0xff]
        %v3492 = vld [vmem:[#allocation5 + $0x3f0] sm:$0xff]
        %v3493 = vld [vmem:[#allocation5 + $0x3f8] sm:$0xff]
        %v3494 = vld [vmem:[#allocation5 + $0x400] sm:$0xff]
        %v3495 = vld [vmem:[#allocation5 + $0x408] sm:$0xff]
        %v3496 = vld [vmem:[#allocation5 + $0x410] sm:$0xff]
        %v3497 = vld [vmem:[#allocation5 + $0x418] sm:$0xff]
        %v3498 = vld [vmem:[#allocation5 + $0x420] sm:$0xff]
        %v3499 = vld [vmem:[#allocation5 + $0x428] sm:$0xff]
        %v3500 = vld [vmem:[#allocation5 + $0x430] sm:$0xff]
        %v3501 = vld [vmem:[#allocation5 + $0x438] sm:$0xff]
        %v3502 = vld [vmem:[#allocation5 + $0x440] sm:$0xff]
        %v3503 = vld [vmem:[#allocation5 + $0x448] sm:$0xff]
        %v3504 = vld [vmem:[#allocation5 + $0x450] sm:$0xff]
        %v3505 = vld [vmem:[#allocation5 + $0x458] sm:$0xff]
        %v3506 = vld [vmem:[#allocation5 + $0x460] sm:$0xff]
        %v3507 = vld [vmem:[#allocation5 + $0x468] sm:$0xff]
        %v3508 = vld [vmem:[#allocation5 + $0x470] sm:$0xff]
        %v3509 = vld [vmem:[#allocation5 + $0x478] sm:$0xff]
        %3510 = vmatpush.msra.mxu0 %v3381
        %3511 = vmatpush.msra.mxu0 %v3380
        %3512 = vmatpush.msra.mxu0 %v3379
        %3513 = vmatpush.msra.mxu0 %v3378
        %3514 = vmatpush.msra.mxu0 %v3377
        %3515 = vmatpush.msra.mxu0 %v3376
        %3516 = vmatpush.msra.mxu0 %v3375
        %3517 = vmatpush.msra.mxu0 %v3374
        %3518 = vmatpush.msra.mxu0 %v3373
        %3519 = vmatpush.msra.mxu0 %v3372
        %3520 = vmatpush.msra.mxu0 %v3371
        %3521 = vmatpush.msra.mxu0 %v3370
        %3522 = vmatpush.msra.mxu0 %v3369
        %3523 = vmatpush.msra.mxu0 %v3368
        %3524 = vmatpush.msra.mxu0 %v3367
        %3525 = vmatpush.msra.mxu0 %v3366
        %3526 = vmatmul.f32.gmra.mxu0 %v3078
        %v3527 = vpop.f32.mrf.mxu0
        %v3528 = vadd.f32 0.0, %v3527
        %3529 = vmatmul.f32.gmra.mxu0 %v3087
        %v3530 = vpop.f32.mrf.mxu0
        %v3531 = vadd.f32 0.0, %v3530
        %3532 = vmatmul.f32.gmra.mxu0 %v3096
        %v3533 = vpop.f32.mrf.mxu0
        %v3534 = vadd.f32 0.0, %v3533
        %3535 = vmatmul.f32.gmra.mxu0 %v3105
        %v3536 = vpop.f32.mrf.mxu0
        %v3537 = vadd.f32 0.0, %v3536
        %3538 = vmatmul.f32.gmra.mxu0 %v3114
        %v3539 = vpop.f32.mrf.mxu0
        %v3540 = vadd.f32 0.0, %v3539
        %3541 = vmatmul.f32.gmra.mxu0 %v3123
        %v3542 = vpop.f32.mrf.mxu0
        %v3543 = vadd.f32 0.0, %v3542
        %3544 = vmatmul.f32.gmra.mxu0 %v3132
        %v3545 = vpop.f32.mrf.mxu0
        %v3546 = vadd.f32 0.0, %v3545
        %3547 = vmatmul.f32.gmra.mxu0 %v3141
        %v3548 = vpop.f32.mrf.mxu0
        %v3549 = vadd.f32 0.0, %v3548
        %3550 = vmatmul.f32.gmra.mxu0 %v3150
        %v3551 = vpop.f32.mrf.mxu0
        %v3552 = vadd.f32 0.0, %v3551
        %3553 = vmatmul.f32.gmra.mxu0 %v3159
        %v3554 = vpop.f32.mrf.mxu0
        %v3555 = vadd.f32 0.0, %v3554
        %3556 = vmatmul.f32.gmra.mxu0 %v3168
        %v3557 = vpop.f32.mrf.mxu0
        %v3558 = vadd.f32 0.0, %v3557
        %3559 = vmatmul.f32.gmra.mxu0 %v3177
        %v3560 = vpop.f32.mrf.mxu0
        %v3561 = vadd.f32 0.0, %v3560
        %3562 = vmatmul.f32.gmra.mxu0 %v3186
        %v3563 = vpop.f32.mrf.mxu0
        %v3564 = vadd.f32 0.0, %v3563
        %3565 = vmatmul.f32.gmra.mxu0 %v3195
        %v3566 = vpop.f32.mrf.mxu0
        %v3567 = vadd.f32 0.0, %v3566
        %3568 = vmatmul.f32.gmra.mxu0 %v3204
        %v3569 = vpop.f32.mrf.mxu0
        %v3570 = vadd.f32 0.0, %v3569
        %3571 = vmatmul.f32.gmra.mxu0 %v3213
        %v3572 = vpop.f32.mrf.mxu0
        %v3573 = vadd.f32 0.0, %v3572
        %3574 = vmatmul.f32.gmra.mxu0 %v3222
        %v3575 = vpop.f32.mrf.mxu0
        %v3576 = vadd.f32 0.0, %v3575
        %3577 = vmatmul.f32.gmra.mxu0 %v3231
        %v3578 = vpop.f32.mrf.mxu0
        %v3579 = vadd.f32 0.0, %v3578
        %3580 = vmatmul.f32.gmra.mxu0 %v3240
        %v3581 = vpop.f32.mrf.mxu0
        %v3582 = vadd.f32 0.0, %v3581
        %3583 = vmatmul.f32.gmra.mxu0 %v3249
        %v3584 = vpop.f32.mrf.mxu0
        %v3585 = vadd.f32 0.0, %v3584
        %3586 = vmatmul.f32.gmra.mxu0 %v3258
        %v3587 = vpop.f32.mrf.mxu0
        %v3588 = vadd.f32 0.0, %v3587
        %3589 = vmatmul.f32.gmra.mxu0 %v3267
        %v3590 = vpop.f32.mrf.mxu0
        %v3591 = vadd.f32 0.0, %v3590
        %3592 = vmatmul.f32.gmra.mxu0 %v3276
        %v3593 = vpop.f32.mrf.mxu0
        %v3594 = vadd.f32 0.0, %v3593
        %3595 = vmatmul.f32.gmra.mxu0 %v3285
        %v3596 = vpop.f32.mrf.mxu0
        %v3597 = vadd.f32 0.0, %v3596
        %3598 = vmatmul.f32.gmra.mxu0 %v3294
        %v3599 = vpop.f32.mrf.mxu0
        %v3600 = vadd.f32 0.0, %v3599
        %3601 = vmatmul.f32.gmra.mxu0 %v3303
        %v3602 = vpop.f32.mrf.mxu0
        %v3603 = vadd.f32 0.0, %v3602
        %3604 = vmatmul.f32.gmra.mxu0 %v3312
        %v3605 = vpop.f32.mrf.mxu0
        %v3606 = vadd.f32 0.0, %v3605
        %3607 = vmatmul.f32.gmra.mxu0 %v3321
        %v3608 = vpop.f32.mrf.mxu0
        %v3609 = vadd.f32 0.0, %v3608
        %3610 = vmatmul.f32.gmra.mxu0 %v3330
        %v3611 = vpop.f32.mrf.mxu0
        %v3612 = vadd.f32 0.0, %v3611
        %3613 = vmatmul.f32.gmra.mxu0 %v3339
        %v3614 = vpop.f32.mrf.mxu0
        %v3615 = vadd.f32 0.0, %v3614
        %3616 = vmatmul.f32.gmra.mxu0 %v3348
        %v3617 = vpop.f32.mrf.mxu0
        %v3618 = vadd.f32 0.0, %v3617
        %3619 = vmatmul.f32.gmra.mxu0 %v3357
        %v3620 = vpop.f32.mrf.mxu0
        %v3621 = vadd.f32 0.0, %v3620
        %3622 = vdwg.mxu0
        %3623 = vmatpush.msra.mxu0 %v3397
        %3624 = vmatpush.msra.mxu0 %v3396
        %3625 = vmatpush.msra.mxu0 %v3395
        %3626 = vmatpush.msra.mxu0 %v3394
        %3627 = vmatpush.msra.mxu0 %v3393
        %3628 = vmatpush.msra.mxu0 %v3392
        %3629 = vmatpush.msra.mxu0 %v3391
        %3630 = vmatpush.msra.mxu0 %v3390
        %3631 = vmatpush.msra.mxu0 %v3389
        %3632 = vmatpush.msra.mxu0 %v3388
        %3633 = vmatpush.msra.mxu0 %v3387
        %3634 = vmatpush.msra.mxu0 %v3386
        %3635 = vmatpush.msra.mxu0 %v3385
        %3636 = vmatpush.msra.mxu0 %v3384
        %3637 = vmatpush.msra.mxu0 %v3383
        %3638 = vmatpush.msra.mxu0 %v3382
        %3639 = vmatmul.f32.gmra.mxu0 %v3079
        %v3640 = vpop.f32.mrf.mxu0
        %v3641 = vadd.f32 %v3528, %v3640
        %3642 = vmatmul.f32.gmra.mxu0 %v3088
        %v3643 = vpop.f32.mrf.mxu0
        %v3644 = vadd.f32 %v3531, %v3643
        %3645 = vmatmul.f32.gmra.mxu0 %v3097
        %v3646 = vpop.f32.mrf.mxu0
        %v3647 = vadd.f32 %v3534, %v3646
        %3648 = vmatmul.f32.gmra.mxu0 %v3106
        %v3649 = vpop.f32.mrf.mxu0
        %v3650 = vadd.f32 %v3537, %v3649
        %3651 = vmatmul.f32.gmra.mxu0 %v3115
        %v3652 = vpop.f32.mrf.mxu0
        %v3653 = vadd.f32 %v3540, %v3652
        %3654 = vmatmul.f32.gmra.mxu0 %v3124
        %v3655 = vpop.f32.mrf.mxu0
        %v3656 = vadd.f32 %v3543, %v3655
        %3657 = vmatmul.f32.gmra.mxu0 %v3133
        %v3658 = vpop.f32.mrf.mxu0
        %v3659 = vadd.f32 %v3546, %v3658
        %3660 = vmatmul.f32.gmra.mxu0 %v3142
        %v3661 = vpop.f32.mrf.mxu0
        %v3662 = vadd.f32 %v3549, %v3661
        %3663 = vmatmul.f32.gmra.mxu0 %v3151
        %v3664 = vpop.f32.mrf.mxu0
        %v3665 = vadd.f32 %v3552, %v3664
        %3666 = vmatmul.f32.gmra.mxu0 %v3160
        %v3667 = vpop.f32.mrf.mxu0
        %v3668 = vadd.f32 %v3555, %v3667
        %3669 = vmatmul.f32.gmra.mxu0 %v3169
        %v3670 = vpop.f32.mrf.mxu0
        %v3671 = vadd.f32 %v3558, %v3670
        %3672 = vmatmul.f32.gmra.mxu0 %v3178
        %v3673 = vpop.f32.mrf.mxu0
        %v3674 = vadd.f32 %v3561, %v3673
        %3675 = vmatmul.f32.gmra.mxu0 %v3187
        %v3676 = vpop.f32.mrf.mxu0
        %v3677 = vadd.f32 %v3564, %v3676
        %3678 = vmatmul.f32.gmra.mxu0 %v3196
        %v3679 = vpop.f32.mrf.mxu0
        %v3680 = vadd.f32 %v3567, %v3679
        %3681 = vmatmul.f32.gmra.mxu0 %v3205
        %v3682 = vpop.f32.mrf.mxu0
        %v3683 = vadd.f32 %v3570, %v3682
        %3684 = vmatmul.f32.gmra.mxu0 %v3214
        %v3685 = vpop.f32.mrf.mxu0
        %v3686 = vadd.f32 %v3573, %v3685
        %3687 = vmatmul.f32.gmra.mxu0 %v3223
        %v3688 = vpop.f32.mrf.mxu0
        %v3689 = vadd.f32 %v3576, %v3688
        %3690 = vmatmul.f32.gmra.mxu0 %v3232
        %v3691 = vpop.f32.mrf.mxu0
        %v3692 = vadd.f32 %v3579, %v3691
        %3693 = vmatmul.f32.gmra.mxu0 %v3241
        %v3694 = vpop.f32.mrf.mxu0
        %v3695 = vadd.f32 %v3582, %v3694
        %3696 = vmatmul.f32.gmra.mxu0 %v3250
        %v3697 = vpop.f32.mrf.mxu0
        %v3698 = vadd.f32 %v3585, %v3697
        %3699 = vmatmul.f32.gmra.mxu0 %v3259
        %v3700 = vpop.f32.mrf.mxu0
        %v3701 = vadd.f32 %v3588, %v3700
        %3702 = vmatmul.f32.gmra.mxu0 %v3268
        %v3703 = vpop.f32.mrf.mxu0
        %v3704 = vadd.f32 %v3591, %v3703
        %3705 = vmatmul.f32.gmra.mxu0 %v3277
        %v3706 = vpop.f32.mrf.mxu0
        %v3707 = vadd.f32 %v3594, %v3706
        %3708 = vmatmul.f32.gmra.mxu0 %v3286
        %v3709 = vpop.f32.mrf.mxu0
        %v3710 = vadd.f32 %v3597, %v3709
        %3711 = vmatmul.f32.gmra.mxu0 %v3295
        %v3712 = vpop.f32.mrf.mxu0
        %v3713 = vadd.f32 %v3600, %v3712
        %3714 = vmatmul.f32.gmra.mxu0 %v3304
        %v3715 = vpop.f32.mrf.mxu0
        %v3716 = vadd.f32 %v3603, %v3715
        %3717 = vmatmul.f32.gmra.mxu0 %v3313
        %v3718 = vpop.f32.mrf.mxu0
        %v3719 = vadd.f32 %v3606, %v3718
        %3720 = vmatmul.f32.gmra.mxu0 %v3322
        %v3721 = vpop.f32.mrf.mxu0
        %v3722 = vadd.f32 %v3609, %v3721
        %3723 = vmatmul.f32.gmra.mxu0 %v3331
        %v3724 = vpop.f32.mrf.mxu0
        %v3725 = vadd.f32 %v3612, %v3724
        %3726 = vmatmul.f32.gmra.mxu0 %v3340
        %v3727 = vpop.f32.mrf.mxu0
        %v3728 = vadd.f32 %v3615, %v3727
        %3729 = vmatmul.f32.gmra.mxu0 %v3349
        %v3730 = vpop.f32.mrf.mxu0
        %v3731 = vadd.f32 %v3618, %v3730
        %3732 = vmatmul.f32.gmra.mxu0 %v3358
        %v3733 = vpop.f32.mrf.mxu0
        %v3734 = vadd.f32 %v3621, %v3733
        %3735 = vdwg.mxu0
        %3736 = vmatpush.msra.mxu0 %v3413
        %3737 = vmatpush.msra.mxu0 %v3412
        %3738 = vmatpush.msra.mxu0 %v3411
        %3739 = vmatpush.msra.mxu0 %v3410
        %3740 = vmatpush.msra.mxu0 %v3409
        %3741 = vmatpush.msra.mxu0 %v3408
        %3742 = vmatpush.msra.mxu0 %v3407
        %3743 = vmatpush.msra.mxu0 %v3406
        %3744 = vmatpush.msra.mxu0 %v3405
        %3745 = vmatpush.msra.mxu0 %v3404
        %3746 = vmatpush.msra.mxu0 %v3403
        %3747 = vmatpush.msra.mxu0 %v3402
        %3748 = vmatpush.msra.mxu0 %v3401
        %3749 = vmatpush.msra.mxu0 %v3400
        %3750 = vmatpush.msra.mxu0 %v3399
        %3751 = vmatpush.msra.mxu0 %v3398
        %3752 = vmatmul.f32.gmra.mxu0 %v3080
        %v3753 = vpop.f32.mrf.mxu0
        %v3754 = vadd.f32 %v3641, %v3753
        %3755 = vmatmul.f32.gmra.mxu0 %v3089
        %v3756 = vpop.f32.mrf.mxu0
        %v3757 = vadd.f32 %v3644, %v3756
        %3758 = vmatmul.f32.gmra.mxu0 %v3098
        %v3759 = vpop.f32.mrf.mxu0
        %v3760 = vadd.f32 %v3647, %v3759
        %3761 = vmatmul.f32.gmra.mxu0 %v3107
        %v3762 = vpop.f32.mrf.mxu0
        %v3763 = vadd.f32 %v3650, %v3762
        %3764 = vmatmul.f32.gmra.mxu0 %v3116
        %v3765 = vpop.f32.mrf.mxu0
        %v3766 = vadd.f32 %v3653, %v3765
        %3767 = vmatmul.f32.gmra.mxu0 %v3125
        %v3768 = vpop.f32.mrf.mxu0
        %v3769 = vadd.f32 %v3656, %v3768
        %3770 = vmatmul.f32.gmra.mxu0 %v3134
        %v3771 = vpop.f32.mrf.mxu0
        %v3772 = vadd.f32 %v3659, %v3771
        %3773 = vmatmul.f32.gmra.mxu0 %v3143
        %v3774 = vpop.f32.mrf.mxu0
        %v3775 = vadd.f32 %v3662, %v3774
        %3776 = vmatmul.f32.gmra.mxu0 %v3152
        %v3777 = vpop.f32.mrf.mxu0
        %v3778 = vadd.f32 %v3665, %v3777
        %3779 = vmatmul.f32.gmra.mxu0 %v3161
        %v3780 = vpop.f32.mrf.mxu0
        %v3781 = vadd.f32 %v3668, %v3780
        %3782 = vmatmul.f32.gmra.mxu0 %v3170
        %v3783 = vpop.f32.mrf.mxu0
        %v3784 = vadd.f32 %v3671, %v3783
        %3785 = vmatmul.f32.gmra.mxu0 %v3179
        %v3786 = vpop.f32.mrf.mxu0
        %v3787 = vadd.f32 %v3674, %v3786
        %3788 = vmatmul.f32.gmra.mxu0 %v3188
        %v3789 = vpop.f32.mrf.mxu0
        %v3790 = vadd.f32 %v3677, %v3789
        %3791 = vmatmul.f32.gmra.mxu0 %v3197
        %v3792 = vpop.f32.mrf.mxu0
        %v3793 = vadd.f32 %v3680, %v3792
        %3794 = vmatmul.f32.gmra.mxu0 %v3206
        %v3795 = vpop.f32.mrf.mxu0
        %v3796 = vadd.f32 %v3683, %v3795
        %3797 = vmatmul.f32.gmra.mxu0 %v3215
        %v3798 = vpop.f32.mrf.mxu0
        %v3799 = vadd.f32 %v3686, %v3798
        %3800 = vmatmul.f32.gmra.mxu0 %v3224
        %v3801 = vpop.f32.mrf.mxu0
        %v3802 = vadd.f32 %v3689, %v3801
        %3803 = vmatmul.f32.gmra.mxu0 %v3233
        %v3804 = vpop.f32.mrf.mxu0
        %v3805 = vadd.f32 %v3692, %v3804
        %3806 = vmatmul.f32.gmra.mxu0 %v3242
        %v3807 = vpop.f32.mrf.mxu0
        %v3808 = vadd.f32 %v3695, %v3807
        %3809 = vmatmul.f32.gmra.mxu0 %v3251
        %v3810 = vpop.f32.mrf.mxu0
        %v3811 = vadd.f32 %v3698, %v3810
        %3812 = vmatmul.f32.gmra.mxu0 %v3260
        %v3813 = vpop.f32.mrf.mxu0
        %v3814 = vadd.f32 %v3701, %v3813
        %3815 = vmatmul.f32.gmra.mxu0 %v3269
        %v3816 = vpop.f32.mrf.mxu0
        %v3817 = vadd.f32 %v3704, %v3816
        %3818 = vmatmul.f32.gmra.mxu0 %v3278
        %v3819 = vpop.f32.mrf.mxu0
        %v3820 = vadd.f32 %v3707, %v3819
        %3821 = vmatmul.f32.gmra.mxu0 %v3287
        %v3822 = vpop.f32.mrf.mxu0
        %v3823 = vadd.f32 %v3710, %v3822
        %3824 = vmatmul.f32.gmra.mxu0 %v3296
        %v3825 = vpop.f32.mrf.mxu0
        %v3826 = vadd.f32 %v3713, %v3825
        %3827 = vmatmul.f32.gmra.mxu0 %v3305
        %v3828 = vpop.f32.mrf.mxu0
        %v3829 = vadd.f32 %v3716, %v3828
        %3830 = vmatmul.f32.gmra.mxu0 %v3314
        %v3831 = vpop.f32.mrf.mxu0
        %v3832 = vadd.f32 %v3719, %v3831
        %3833 = vmatmul.f32.gmra.mxu0 %v3323
        %v3834 = vpop.f32.mrf.mxu0
        %v3835 = vadd.f32 %v3722, %v3834
        %3836 = vmatmul.f32.gmra.mxu0 %v3332
        %v3837 = vpop.f32.mrf.mxu0
        %v3838 = vadd.f32 %v3725, %v3837
        %3839 = vmatmul.f32.gmra.mxu0 %v3341
        %v3840 = vpop.f32.mrf.mxu0
        %v3841 = vadd.f32 %v3728, %v3840
        %3842 = vmatmul.f32.gmra.mxu0 %v3350
        %v3843 = vpop.f32.mrf.mxu0
        %v3844 = vadd.f32 %v3731, %v3843
        %3845 = vmatmul.f32.gmra.mxu0 %v3359
        %v3846 = vpop.f32.mrf.mxu0
        %v3847 = vadd.f32 %v3734, %v3846
        %3848 = vdwg.mxu0
        %3849 = vmatpush.msra.mxu0 %v3429
        %3850 = vmatpush.msra.mxu0 %v3428
        %3851 = vmatpush.msra.mxu0 %v3427
        %3852 = vmatpush.msra.mxu0 %v3426
        %3853 = vmatpush.msra.mxu0 %v3425
        %3854 = vmatpush.msra.mxu0 %v3424
        %3855 = vmatpush.msra.mxu0 %v3423
        %3856 = vmatpush.msra.mxu0 %v3422
        %3857 = vmatpush.msra.mxu0 %v3421
        %3858 = vmatpush.msra.mxu0 %v3420
        %3859 = vmatpush.msra.mxu0 %v3419
        %3860 = vmatpush.msra.mxu0 %v3418
        %3861 = vmatpush.msra.mxu0 %v3417
        %3862 = vmatpush.msra.mxu0 %v3416
        %3863 = vmatpush.msra.mxu0 %v3415
        %3864 = vmatpush.msra.mxu0 %v3414
        %3865 = vmatmul.f32.gmra.mxu0 %v3081
        %v3866 = vpop.f32.mrf.mxu0
        %v3867 = vadd.f32 %v3754, %v3866
        %3868 = vmatmul.f32.gmra.mxu0 %v3090
        %v3869 = vpop.f32.mrf.mxu0
        %v3870 = vadd.f32 %v3757, %v3869
        %3871 = vmatmul.f32.gmra.mxu0 %v3099
        %v3872 = vpop.f32.mrf.mxu0
        %v3873 = vadd.f32 %v3760, %v3872
        %3874 = vmatmul.f32.gmra.mxu0 %v3108
        %v3875 = vpop.f32.mrf.mxu0
        %v3876 = vadd.f32 %v3763, %v3875
        %3877 = vmatmul.f32.gmra.mxu0 %v3117
        %v3878 = vpop.f32.mrf.mxu0
        %v3879 = vadd.f32 %v3766, %v3878
        %3880 = vmatmul.f32.gmra.mxu0 %v3126
        %v3881 = vpop.f32.mrf.mxu0
        %v3882 = vadd.f32 %v3769, %v3881
        %3883 = vmatmul.f32.gmra.mxu0 %v3135
        %v3884 = vpop.f32.mrf.mxu0
        %v3885 = vadd.f32 %v3772, %v3884
        %3886 = vmatmul.f32.gmra.mxu0 %v3144
        %v3887 = vpop.f32.mrf.mxu0
        %v3888 = vadd.f32 %v3775, %v3887
        %3889 = vmatmul.f32.gmra.mxu0 %v3153
        %v3890 = vpop.f32.mrf.mxu0
        %v3891 = vadd.f32 %v3778, %v3890
        %3892 = vmatmul.f32.gmra.mxu0 %v3162
        %v3893 = vpop.f32.mrf.mxu0
        %v3894 = vadd.f32 %v3781, %v3893
        %3895 = vmatmul.f32.gmra.mxu0 %v3171
        %v3896 = vpop.f32.mrf.mxu0
        %v3897 = vadd.f32 %v3784, %v3896
        %3898 = vmatmul.f32.gmra.mxu0 %v3180
        %v3899 = vpop.f32.mrf.mxu0
        %v3900 = vadd.f32 %v3787, %v3899
        %3901 = vmatmul.f32.gmra.mxu0 %v3189
        %v3902 = vpop.f32.mrf.mxu0
        %v3903 = vadd.f32 %v3790, %v3902
        %3904 = vmatmul.f32.gmra.mxu0 %v3198
        %v3905 = vpop.f32.mrf.mxu0
        %v3906 = vadd.f32 %v3793, %v3905
        %3907 = vmatmul.f32.gmra.mxu0 %v3207
        %v3908 = vpop.f32.mrf.mxu0
        %v3909 = vadd.f32 %v3796, %v3908
        %3910 = vmatmul.f32.gmra.mxu0 %v3216
        %v3911 = vpop.f32.mrf.mxu0
        %v3912 = vadd.f32 %v3799, %v3911
        %3913 = vmatmul.f32.gmra.mxu0 %v3225
        %v3914 = vpop.f32.mrf.mxu0
        %v3915 = vadd.f32 %v3802, %v3914
        %3916 = vmatmul.f32.gmra.mxu0 %v3234
        %v3917 = vpop.f32.mrf.mxu0
        %v3918 = vadd.f32 %v3805, %v3917
        %3919 = vmatmul.f32.gmra.mxu0 %v3243
        %v3920 = vpop.f32.mrf.mxu0
        %v3921 = vadd.f32 %v3808, %v3920
        %3922 = vmatmul.f32.gmra.mxu0 %v3252
        %v3923 = vpop.f32.mrf.mxu0
        %v3924 = vadd.f32 %v3811, %v3923
        %3925 = vmatmul.f32.gmra.mxu0 %v3261
        %v3926 = vpop.f32.mrf.mxu0
        %v3927 = vadd.f32 %v3814, %v3926
        %3928 = vmatmul.f32.gmra.mxu0 %v3270
        %v3929 = vpop.f32.mrf.mxu0
        %v3930 = vadd.f32 %v3817, %v3929
        %3931 = vmatmul.f32.gmra.mxu0 %v3279
        %v3932 = vpop.f32.mrf.mxu0
        %v3933 = vadd.f32 %v3820, %v3932
        %3934 = vmatmul.f32.gmra.mxu0 %v3288
        %v3935 = vpop.f32.mrf.mxu0
        %v3936 = vadd.f32 %v3823, %v3935
        %3937 = vmatmul.f32.gmra.mxu0 %v3297
        %v3938 = vpop.f32.mrf.mxu0
        %v3939 = vadd.f32 %v3826, %v3938
        %3940 = vmatmul.f32.gmra.mxu0 %v3306
        %v3941 = vpop.f32.mrf.mxu0
        %v3942 = vadd.f32 %v3829, %v3941
        %3943 = vmatmul.f32.gmra.mxu0 %v3315
        %v3944 = vpop.f32.mrf.mxu0
        %v3945 = vadd.f32 %v3832, %v3944
        %3946 = vmatmul.f32.gmra.mxu0 %v3324
        %v3947 = vpop.f32.mrf.mxu0
        %v3948 = vadd.f32 %v3835, %v3947
        %3949 = vmatmul.f32.gmra.mxu0 %v3333
        %v3950 = vpop.f32.mrf.mxu0
        %v3951 = vadd.f32 %v3838, %v3950
        %3952 = vmatmul.f32.gmra.mxu0 %v3342
        %v3953 = vpop.f32.mrf.mxu0
        %v3954 = vadd.f32 %v3841, %v3953
        %3955 = vmatmul.f32.gmra.mxu0 %v3351
        %v3956 = vpop.f32.mrf.mxu0
        %v3957 = vadd.f32 %v3844, %v3956
        %3958 = vmatmul.f32.gmra.mxu0 %v3360
        %v3959 = vpop.f32.mrf.mxu0
        %v3960 = vadd.f32 %v3847, %v3959
        %3961 = vdwg.mxu0
        %3962 = vmatpush.msra.mxu0 %v3445
        %3963 = vmatpush.msra.mxu0 %v3444
        %3964 = vmatpush.msra.mxu0 %v3443
        %3965 = vmatpush.msra.mxu0 %v3442
        %3966 = vmatpush.msra.mxu0 %v3441
        %3967 = vmatpush.msra.mxu0 %v3440
        %3968 = vmatpush.msra.mxu0 %v3439
        %3969 = vmatpush.msra.mxu0 %v3438
        %3970 = vmatpush.msra.mxu0 %v3437
        %3971 = vmatpush.msra.mxu0 %v3436
        %3972 = vmatpush.msra.mxu0 %v3435
        %3973 = vmatpush.msra.mxu0 %v3434
        %3974 = vmatpush.msra.mxu0 %v3433
        %3975 = vmatpush.msra.mxu0 %v3432
        %3976 = vmatpush.msra.mxu0 %v3431
        %3977 = vmatpush.msra.mxu0 %v3430
        %3978 = vmatmul.f32.gmra.mxu0 %v3082
        %v3979 = vpop.f32.mrf.mxu0
        %v3980 = vadd.f32 %v3867, %v3979
        %3981 = vmatmul.f32.gmra.mxu0 %v3091
        %v3982 = vpop.f32.mrf.mxu0
        %v3983 = vadd.f32 %v3870, %v3982
        %3984 = vmatmul.f32.gmra.mxu0 %v3100
        %v3985 = vpop.f32.mrf.mxu0
        %v3986 = vadd.f32 %v3873, %v3985
        %3987 = vmatmul.f32.gmra.mxu0 %v3109
        %v3988 = vpop.f32.mrf.mxu0
        %v3989 = vadd.f32 %v3876, %v3988
        %3990 = vmatmul.f32.gmra.mxu0 %v3118
        %v3991 = vpop.f32.mrf.mxu0
        %v3992 = vadd.f32 %v3879, %v3991
        %3993 = vmatmul.f32.gmra.mxu0 %v3127
        %v3994 = vpop.f32.mrf.mxu0
        %v3995 = vadd.f32 %v3882, %v3994
        %3996 = vmatmul.f32.gmra.mxu0 %v3136
        %v3997 = vpop.f32.mrf.mxu0
        %v3998 = vadd.f32 %v3885, %v3997
        %3999 = vmatmul.f32.gmra.mxu0 %v3145
        %v4000 = vpop.f32.mrf.mxu0
        %v4001 = vadd.f32 %v3888, %v4000
        %4002 = vmatmul.f32.gmra.mxu0 %v3154
        %v4003 = vpop.f32.mrf.mxu0
        %v4004 = vadd.f32 %v3891, %v4003
        %4005 = vmatmul.f32.gmra.mxu0 %v3163
        %v4006 = vpop.f32.mrf.mxu0
        %v4007 = vadd.f32 %v3894, %v4006
        %4008 = vmatmul.f32.gmra.mxu0 %v3172
        %v4009 = vpop.f32.mrf.mxu0
        %v4010 = vadd.f32 %v3897, %v4009
        %4011 = vmatmul.f32.gmra.mxu0 %v3181
        %v4012 = vpop.f32.mrf.mxu0
        %v4013 = vadd.f32 %v3900, %v4012
        %4014 = vmatmul.f32.gmra.mxu0 %v3190
        %v4015 = vpop.f32.mrf.mxu0
        %v4016 = vadd.f32 %v3903, %v4015
        %4017 = vmatmul.f32.gmra.mxu0 %v3199
        %v4018 = vpop.f32.mrf.mxu0
        %v4019 = vadd.f32 %v3906, %v4018
        %4020 = vmatmul.f32.gmra.mxu0 %v3208
        %v4021 = vpop.f32.mrf.mxu0
        %v4022 = vadd.f32 %v3909, %v4021
        %4023 = vmatmul.f32.gmra.mxu0 %v3217
        %v4024 = vpop.f32.mrf.mxu0
        %v4025 = vadd.f32 %v3912, %v4024
        %4026 = vmatmul.f32.gmra.mxu0 %v3226
        %v4027 = vpop.f32.mrf.mxu0
        %v4028 = vadd.f32 %v3915, %v4027
        %4029 = vmatmul.f32.gmra.mxu0 %v3235
        %v4030 = vpop.f32.mrf.mxu0
        %v4031 = vadd.f32 %v3918, %v4030
        %4032 = vmatmul.f32.gmra.mxu0 %v3244
        %v4033 = vpop.f32.mrf.mxu0
        %v4034 = vadd.f32 %v3921, %v4033
        %4035 = vmatmul.f32.gmra.mxu0 %v3253
        %v4036 = vpop.f32.mrf.mxu0
        %v4037 = vadd.f32 %v3924, %v4036
        %4038 = vmatmul.f32.gmra.mxu0 %v3262
        %v4039 = vpop.f32.mrf.mxu0
        %v4040 = vadd.f32 %v3927, %v4039
        %4041 = vmatmul.f32.gmra.mxu0 %v3271
        %v4042 = vpop.f32.mrf.mxu0
        %v4043 = vadd.f32 %v3930, %v4042
        %4044 = vmatmul.f32.gmra.mxu0 %v3280
        %v4045 = vpop.f32.mrf.mxu0
        %v4046 = vadd.f32 %v3933, %v4045
        %4047 = vmatmul.f32.gmra.mxu0 %v3289
        %v4048 = vpop.f32.mrf.mxu0
        %v4049 = vadd.f32 %v3936, %v4048
        %4050 = vmatmul.f32.gmra.mxu0 %v3298
        %v4051 = vpop.f32.mrf.mxu0
        %v4052 = vadd.f32 %v3939, %v4051
        %4053 = vmatmul.f32.gmra.mxu0 %v3307
        %v4054 = vpop.f32.mrf.mxu0
        %v4055 = vadd.f32 %v3942, %v4054
        %4056 = vmatmul.f32.gmra.mxu0 %v3316
        %v4057 = vpop.f32.mrf.mxu0
        %v4058 = vadd.f32 %v3945, %v4057
        %4059 = vmatmul.f32.gmra.mxu0 %v3325
        %v4060 = vpop.f32.mrf.mxu0
        %v4061 = vadd.f32 %v3948, %v4060
        %4062 = vmatmul.f32.gmra.mxu0 %v3334
        %v4063 = vpop.f32.mrf.mxu0
        %v4064 = vadd.f32 %v3951, %v4063
        %4065 = vmatmul.f32.gmra.mxu0 %v3343
        %v4066 = vpop.f32.mrf.mxu0
        %v4067 = vadd.f32 %v3954, %v4066
        %4068 = vmatmul.f32.gmra.mxu0 %v3352
        %v4069 = vpop.f32.mrf.mxu0
        %v4070 = vadd.f32 %v3957, %v4069
        %4071 = vmatmul.f32.gmra.mxu0 %v3361
        %v4072 = vpop.f32.mrf.mxu0
        %v4073 = vadd.f32 %v3960, %v4072
        %4074 = vdwg.mxu0
        %4075 = vmatpush.msra.mxu0 %v3461
        %4076 = vmatpush.msra.mxu0 %v3460
        %4077 = vmatpush.msra.mxu0 %v3459
        %4078 = vmatpush.msra.mxu0 %v3458
        %4079 = vmatpush.msra.mxu0 %v3457
        %4080 = vmatpush.msra.mxu0 %v3456
        %4081 = vmatpush.msra.mxu0 %v3455
        %4082 = vmatpush.msra.mxu0 %v3454
        %4083 = vmatpush.msra.mxu0 %v3453
        %4084 = vmatpush.msra.mxu0 %v3452
        %4085 = vmatpush.msra.mxu0 %v3451
        %4086 = vmatpush.msra.mxu0 %v3450
        %4087 = vmatpush.msra.mxu0 %v3449
        %4088 = vmatpush.msra.mxu0 %v3448
        %4089 = vmatpush.msra.mxu0 %v3447
        %4090 = vmatpush.msra.mxu0 %v3446
        %4091 = vmatmul.f32.gmra.mxu0 %v3083
        %v4092 = vpop.f32.mrf.mxu0
        %v4093 = vadd.f32 %v3980, %v4092
        %4094 = vmatmul.f32.gmra.mxu0 %v3092
        %v4095 = vpop.f32.mrf.mxu0
        %v4096 = vadd.f32 %v3983, %v4095
        %4097 = vmatmul.f32.gmra.mxu0 %v3101
        %v4098 = vpop.f32.mrf.mxu0
        %v4099 = vadd.f32 %v3986, %v4098
        %4100 = vmatmul.f32.gmra.mxu0 %v3110
        %v4101 = vpop.f32.mrf.mxu0
        %v4102 = vadd.f32 %v3989, %v4101
        %4103 = vmatmul.f32.gmra.mxu0 %v3119
        %v4104 = vpop.f32.mrf.mxu0
        %v4105 = vadd.f32 %v3992, %v4104
        %4106 = vmatmul.f32.gmra.mxu0 %v3128
        %v4107 = vpop.f32.mrf.mxu0
        %v4108 = vadd.f32 %v3995, %v4107
        %4109 = vmatmul.f32.gmra.mxu0 %v3137
        %v4110 = vpop.f32.mrf.mxu0
        %v4111 = vadd.f32 %v3998, %v4110
        %4112 = vmatmul.f32.gmra.mxu0 %v3146
        %v4113 = vpop.f32.mrf.mxu0
        %v4114 = vadd.f32 %v4001, %v4113
        %4115 = vmatmul.f32.gmra.mxu0 %v3155
        %v4116 = vpop.f32.mrf.mxu0
        %v4117 = vadd.f32 %v4004, %v4116
        %4118 = vmatmul.f32.gmra.mxu0 %v3164
        %v4119 = vpop.f32.mrf.mxu0
        %v4120 = vadd.f32 %v4007, %v4119
        %4121 = vmatmul.f32.gmra.mxu0 %v3173
        %v4122 = vpop.f32.mrf.mxu0
        %v4123 = vadd.f32 %v4010, %v4122
        %4124 = vmatmul.f32.gmra.mxu0 %v3182
        %v4125 = vpop.f32.mrf.mxu0
        %v4126 = vadd.f32 %v4013, %v4125
        %4127 = vmatmul.f32.gmra.mxu0 %v3191
        %v4128 = vpop.f32.mrf.mxu0
        %v4129 = vadd.f32 %v4016, %v4128
        %4130 = vmatmul.f32.gmra.mxu0 %v3200
        %v4131 = vpop.f32.mrf.mxu0
        %v4132 = vadd.f32 %v4019, %v4131
        %4133 = vmatmul.f32.gmra.mxu0 %v3209
        %v4134 = vpop.f32.mrf.mxu0
        %v4135 = vadd.f32 %v4022, %v4134
        %4136 = vmatmul.f32.gmra.mxu0 %v3218
        %v4137 = vpop.f32.mrf.mxu0
        %v4138 = vadd.f32 %v4025, %v4137
        %4139 = vmatmul.f32.gmra.mxu0 %v3227
        %v4140 = vpop.f32.mrf.mxu0
        %v4141 = vadd.f32 %v4028, %v4140
        %4142 = vmatmul.f32.gmra.mxu0 %v3236
        %v4143 = vpop.f32.mrf.mxu0
        %v4144 = vadd.f32 %v4031, %v4143
        %4145 = vmatmul.f32.gmra.mxu0 %v3245
        %v4146 = vpop.f32.mrf.mxu0
        %v4147 = vadd.f32 %v4034, %v4146
        %4148 = vmatmul.f32.gmra.mxu0 %v3254
        %v4149 = vpop.f32.mrf.mxu0
        %v4150 = vadd.f32 %v4037, %v4149
        %4151 = vmatmul.f32.gmra.mxu0 %v3263
        %v4152 = vpop.f32.mrf.mxu0
        %v4153 = vadd.f32 %v4040, %v4152
        %4154 = vmatmul.f32.gmra.mxu0 %v3272
        %v4155 = vpop.f32.mrf.mxu0
        %v4156 = vadd.f32 %v4043, %v4155
        %4157 = vmatmul.f32.gmra.mxu0 %v3281
        %v4158 = vpop.f32.mrf.mxu0
        %v4159 = vadd.f32 %v4046, %v4158
        %4160 = vmatmul.f32.gmra.mxu0 %v3290
        %v4161 = vpop.f32.mrf.mxu0
        %v4162 = vadd.f32 %v4049, %v4161
        %4163 = vmatmul.f32.gmra.mxu0 %v3299
        %v4164 = vpop.f32.mrf.mxu0
        %v4165 = vadd.f32 %v4052, %v4164
        %4166 = vmatmul.f32.gmra.mxu0 %v3308
        %v4167 = vpop.f32.mrf.mxu0
        %v4168 = vadd.f32 %v4055, %v4167
        %4169 = vmatmul.f32.gmra.mxu0 %v3317
        %v4170 = vpop.f32.mrf.mxu0
        %v4171 = vadd.f32 %v4058, %v4170
        %4172 = vmatmul.f32.gmra.mxu0 %v3326
        %v4173 = vpop.f32.mrf.mxu0
        %v4174 = vadd.f32 %v4061, %v4173
        %4175 = vmatmul.f32.gmra.mxu0 %v3335
        %v4176 = vpop.f32.mrf.mxu0
        %v4177 = vadd.f32 %v4064, %v4176
        %4178 = vmatmul.f32.gmra.mxu0 %v3344
        %v4179 = vpop.f32.mrf.mxu0
        %v4180 = vadd.f32 %v4067, %v4179
        %4181 = vmatmul.f32.gmra.mxu0 %v3353
        %v4182 = vpop.f32.mrf.mxu0
        %v4183 = vadd.f32 %v4070, %v4182
        %4184 = vmatmul.f32.gmra.mxu0 %v3362
        %v4185 = vpop.f32.mrf.mxu0
        %v4186 = vadd.f32 %v4073, %v4185
        %4187 = vdwg.mxu0
        %4188 = vmatpush.msra.mxu0 %v3477
        %4189 = vmatpush.msra.mxu0 %v3476
        %4190 = vmatpush.msra.mxu0 %v3475
        %4191 = vmatpush.msra.mxu0 %v3474
        %4192 = vmatpush.msra.mxu0 %v3473
        %4193 = vmatpush.msra.mxu0 %v3472
        %4194 = vmatpush.msra.mxu0 %v3471
        %4195 = vmatpush.msra.mxu0 %v3470
        %4196 = vmatpush.msra.mxu0 %v3469
        %4197 = vmatpush.msra.mxu0 %v3468
        %4198 = vmatpush.msra.mxu0 %v3467
        %4199 = vmatpush.msra.mxu0 %v3466
        %4200 = vmatpush.msra.mxu0 %v3465
        %4201 = vmatpush.msra.mxu0 %v3464
        %4202 = vmatpush.msra.mxu0 %v3463
        %4203 = vmatpush.msra.mxu0 %v3462
        %4204 = vmatmul.f32.gmra.mxu0 %v3084
        %v4205 = vpop.f32.mrf.mxu0
        %v4206 = vadd.f32 %v4093, %v4205
        %4207 = vmatmul.f32.gmra.mxu0 %v3093
        %v4208 = vpop.f32.mrf.mxu0
        %v4209 = vadd.f32 %v4096, %v4208
        %4210 = vmatmul.f32.gmra.mxu0 %v3102
        %v4211 = vpop.f32.mrf.mxu0
        %v4212 = vadd.f32 %v4099, %v4211
        %4213 = vmatmul.f32.gmra.mxu0 %v3111
        %v4214 = vpop.f32.mrf.mxu0
        %v4215 = vadd.f32 %v4102, %v4214
        %4216 = vmatmul.f32.gmra.mxu0 %v3120
        %v4217 = vpop.f32.mrf.mxu0
        %v4218 = vadd.f32 %v4105, %v4217
        %4219 = vmatmul.f32.gmra.mxu0 %v3129
        %v4220 = vpop.f32.mrf.mxu0
        %v4221 = vadd.f32 %v4108, %v4220
        %4222 = vmatmul.f32.gmra.mxu0 %v3138
        %v4223 = vpop.f32.mrf.mxu0
        %v4224 = vadd.f32 %v4111, %v4223
        %4225 = vmatmul.f32.gmra.mxu0 %v3147
        %v4226 = vpop.f32.mrf.mxu0
        %v4227 = vadd.f32 %v4114, %v4226
        %4228 = vmatmul.f32.gmra.mxu0 %v3156
        %v4229 = vpop.f32.mrf.mxu0
        %v4230 = vadd.f32 %v4117, %v4229
        %4231 = vmatmul.f32.gmra.mxu0 %v3165
        %v4232 = vpop.f32.mrf.mxu0
        %v4233 = vadd.f32 %v4120, %v4232
        %4234 = vmatmul.f32.gmra.mxu0 %v3174
        %v4235 = vpop.f32.mrf.mxu0
        %v4236 = vadd.f32 %v4123, %v4235
        %4237 = vmatmul.f32.gmra.mxu0 %v3183
        %v4238 = vpop.f32.mrf.mxu0
        %v4239 = vadd.f32 %v4126, %v4238
        %4240 = vmatmul.f32.gmra.mxu0 %v3192
        %v4241 = vpop.f32.mrf.mxu0
        %v4242 = vadd.f32 %v4129, %v4241
        %4243 = vmatmul.f32.gmra.mxu0 %v3201
        %v4244 = vpop.f32.mrf.mxu0
        %v4245 = vadd.f32 %v4132, %v4244
        %4246 = vmatmul.f32.gmra.mxu0 %v3210
        %v4247 = vpop.f32.mrf.mxu0
        %v4248 = vadd.f32 %v4135, %v4247
        %4249 = vmatmul.f32.gmra.mxu0 %v3219
        %v4250 = vpop.f32.mrf.mxu0
        %v4251 = vadd.f32 %v4138, %v4250
        %4252 = vmatmul.f32.gmra.mxu0 %v3228
        %v4253 = vpop.f32.mrf.mxu0
        %v4254 = vadd.f32 %v4141, %v4253
        %4255 = vmatmul.f32.gmra.mxu0 %v3237
        %v4256 = vpop.f32.mrf.mxu0
        %v4257 = vadd.f32 %v4144, %v4256
        %4258 = vmatmul.f32.gmra.mxu0 %v3246
        %v4259 = vpop.f32.mrf.mxu0
        %v4260 = vadd.f32 %v4147, %v4259
        %4261 = vmatmul.f32.gmra.mxu0 %v3255
        %v4262 = vpop.f32.mrf.mxu0
        %v4263 = vadd.f32 %v4150, %v4262
        %4264 = vmatmul.f32.gmra.mxu0 %v3264
        %v4265 = vpop.f32.mrf.mxu0
        %v4266 = vadd.f32 %v4153, %v4265
        %4267 = vmatmul.f32.gmra.mxu0 %v3273
        %v4268 = vpop.f32.mrf.mxu0
        %v4269 = vadd.f32 %v4156, %v4268
        %4270 = vmatmul.f32.gmra.mxu0 %v3282
        %v4271 = vpop.f32.mrf.mxu0
        %v4272 = vadd.f32 %v4159, %v4271
        %4273 = vmatmul.f32.gmra.mxu0 %v3291
        %v4274 = vpop.f32.mrf.mxu0
        %v4275 = vadd.f32 %v4162, %v4274
        %4276 = vmatmul.f32.gmra.mxu0 %v3300
        %v4277 = vpop.f32.mrf.mxu0
        %v4278 = vadd.f32 %v4165, %v4277
        %4279 = vmatmul.f32.gmra.mxu0 %v3309
        %v4280 = vpop.f32.mrf.mxu0
        %v4281 = vadd.f32 %v4168, %v4280
        %4282 = vmatmul.f32.gmra.mxu0 %v3318
        %v4283 = vpop.f32.mrf.mxu0
        %v4284 = vadd.f32 %v4171, %v4283
        %4285 = vmatmul.f32.gmra.mxu0 %v3327
        %v4286 = vpop.f32.mrf.mxu0
        %v4287 = vadd.f32 %v4174, %v4286
        %4288 = vmatmul.f32.gmra.mxu0 %v3336
        %v4289 = vpop.f32.mrf.mxu0
        %v4290 = vadd.f32 %v4177, %v4289
        %4291 = vmatmul.f32.gmra.mxu0 %v3345
        %v4292 = vpop.f32.mrf.mxu0
        %v4293 = vadd.f32 %v4180, %v4292
        %4294 = vmatmul.f32.gmra.mxu0 %v3354
        %v4295 = vpop.f32.mrf.mxu0
        %v4296 = vadd.f32 %v4183, %v4295
        %4297 = vmatmul.f32.gmra.mxu0 %v3363
        %v4298 = vpop.f32.mrf.mxu0
        %v4299 = vadd.f32 %v4186, %v4298
        %4300 = vdwg.mxu0
        %4301 = vmatpush.msra.mxu0 %v3493
        %4302 = vmatpush.msra.mxu0 %v3492
        %4303 = vmatpush.msra.mxu0 %v3491
        %4304 = vmatpush.msra.mxu0 %v3490
        %4305 = vmatpush.msra.mxu0 %v3489
        %4306 = vmatpush.msra.mxu0 %v3488
        %4307 = vmatpush.msra.mxu0 %v3487
        %4308 = vmatpush.msra.mxu0 %v3486
        %4309 = vmatpush.msra.mxu0 %v3485
        %4310 = vmatpush.msra.mxu0 %v3484
        %4311 = vmatpush.msra.mxu0 %v3483
        %4312 = vmatpush.msra.mxu0 %v3482
        %4313 = vmatpush.msra.mxu0 %v3481
        %4314 = vmatpush.msra.mxu0 %v3480
        %4315 = vmatpush.msra.mxu0 %v3479
        %4316 = vmatpush.msra.mxu0 %v3478
        %4317 = vmatmul.f32.gmra.mxu0 %v3085
        %v4318 = vpop.f32.mrf.mxu0
        %v4319 = vadd.f32 %v4206, %v4318
        %4320 = vmatmul.f32.gmra.mxu0 %v3094
        %v4321 = vpop.f32.mrf.mxu0
        %v4322 = vadd.f32 %v4209, %v4321
        %4323 = vmatmul.f32.gmra.mxu0 %v3103
        %v4324 = vpop.f32.mrf.mxu0
        %v4325 = vadd.f32 %v4212, %v4324
        %4326 = vmatmul.f32.gmra.mxu0 %v3112
        %v4327 = vpop.f32.mrf.mxu0
        %v4328 = vadd.f32 %v4215, %v4327
        %4329 = vmatmul.f32.gmra.mxu0 %v3121
        %v4330 = vpop.f32.mrf.mxu0
        %v4331 = vadd.f32 %v4218, %v4330
        %4332 = vmatmul.f32.gmra.mxu0 %v3130
        %v4333 = vpop.f32.mrf.mxu0
        %v4334 = vadd.f32 %v4221, %v4333
        %4335 = vmatmul.f32.gmra.mxu0 %v3139
        %v4336 = vpop.f32.mrf.mxu0
        %v4337 = vadd.f32 %v4224, %v4336
        %4338 = vmatmul.f32.gmra.mxu0 %v3148
        %v4339 = vpop.f32.mrf.mxu0
        %v4340 = vadd.f32 %v4227, %v4339
        %4341 = vmatmul.f32.gmra.mxu0 %v3157
        %v4342 = vpop.f32.mrf.mxu0
        %v4343 = vadd.f32 %v4230, %v4342
        %4344 = vmatmul.f32.gmra.mxu0 %v3166
        %v4345 = vpop.f32.mrf.mxu0
        %v4346 = vadd.f32 %v4233, %v4345
        %4347 = vmatmul.f32.gmra.mxu0 %v3175
        %v4348 = vpop.f32.mrf.mxu0
        %v4349 = vadd.f32 %v4236, %v4348
        %4350 = vmatmul.f32.gmra.mxu0 %v3184
        %v4351 = vpop.f32.mrf.mxu0
        %v4352 = vadd.f32 %v4239, %v4351
        %4353 = vmatmul.f32.gmra.mxu0 %v3193
        %v4354 = vpop.f32.mrf.mxu0
        %v4355 = vadd.f32 %v4242, %v4354
        %4356 = vmatmul.f32.gmra.mxu0 %v3202
        %v4357 = vpop.f32.mrf.mxu0
        %v4358 = vadd.f32 %v4245, %v4357
        %4359 = vmatmul.f32.gmra.mxu0 %v3211
        %v4360 = vpop.f32.mrf.mxu0
        %v4361 = vadd.f32 %v4248, %v4360
        %4362 = vmatmul.f32.gmra.mxu0 %v3220
        %v4363 = vpop.f32.mrf.mxu0
        %v4364 = vadd.f32 %v4251, %v4363
        %4365 = vmatmul.f32.gmra.mxu0 %v3229
        %v4366 = vpop.f32.mrf.mxu0
        %v4367 = vadd.f32 %v4254, %v4366
        %4368 = vmatmul.f32.gmra.mxu0 %v3238
        %v4369 = vpop.f32.mrf.mxu0
        %v4370 = vadd.f32 %v4257, %v4369
        %4371 = vmatmul.f32.gmra.mxu0 %v3247
        %v4372 = vpop.f32.mrf.mxu0
        %v4373 = vadd.f32 %v4260, %v4372
        %4374 = vmatmul.f32.gmra.mxu0 %v3256
        %v4375 = vpop.f32.mrf.mxu0
        %v4376 = vadd.f32 %v4263, %v4375
        %4377 = vmatmul.f32.gmra.mxu0 %v3265
        %v4378 = vpop.f32.mrf.mxu0
        %v4379 = vadd.f32 %v4266, %v4378
        %4380 = vmatmul.f32.gmra.mxu0 %v3274
        %v4381 = vpop.f32.mrf.mxu0
        %v4382 = vadd.f32 %v4269, %v4381
        %4383 = vmatmul.f32.gmra.mxu0 %v3283
        %v4384 = vpop.f32.mrf.mxu0
        %v4385 = vadd.f32 %v4272, %v4384
        %4386 = vmatmul.f32.gmra.mxu0 %v3292
        %v4387 = vpop.f32.mrf.mxu0
        %v4388 = vadd.f32 %v4275, %v4387
        %4389 = vmatmul.f32.gmra.mxu0 %v3301
        %v4390 = vpop.f32.mrf.mxu0
        %v4391 = vadd.f32 %v4278, %v4390
        %4392 = vmatmul.f32.gmra.mxu0 %v3310
        %v4393 = vpop.f32.mrf.mxu0
        %v4394 = vadd.f32 %v4281, %v4393
        %4395 = vmatmul.f32.gmra.mxu0 %v3319
        %v4396 = vpop.f32.mrf.mxu0
        %v4397 = vadd.f32 %v4284, %v4396
        %4398 = vmatmul.f32.gmra.mxu0 %v3328
        %v4399 = vpop.f32.mrf.mxu0
        %v4400 = vadd.f32 %v4287, %v4399
        %4401 = vmatmul.f32.gmra.mxu0 %v3337
        %v4402 = vpop.f32.mrf.mxu0
        %v4403 = vadd.f32 %v4290, %v4402
        %4404 = vmatmul.f32.gmra.mxu0 %v3346
        %v4405 = vpop.f32.mrf.mxu0
        %v4406 = vadd.f32 %v4293, %v4405
        %4407 = vmatmul.f32.gmra.mxu0 %v3355
        %v4408 = vpop.f32.mrf.mxu0
        %v4409 = vadd.f32 %v4296, %v4408
        %4410 = vmatmul.f32.gmra.mxu0 %v3364
        %v4411 = vpop.f32.mrf.mxu0
        %v4412 = vadd.f32 %v4299, %v4411
        %4413 = vdwg.mxu0
        %4414 = vmatpush.msra.mxu0 %v3509
        %4415 = vmatpush.msra.mxu0 %v3508
        %4416 = vmatpush.msra.mxu0 %v3507
        %4417 = vmatpush.msra.mxu0 %v3506
        %4418 = vmatpush.msra.mxu0 %v3505
        %4419 = vmatpush.msra.mxu0 %v3504
        %4420 = vmatpush.msra.mxu0 %v3503
        %4421 = vmatpush.msra.mxu0 %v3502
        %4422 = vmatpush.msra.mxu0 %v3501
        %4423 = vmatpush.msra.mxu0 %v3500
        %4424 = vmatpush.msra.mxu0 %v3499
        %4425 = vmatpush.msra.mxu0 %v3498
        %4426 = vmatpush.msra.mxu0 %v3497
        %4427 = vmatpush.msra.mxu0 %v3496
        %4428 = vmatpush.msra.mxu0 %v3495
        %4429 = vmatpush.msra.mxu0 %v3494
        %4430 = vmatmul.f32.gmra.mxu0 %v3086
        %v4431 = vpop.f32.mrf.mxu0
        %v4432 = vadd.f32 %v4319, %v4431
        %4433 = vmatmul.f32.gmra.mxu0 %v3095
        %v4434 = vpop.f32.mrf.mxu0
        %v4435 = vadd.f32 %v4322, %v4434
        %4436 = vmatmul.f32.gmra.mxu0 %v3104
        %v4437 = vpop.f32.mrf.mxu0
        %v4438 = vadd.f32 %v4325, %v4437
        %4439 = vmatmul.f32.gmra.mxu0 %v3113
        %v4440 = vpop.f32.mrf.mxu0
        %v4441 = vadd.f32 %v4328, %v4440
        %4442 = vmatmul.f32.gmra.mxu0 %v3122
        %v4443 = vpop.f32.mrf.mxu0
        %v4444 = vadd.f32 %v4331, %v4443
        %4445 = vmatmul.f32.gmra.mxu0 %v3131
        %v4446 = vpop.f32.mrf.mxu0
        %v4447 = vadd.f32 %v4334, %v4446
        %4448 = vmatmul.f32.gmra.mxu0 %v3140
        %v4449 = vpop.f32.mrf.mxu0
        %v4450 = vadd.f32 %v4337, %v4449
        %4451 = vmatmul.f32.gmra.mxu0 %v3149
        %v4452 = vpop.f32.mrf.mxu0
        %v4453 = vadd.f32 %v4340, %v4452
        %4454 = vmatmul.f32.gmra.mxu0 %v3158
        %v4455 = vpop.f32.mrf.mxu0
        %v4456 = vadd.f32 %v4343, %v4455
        %4457 = vmatmul.f32.gmra.mxu0 %v3167
        %v4458 = vpop.f32.mrf.mxu0
        %v4459 = vadd.f32 %v4346, %v4458
        %4460 = vmatmul.f32.gmra.mxu0 %v3176
        %v4461 = vpop.f32.mrf.mxu0
        %v4462 = vadd.f32 %v4349, %v4461
        %4463 = vmatmul.f32.gmra.mxu0 %v3185
        %v4464 = vpop.f32.mrf.mxu0
        %v4465 = vadd.f32 %v4352, %v4464
        %4466 = vmatmul.f32.gmra.mxu0 %v3194
        %v4467 = vpop.f32.mrf.mxu0
        %v4468 = vadd.f32 %v4355, %v4467
        %4469 = vmatmul.f32.gmra.mxu0 %v3203
        %v4470 = vpop.f32.mrf.mxu0
        %v4471 = vadd.f32 %v4358, %v4470
        %4472 = vmatmul.f32.gmra.mxu0 %v3212
        %v4473 = vpop.f32.mrf.mxu0
        %v4474 = vadd.f32 %v4361, %v4473
        %4475 = vmatmul.f32.gmra.mxu0 %v3221
        %v4476 = vpop.f32.mrf.mxu0
        %v4477 = vadd.f32 %v4364, %v4476
        %4478 = vmatmul.f32.gmra.mxu0 %v3230
        %v4479 = vpop.f32.mrf.mxu0
        %v4480 = vadd.f32 %v4367, %v4479
        %4481 = vmatmul.f32.gmra.mxu0 %v3239
        %v4482 = vpop.f32.mrf.mxu0
        %v4483 = vadd.f32 %v4370, %v4482
        %4484 = vmatmul.f32.gmra.mxu0 %v3248
        %v4485 = vpop.f32.mrf.mxu0
        %v4486 = vadd.f32 %v4373, %v4485
        %4487 = vmatmul.f32.gmra.mxu0 %v3257
        %v4488 = vpop.f32.mrf.mxu0
        %v4489 = vadd.f32 %v4376, %v4488
        %4490 = vmatmul.f32.gmra.mxu0 %v3266
        %v4491 = vpop.f32.mrf.mxu0
        %v4492 = vadd.f32 %v4379, %v4491
        %4493 = vmatmul.f32.gmra.mxu0 %v3275
        %v4494 = vpop.f32.mrf.mxu0
        %v4495 = vadd.f32 %v4382, %v4494
        %4496 = vmatmul.f32.gmra.mxu0 %v3284
        %v4497 = vpop.f32.mrf.mxu0
        %v4498 = vadd.f32 %v4385, %v4497
        %4499 = vmatmul.f32.gmra.mxu0 %v3293
        %v4500 = vpop.f32.mrf.mxu0
        %v4501 = vadd.f32 %v4388, %v4500
        %4502 = vmatmul.f32.gmra.mxu0 %v3302
        %v4503 = vpop.f32.mrf.mxu0
        %v4504 = vadd.f32 %v4391, %v4503
        %4505 = vmatmul.f32.gmra.mxu0 %v3311
        %v4506 = vpop.f32.mrf.mxu0
        %v4507 = vadd.f32 %v4394, %v4506
        %4508 = vmatmul.f32.gmra.mxu0 %v3320
        %v4509 = vpop.f32.mrf.mxu0
        %v4510 = vadd.f32 %v4397, %v4509
        %4511 = vmatmul.f32.gmra.mxu0 %v3329
        %v4512 = vpop.f32.mrf.mxu0
        %v4513 = vadd.f32 %v4400, %v4512
        %4514 = vmatmul.f32.gmra.mxu0 %v3338
        %v4515 = vpop.f32.mrf.mxu0
        %v4516 = vadd.f32 %v4403, %v4515
        %4517 = vmatmul.f32.gmra.mxu0 %v3347
        %v4518 = vpop.f32.mrf.mxu0
        %v4519 = vadd.f32 %v4406, %v4518
        %4520 = vmatmul.f32.gmra.mxu0 %v3356
        %v4521 = vpop.f32.mrf.mxu0
        %v4522 = vadd.f32 %v4409, %v4521
        %4523 = vmatmul.f32.gmra.mxu0 %v3365
        %v4524 = vpop.f32.mrf.mxu0
        %v4525 = vadd.f32 %v4412, %v4524
        %4526 = vdwg.mxu0
        %v4527 = vld [vmem:[%s5] sm:$0x1]
        %v4529 = vperm.slane %v4527, 0
        %v4531 = vmul.f32 %v4432, %v4529
        %v4532 = vmul.f32 %v4435, %v4529
        %v4533 = vmul.f32 %v4438, %v4529
        %v4534 = vmul.f32 %v4441, %v4529
        %v4535 = vmul.f32 %v4444, %v4529
        %v4536 = vmul.f32 %v4447, %v4529
        %v4537 = vmul.f32 %v4450, %v4529
        %v4538 = vmul.f32 %v4453, %v4529
        %v4539 = vmul.f32 %v4456, %v4529
        %v4540 = vmul.f32 %v4459, %v4529
        %v4541 = vmul.f32 %v4462, %v4529
        %v4542 = vmul.f32 %v4465, %v4529
        %v4543 = vmul.f32 %v4468, %v4529
        %v4544 = vmul.f32 %v4471, %v4529
        %v4545 = vmul.f32 %v4474, %v4529
        %v4546 = vmul.f32 %v4477, %v4529
        %v4547 = vmul.f32 %v4480, %v4529
        %v4548 = vmul.f32 %v4483, %v4529
        %v4549 = vmul.f32 %v4486, %v4529
        %v4550 = vmul.f32 %v4489, %v4529
        %v4551 = vmul.f32 %v4492, %v4529
        %v4552 = vmul.f32 %v4495, %v4529
        %v4553 = vmul.f32 %v4498, %v4529
        %v4554 = vmul.f32 %v4501, %v4529
        %v4555 = vmul.f32 %v4504, %v4529
        %v4556 = vmul.f32 %v4507, %v4529
        %v4557 = vmul.f32 %v4510, %v4529
        %v4558 = vmul.f32 %v4513, %v4529
        %v4559 = vmul.f32 %v4516, %v4529
        %v4560 = vmul.f32 %v4519, %v4529
        %v4561 = vmul.f32 %v4522, %v4529
        %v4562 = vmul.f32 %v4525, %v4529
        %v4563 = vld [vmem:[%s6] sm:$0x1]
        %v4565 = vperm.slane %v4563, 0
        %v4567 = vadd.f32 %v4531, %v4565
        %v4568 = vadd.f32 %v4532, %v4565
        %v4569 = vadd.f32 %v4533, %v4565
        %v4570 = vadd.f32 %v4534, %v4565
        %v4571 = vadd.f32 %v4535, %v4565
        %v4572 = vadd.f32 %v4536, %v4565
        %v4573 = vadd.f32 %v4537, %v4565
        %v4574 = vadd.f32 %v4538, %v4565
        %v4575 = vadd.f32 %v4539, %v4565
        %v4576 = vadd.f32 %v4540, %v4565
        %v4577 = vadd.f32 %v4541, %v4565
        %v4578 = vadd.f32 %v4542, %v4565
        %v4579 = vadd.f32 %v4543, %v4565
        %v4580 = vadd.f32 %v4544, %v4565
        %v4581 = vadd.f32 %v4545, %v4565
        %v4582 = vadd.f32 %v4546, %v4565
        %v4583 = vadd.f32 %v4547, %v4565
        %v4584 = vadd.f32 %v4548, %v4565
        %v4585 = vadd.f32 %v4549, %v4565
        %v4586 = vadd.f32 %v4550, %v4565
        %v4587 = vadd.f32 %v4551, %v4565
        %v4588 = vadd.f32 %v4552, %v4565
        %v4589 = vadd.f32 %v4553, %v4565
        %v4590 = vadd.f32 %v4554, %v4565
        %v4591 = vadd.f32 %v4555, %v4565
        %v4592 = vadd.f32 %v4556, %v4565
        %v4593 = vadd.f32 %v4557, %v4565
        %v4594 = vadd.f32 %v4558, %v4565
        %v4595 = vadd.f32 %v4559, %v4565
        %v4596 = vadd.f32 %v4560, %v4565
        %v4597 = vadd.f32 %v4561, %v4565
        %v4598 = vadd.f32 %v4562, %v4565
        %v4599 = vmax.f32 %v4567, 0.0
        %v4600 = vmax.f32 %v4568, 0.0
        %v4601 = vmax.f32 %v4569, 0.0
        %v4602 = vmax.f32 %v4570, 0.0
        %v4603 = vmax.f32 %v4571, 0.0
        %v4604 = vmax.f32 %v4572, 0.0
        %v4605 = vmax.f32 %v4573, 0.0
        %v4606 = vmax.f32 %v4574, 0.0
        %v4607 = vmax.f32 %v4575, 0.0
        %v4608 = vmax.f32 %v4576, 0.0
        %v4609 = vmax.f32 %v4577, 0.0
        %v4610 = vmax.f32 %v4578, 0.0
        %v4611 = vmax.f32 %v4579, 0.0
        %v4612 = vmax.f32 %v4580, 0.0
        %v4613 = vmax.f32 %v4581, 0.0
        %v4614 = vmax.f32 %v4582, 0.0
        %v4615 = vmax.f32 %v4583, 0.0
        %v4616 = vmax.f32 %v4584, 0.0
        %v4617 = vmax.f32 %v4585, 0.0
        %v4618 = vmax.f32 %v4586, 0.0
        %v4619 = vmax.f32 %v4587, 0.0
        %v4620 = vmax.f32 %v4588, 0.0
        %v4621 = vmax.f32 %v4589, 0.0
        %v4622 = vmax.f32 %v4590, 0.0
        %v4623 = vmax.f32 %v4591, 0.0
        %v4624 = vmax.f32 %v4592, 0.0
        %v4625 = vmax.f32 %v4593, 0.0
        %v4626 = vmax.f32 %v4594, 0.0
        %v4627 = vmax.f32 %v4595, 0.0
        %v4628 = vmax.f32 %v4596, 0.0
        %v4629 = vmax.f32 %v4597, 0.0
        %v4630 = vmax.f32 %v4598, 0.0
        %4631 = vst [vmem:[%s288] sm:$0xff] %v4599
        %4632 = vst [vmem:[%s288 + $0x8] sm:$0xff] %v4600
        %4633 = vst [vmem:[%s288 + $0x10] sm:$0xff] %v4601
        %4634 = vst [vmem:[%s288 + $0x18] sm:$0xff] %v4602
        %4635 = vst [vmem:[%s288 + $0x20] sm:$0xff] %v4603
        %4636 = vst [vmem:[%s288 + $0x28] sm:$0xff] %v4604
        %4637 = vst [vmem:[%s288 + $0x30] sm:$0xff] %v4605
        %4638 = vst [vmem:[%s288 + $0x38] sm:$0xff] %v4606
        %4639 = vst [vmem:[%s288 + $0x40] sm:$0xff] %v4607
        %4640 = vst [vmem:[%s288 + $0x48] sm:$0xff] %v4608
        %4641 = vst [vmem:[%s288 + $0x50] sm:$0xff] %v4609
        %4642 = vst [vmem:[%s288 + $0x58] sm:$0xff] %v4610
        %4643 = vst [vmem:[%s288 + $0x60] sm:$0xff] %v4611
        %4644 = vst [vmem:[%s288 + $0x68] sm:$0xff] %v4612
        %4645 = vst [vmem:[%s288 + $0x70] sm:$0xff] %v4613
        %4646 = vst [vmem:[%s288 + $0x78] sm:$0xff] %v4614
        %4647 = vst [vmem:[%s288 + $0x80] sm:$0xff] %v4615
        %4648 = vst [vmem:[%s288 + $0x88] sm:$0xff] %v4616
        %4649 = vst [vmem:[%s288 + $0x90] sm:$0xff] %v4617
        %4650 = vst [vmem:[%s288 + $0x98] sm:$0xff] %v4618
        %4651 = vst [vmem:[%s288 + $0xa0] sm:$0xff] %v4619
        %4652 = vst [vmem:[%s288 + $0xa8] sm:$0xff] %v4620
        %4653 = vst [vmem:[%s288 + $0xb0] sm:$0xff] %v4621
        %4654 = vst [vmem:[%s288 + $0xb8] sm:$0xff] %v4622
        %4655 = vst [vmem:[%s288 + $0xc0] sm:$0xff] %v4623
        %4656 = vst [vmem:[%s288 + $0xc8] sm:$0xff] %v4624
        %4657 = vst [vmem:[%s288 + $0xd0] sm:$0xff] %v4625
        %4658 = vst [vmem:[%s288 + $0xd8] sm:$0xff] %v4626
        %4659 = vst [vmem:[%s288 + $0xe0] sm:$0xff] %v4627
        %4660 = vst [vmem:[%s288 + $0xe8] sm:$0xff] %v4628
        %4661 = vst [vmem:[%s288 + $0xf0] sm:$0xff] %v4629
        %4662 = vst [vmem:[%s288 + $0xf8] sm:$0xff] %v4630
        %s4663 = sand.u32 %s182, 1
        %s4664 = scalar_lea.sflag [#allocation7], %s4663
        %s4665 = sand.u32 %s182, 1
        %s4666 = smul.addr %s4665, 256
        %s4667 = scalar_lea.vmem [#allocation8], %s4666
        // Predicated region
        $region53: #{tpu_custom_call.1} parent=47 // pred_check
          %p4668 = pneg %p192
        $region54: #{tpu_custom_call.1} parent=47 // pred_check_branch
          %4670 = sbr.rel (%p4668) target = $region56
        $region55: #{tpu_custom_call.1} parent=47 // pred_region
          %4672 = vsyncadd %s4664, 0
          %s4673 = smul.addr %s22, 32
          %s4674 = smul.addr %s4673, 8
          %s4675 = scalar_lea.hbm %s7, %s4674
          %s4676 = sshll.u32 %s4667, 4
          %s4677 = int_to_ptr.vmem [resolvable:$true] %s4676
          %s4678 = sshll.u32 %s4675, 4
          %s4679 = int_to_ptr.hbm [resolvable:$true] %s4678
          %4684 = dma.vmem_to_hbm [thread:$0]  %s4677, 4096, %s4679, %s4664, 128, 128, 8
        $region56: #{tpu_custom_call.1} parent=47 // pred_fallthru
          _
      $region48: #{tpu_custom_call.1} parent=5 // pred_fallthru
        _
      %p4685 = scmp.le.s32.totalorder 2, %s17
      // Predicated region
      $region57: #{tpu_custom_call.1} parent=5 // pred_check
        %p4686 = pneg %p4685
      $region58: #{tpu_custom_call.1} parent=5 // pred_check_branch
        %4688 = sbr.rel (%p4686) target = $region60
      $region59: #{tpu_custom_call.1} parent=5 // pred_region
        %s4689 = ssub.s32 %s17, 2
        // Predicated region
        $region61: #{tpu_custom_call.1} parent=59 // pred_check
          %p4690 = pneg %p198
        $region62: #{tpu_custom_call.1} parent=59 // pred_check_branch
          %4692 = sbr.rel (%p4690) target = $region64
        $region63: #{tpu_custom_call.1} parent=59 // pred_region
          %s4693 = sand.u32 %s183, 1
          %s4694 = scalar_lea.sflag [#allocation7], %s4693
          %s4695 = sand.u32 %s183, 1
          %s4696 = smul.addr %s4695, 256
          %s4697 = scalar_lea.vmem [#allocation8], %s4696
          %4699 = dma.done %s4694, 4096
        $region64: #{tpu_custom_call.1} parent=59 // pred_fallthru
          _
      $region60: #{tpu_custom_call.1} parent=5 // pred_fallthru
        _
    $region6: #{tpu_custom_call.1} parent=1 // loop_footer
      %s21 = sadd.s32 1, %s17
    $region7: #{tpu_custom_call.1} parent=1 // loop_footer_branch
      %16 = sbr.rel target = $region3
    $region8: #{tpu_custom_call.1} parent=1 // loop_exit
      _
    %4700 = vsyncpa [#allocation6], 1
    %s4701 = scalar_lea.sflag [#allocation6], 1
    %4702 = vsyncpa %s4701, 1
    %4703 = vsyncpa [#allocation7], 1
    %s4704 = scalar_lea.sflag [#allocation7], 1
    %4705 = vsyncpa %s4704, 1

</llo_original>
